<compile_context>
chip_gen: v7x
topology: tpu7x:2x2x1
jax: 0.10.0
libtpu: 0.0.40
codegen_flags: <defaults>
</compile_context>

<pallas_src>
import functools

import jax
import jax.numpy as jnp
from jax.experimental import pallas as pl
from jax.experimental.pallas import tpu as pltpu

_MIB = 1024 * 1024
# Conservative per-step working-set budget: fits v7x (64 MiB physical VMEM)
# with headroom; v5e/v6e have 128 MiB physical.
_VMEM_BUDGET = 32 * _MIB
_VMEM_LIMIT_CAP = 48 * _MIB
_M_ROW_TARGET = 512          # target matmul rows per grid step

# bf16 matmul operands (v6e/v7x MXU is bf16-native).  Off by default: bf16
# products diverge from the f32 reference by ~1e-3 rel., failing 1e-4 atol.
_USE_BF16_MATMUL = False


def _pad_hw1(x):
    """Zero-pad a (B, H, W, C) register value by 1 on H and W (in-kernel).

    Concatenation is along H / W (sublane-side axes), never along lanes.
    """
    B, H, W, C = x.shape
    zr = jnp.zeros((B, 1, W, C), x.dtype)
    x = jnp.concatenate([zr, x, zr], axis=1)          # (B, H+2, W, C)
    zc = jnp.zeros((B, H + 2, 1, C), x.dtype)
    return jnp.concatenate([zc, x, zc], axis=2)       # (B, H+2, W+2, C)


def decoder_block_kernel(x_ref, w1_ref, b1_ref, w2_ref, b2_ref, o_ref, *,
                         Bt, H, W, Cin, Cmid, Cout):
    M = Bt * H * W
    mm_dtype = jnp.bfloat16 if _USE_BF16_MATMUL else jnp.float32

    # Weights are small: load once, hoisted out of the tap loops.
    w1 = w1_ref[...].astype(mm_dtype)                 # (9, Cin,  Cmid)
    w2 = w2_ref[...].astype(mm_dtype)                 # (9, Cmid, 4*Cout)

    # ---- stage 1: 3x3 conv (pad=1) + ReLU, K-accumulated over 9 taps ----
    x = x_ref[...]                                    # (Bt, H, W, Cin)
    xp = _pad_hw1(x)                                  # (Bt, H+2, W+2, Cin)
    acc1 = jnp.zeros((M, Cmid), jnp.float32)
    for t in range(9):
        kh, kw = divmod(t, 3)
        tap = xp[:, kh:kh + H, kw:kw + W, :].reshape(M, Cin).astype(mm_dtype)
        acc1 = acc1 + jnp.dot(tap, w1[t], preferred_element_type=jnp.float32)
    mid = jnp.maximum(acc1 + b1_ref[...], 0.0)        # (M, Cmid), f32

    # ---- stage 2: ConvTranspose2d(k=4, s=2, p=1) + ReLU, all 4 parities ----
    # fused: one pass over the padded mid map, 9 offsets, accumulating into a
    # single (M, 4*Cout) result; unused parity/offset combos are zero in w2.
    mp = _pad_hw1(mid.reshape(Bt, H, W, Cmid))        # (Bt, H+2, W+2, Cmid) f32
    acc2 = jnp.zeros((M, 4 * Cout), jnp.float32)
    for t in range(9):
        dh, dw = divmod(t, 3)
        tap = mp[:, dh:dh + H, dw:dw + W, :].reshape(M, Cmid).astype(mm_dtype)
        acc2 = acc2 + jnp.dot(tap, w2[t], preferred_element_type=jnp.float32)
    y = jnp.maximum(acc2 + b2_ref[...], 0.0)          # (M, 4*Cout), f32

    o_ref[...] = y.reshape(Bt, H, W, 4 * Cout).astype(o_ref.dtype)


def _padded_bytes(shape, itemsize=4):
    """VMEM footprint of a buffer after (8, 128) tiling of the two minor dims."""
    shape = tuple(int(d) for d in shape)
    if len(shape) < 2:
        shape = (1,) * (2 - len(shape)) + shape
    lead = 1
    for d in shape[:-2]:
        lead *= d
    sub = -(-shape[-2] // 8) * 8
    lane = -(-shape[-1] // 128) * 128
    return lead * sub * lane * itemsize


def _vmem_bytes_estimate(Bt, H, W, Cin, Cmid, Cout):
    """Per-grid-step VMEM estimate: double-buffered I/O blocks + temporaries."""
    M = Bt * H * W
    est = 0
    est += 2 * _padded_bytes((Bt, H, W, Cin))              # input block x2
    est += 2 * _padded_bytes((Bt, H, W, 4 * Cout))         # output block x2
    est += 2 * (_padded_bytes((9, Cin, Cmid))
                + _padded_bytes((9, Cmid, 4 * Cout))
                + _padded_bytes((1, Cmid))
                + _padded_bytes((1, 4 * Cout)))            # weights/biases x2
    est += _padded_bytes((Bt, H + 2, W + 2, Cin))          # xp
    est += _padded_bytes((Bt, H + 2, W + 2, Cmid))         # mp
    est += 2 * _padded_bytes((M, Cmid))                    # acc1 + mid
    est += 2 * _padded_bytes((M, 4 * Cout))                # acc2 + y
    est += 3 * _padded_bytes((M, max(Cin, Cmid)))          # live tap-slice slack
    return est


def _pick_block_batch(B, H, W, Cin, Cmid, Cout):
    """Largest batch block that (a) fits the VMEM budget, (b) keeps >=2 grid
    programs when B >= 2 (pipelining + v7x megacore), (c) stops growing once
    the matmul row target is reached."""
    divisors = [d for d in range(1, B + 1) if B % d == 0]
    candidates = [d for d in divisors if B // d >= 2] or [B]
    best = candidates[0]
    for d in candidates:
        if _vmem_bytes_estimate(d, H, W, Cin, Cmid, Cout) > _VMEM_BUDGET:
            break
        best = d
        if d * H * W >= _M_ROW_TARGET:
            break
    return best, _vmem_bytes_estimate(best, H, W, Cin, Cmid, Cout)


def decoder_block_v2(x_nchw, w1, b1, w2, b2):
    """x_nchw: (B, Cin, H, W); w1: (Cmid, Cin, 3, 3); b1: (Cmid,);
       w2: (Cmid, Cout, 4, 4); b2: (Cout,)."""
    x = jnp.transpose(x_nchw, (0, 2, 3, 1))           # NCHW -> NHWC
    B, H, W, Cin = x.shape
    Cmid = w1.shape[0]
    Cout = w2.shape[1]

    # Stage-1 weight: (Cmid, Cin, 3, 3) -> (9, Cin, Cmid), tap-major.
    w1_p = jnp.transpose(w1, (2, 3, 1, 0)).reshape(9, Cin, Cmid)

    # Stage-2 weight: per padded-mid offset (dh, dw) in {0,1,2}^2, a
    # (Cmid, 4*Cout) matrix; parity (a, b) occupies columns (a*2+b)*Cout:+Cout
    # and is non-zero only when r = dh - a and c = dw - b are both in {0, 1},
    # in which case it equals W2[:, :, 3 - a - 2r, 3 - b - 2c].
    w2_p = jnp.zeros((9, Cmid, 4, Cout), w2.dtype)
    for dh in range(3):
        for dw in range(3):
            for a in (0, 1):
                for b in (0, 1):
                    r, c = dh - a, dw - b
                    if r in (0, 1) and c in (0, 1):
                        w2_p = w2_p.at[dh * 3 + dw, :, a * 2 + b, :].set(
                            w2[:, :, 3 - a - 2 * r, 3 - b - 2 * c])
    w2_p = w2_p.reshape(9, Cmid, 4 * Cout)

    b1_r = b1.reshape(1, Cmid)
    b2_r = jnp.tile(b2, 4).reshape(1, 4 * Cout)       # same bias per parity

    Bt, vmem_est = _pick_block_batch(B, H, W, Cin, Cmid, Cout)
    grid = (B // Bt,)
    vmem_limit = int(min(max(32 * _MIB, int(vmem_est * 1.25)), _VMEM_LIMIT_CAP))

    kernel = functools.partial(decoder_block_kernel,
                               Bt=Bt, H=H, W=W, Cin=Cin, Cmid=Cmid, Cout=Cout)

    # Parity-fused output: channel index = (a*2 + b)*Cout + c.
    out_pm = pl.pallas_call(
        kernel,
        out_shape=jax.ShapeDtypeStruct((B, H, W, 4 * Cout), x.dtype),
        grid_spec=pltpu.PrefetchScalarGridSpec(
            num_scalar_prefetch=0,
            grid=grid,
            in_specs=[
                pl.BlockSpec((Bt, H, W, Cin), lambda n: (n, 0, 0, 0)),
                pl.BlockSpec((9, Cin, Cmid), lambda n: (0, 0, 0)),
                pl.BlockSpec((1, Cmid), lambda n: (0, 0)),
                pl.BlockSpec((9, Cmid, 4 * Cout), lambda n: (0, 0, 0)),
                pl.BlockSpec((1, 4 * Cout), lambda n: (0, 0)),
            ],
            out_specs=pl.BlockSpec((Bt, H, W, 4 * Cout),
                                   lambda n: (n, 0, 0, 0)),
        ),
        compiler_params=pltpu.CompilerParams(
            dimension_semantics=("parallel",),
            vmem_limit_bytes=vmem_limit),
    )(x, w1_p, b1_r, w2_p, b2_r)

    # Interleave parities (2i+a, 2j+b) and convert to NCHW in XLA, once.
    out = out_pm.reshape(B, H, W, 2, 2, Cout)         # (B, i, j, a, b, c)
    out = jnp.transpose(out, (0, 5, 1, 3, 2, 4))      # (B, c, i, a, j, b)
    return out.reshape(B, Cout, 2 * H, 2 * W)


def _reference(x, w1, b1, w2, b2):
    """Pure-JAX reference matching PyTorch semantics (NCHW)."""
    mid = jax.lax.conv_general_dilated(
        x, w1, (1, 1), [(1, 1), (1, 1)],
        dimension_numbers=('NCHW', 'OIHW', 'NCHW')) + b1[None, :, None, None]
    mid = jnp.maximum(mid, 0.0)
    # ConvTranspose2d(k=4, s=2, p=1) == conv(lhs_dilation=2, pad=2, flipped W)
    w2_flip = jnp.transpose(w2, (1, 0, 2, 3))[:, :, ::-1, ::-1]
    out = jax.lax.conv_general_dilated(
        mid, w2_flip, (1, 1), [(2, 2), (2, 2)], lhs_dilation=(2, 2),
        dimension_numbers=('NCHW', 'OIHW', 'NCHW')) + b2[None, :, None, None]
    return jnp.maximum(out, 0.0)


if __name__ == "__main__":
    B, Cin, Cmid, Cout, H, W = 2, 4, 8, 4, 16, 16

    key = jax.random.PRNGKey(0)
    k0, k1, k2, k3, k4 = jax.random.split(key, 5)
    x = jax.random.normal(k0, (B, Cin, H, W), jnp.float32)
    w1 = jax.random.normal(k1, (Cmid, Cin, 3, 3), jnp.float32) * 0.2
    b1 = jax.random.normal(k2, (Cmid,), jnp.float32) * 0.1
    w2 = jax.random.normal(k3, (Cmid, Cout, 4, 4), jnp.float32) * 0.2
    b2 = jax.random.normal(k4, (Cout,), jnp.float32) * 0.1

    out = decoder_block_v2(x, w1, b1, w2, b2)
    jax.block_until_ready(out)

    ref = _reference(x, w1, b1, w2, b2)
    assert out.shape == (B, Cout, 2 * H, 2 * W), out.shape
    assert jnp.allclose(out, ref, atol=1e-4, rtol=1e-4), \
        float(jnp.max(jnp.abs(out - ref)))

    print("KERNEL_OK")
</pallas_src>

<mosaic_0001>
module attributes {stable_mosaic.version = 11 : i64} {
  func.func @decoder_block_kernel(%arg0: i32, %arg1: memref<1x16x16x4xf32, #tpu.memory_space<vmem>>, %arg2: memref<9x4x8xf32, #tpu.memory_space<vmem>>, %arg3: memref<1x8xf32, #tpu.memory_space<vmem>>, %arg4: memref<9x8x16xf32, #tpu.memory_space<vmem>>, %arg5: memref<1x16xf32, #tpu.memory_space<vmem>>, %arg6: memref<1x16x16x16xf32, #tpu.memory_space<vmem>>) attributes {dimension_semantics = [#tpu.dimension_semantics<parallel>], iteration_bounds = array<i64: 2>, scalar_prefetch = 0 : i64, scratch_operands = 0 : i64, tpu.core_type = #tpu.core_type<tc>, window_params = [{transform_indices = @transform_0, window_bounds = array<i64: 1, 16, 16, 4>}, {pipeline_mode = #tpu.pipeline_mode<synchronous>, transform_indices = @transform_1, window_bounds = array<i64: 9, 4, 8>}, {pipeline_mode = #tpu.pipeline_mode<synchronous>, transform_indices = @transform_2, window_bounds = array<i64: 1, 8>}, {pipeline_mode = #tpu.pipeline_mode<synchronous>, transform_indices = @transform_3, window_bounds = array<i64: 9, 8, 16>}, {pipeline_mode = #tpu.pipeline_mode<synchronous>, transform_indices = @transform_4, window_bounds = array<i64: 1, 16>}, {transform_indices = @transform_5, window_bounds = array<i64: 1, 16, 16, 16>}]} {
    %c0 = arith.constant 0 : index
    %c0_0 = arith.constant 0 : index
    %c0_1 = arith.constant 0 : index
    %0 = vector.load %arg2[%c0, %c0_0, %c0_1] : memref<9x4x8xf32, #tpu.memory_space<vmem>>, vector<9x4x8xf32>
    %c0_2 = arith.constant 0 : index
    %c0_3 = arith.constant 0 : index
    %c0_4 = arith.constant 0 : index
    %1 = vector.load %arg4[%c0_2, %c0_3, %c0_4] : memref<9x8x16xf32, #tpu.memory_space<vmem>>, vector<9x8x16xf32>
    %c0_5 = arith.constant 0 : index
    %c0_6 = arith.constant 0 : index
    %c0_7 = arith.constant 0 : index
    %c0_8 = arith.constant 0 : index
    %2 = vector.load %arg1[%c0_5, %c0_6, %c0_7, %c0_8] : memref<1x16x16x4xf32, #tpu.memory_space<vmem>>, vector<1x16x16x4xf32>
    %cst = arith.constant 0.000000e+00 : f32
    %3 = vector.broadcast %cst : f32 to vector<1x1x16x4xf32>
    %4 = tpu.concatenate %3, %2, %3 in 1 : vector<1x1x16x4xf32>, vector<1x16x16x4xf32>, vector<1x1x16x4xf32> -> vector<1x18x16x4xf32>
    %cst_9 = arith.constant 0.000000e+00 : f32
    %5 = vector.broadcast %cst_9 : f32 to vector<1x18x1x4xf32>
    %6 = tpu.concatenate %5, %4, %5 in 2 : vector<1x18x1x4xf32>, vector<1x18x16x4xf32>, vector<1x18x1x4xf32> -> vector<1x18x18x4xf32>
    %cst_10 = arith.constant 0.000000e+00 : f32
    %7 = vector.broadcast %cst_10 : f32 to vector<256x8xf32>
    %8 = vector.extract_strided_slice %6 {offsets = [0, 0, 0, 0], sizes = [1, 16, 16, 4], strides = [1, 1, 1, 1]} : vector<1x18x18x4xf32> to vector<1x16x16x4xf32>
    %9 = vector.shape_cast %8 : vector<1x16x16x4xf32> to vector<256x4xf32>
    %10 = vector.extract_strided_slice %0 {offsets = [0, 0, 0], sizes = [1, 4, 8], strides = [1, 1, 1]} : vector<9x4x8xf32> to vector<1x4x8xf32>
    %11 = vector.shape_cast %10 : vector<1x4x8xf32> to vector<4x8xf32>
    %cst_11 = arith.constant dense<0.000000e+00> : vector<256x8xf32>
    %12 = tpu.matmul %9, %11, %cst_11 {dimension_numbers = #tpu.dot_dimension_numbers<[1], [0], [0], [1], [0, 0, 1, 1], [], []>} : vector<256x4xf32>, vector<4x8xf32>, vector<256x8xf32> -> vector<256x8xf32>
    %13 = arith.addf %7, %12 : vector<256x8xf32>
    %14 = vector.extract_strided_slice %6 {offsets = [0, 0, 1, 0], sizes = [1, 16, 16, 4], strides = [1, 1, 1, 1]} : vector<1x18x18x4xf32> to vector<1x16x16x4xf32>
    %15 = vector.shape_cast %14 : vector<1x16x16x4xf32> to vector<256x4xf32>
    %16 = vector.extract_strided_slice %0 {offsets = [1, 0, 0], sizes = [1, 4, 8], strides = [1, 1, 1]} : vector<9x4x8xf32> to vector<1x4x8xf32>
    %17 = vector.shape_cast %16 : vector<1x4x8xf32> to vector<4x8xf32>
    %cst_12 = arith.constant dense<0.000000e+00> : vector<256x8xf32>
    %18 = tpu.matmul %15, %17, %cst_12 {dimension_numbers = #tpu.dot_dimension_numbers<[1], [0], [0], [1], [0, 0, 1, 1], [], []>} : vector<256x4xf32>, vector<4x8xf32>, vector<256x8xf32> -> vector<256x8xf32>
    %19 = arith.addf %13, %18 : vector<256x8xf32>
    %20 = vector.extract_strided_slice %6 {offsets = [0, 0, 2, 0], sizes = [1, 16, 16, 4], strides = [1, 1, 1, 1]} : vector<1x18x18x4xf32> to vector<1x16x16x4xf32>
    %21 = vector.shape_cast %20 : vector<1x16x16x4xf32> to vector<256x4xf32>
    %22 = vector.extract_strided_slice %0 {offsets = [2, 0, 0], sizes = [1, 4, 8], strides = [1, 1, 1]} : vector<9x4x8xf32> to vector<1x4x8xf32>
    %23 = vector.shape_cast %22 : vector<1x4x8xf32> to vector<4x8xf32>
    %cst_13 = arith.constant dense<0.000000e+00> : vector<256x8xf32>
    %24 = tpu.matmul %21, %23, %cst_13 {dimension_numbers = #tpu.dot_dimension_numbers<[1], [0], [0], [1], [0, 0, 1, 1], [], []>} : vector<256x4xf32>, vector<4x8xf32>, vector<256x8xf32> -> vector<256x8xf32>
    %25 = arith.addf %19, %24 : vector<256x8xf32>
    %26 = vector.extract_strided_slice %6 {offsets = [0, 1, 0, 0], sizes = [1, 16, 16, 4], strides = [1, 1, 1, 1]} : vector<1x18x18x4xf32> to vector<1x16x16x4xf32>
    %27 = vector.shape_cast %26 : vector<1x16x16x4xf32> to vector<256x4xf32>
    %28 = vector.extract_strided_slice %0 {offsets = [3, 0, 0], sizes = [1, 4, 8], strides = [1, 1, 1]} : vector<9x4x8xf32> to vector<1x4x8xf32>
    %29 = vector.shape_cast %28 : vector<1x4x8xf32> to vector<4x8xf32>
    %cst_14 = arith.constant dense<0.000000e+00> : vector<256x8xf32>
    %30 = tpu.matmul %27, %29, %cst_14 {dimension_numbers = #tpu.dot_dimension_numbers<[1], [0], [0], [1], [0, 0, 1, 1], [], []>} : vector<256x4xf32>, vector<4x8xf32>, vector<256x8xf32> -> vector<256x8xf32>
    %31 = arith.addf %25, %30 : vector<256x8xf32>
    %32 = vector.extract_strided_slice %6 {offsets = [0, 1, 1, 0], sizes = [1, 16, 16, 4], strides = [1, 1, 1, 1]} : vector<1x18x18x4xf32> to vector<1x16x16x4xf32>
    %33 = vector.shape_cast %32 : vector<1x16x16x4xf32> to vector<256x4xf32>
    %34 = vector.extract_strided_slice %0 {offsets = [4, 0, 0], sizes = [1, 4, 8], strides = [1, 1, 1]} : vector<9x4x8xf32> to vector<1x4x8xf32>
    %35 = vector.shape_cast %34 : vector<1x4x8xf32> to vector<4x8xf32>
    %cst_15 = arith.constant dense<0.000000e+00> : vector<256x8xf32>
    %36 = tpu.matmul %33, %35, %cst_15 {dimension_numbers = #tpu.dot_dimension_numbers<[1], [0], [0], [1], [0, 0, 1, 1], [], []>} : vector<256x4xf32>, vector<4x8xf32>, vector<256x8xf32> -> vector<256x8xf32>
    %37 = arith.addf %31, %36 : vector<256x8xf32>
    %38 = vector.extract_strided_slice %6 {offsets = [0, 1, 2, 0], sizes = [1, 16, 16, 4], strides = [1, 1, 1, 1]} : vector<1x18x18x4xf32> to vector<1x16x16x4xf32>
    %39 = vector.shape_cast %38 : vector<1x16x16x4xf32> to vector<256x4xf32>
    %40 = vector.extract_strided_slice %0 {offsets = [5, 0, 0], sizes = [1, 4, 8], strides = [1, 1, 1]} : vector<9x4x8xf32> to vector<1x4x8xf32>
    %41 = vector.shape_cast %40 : vector<1x4x8xf32> to vector<4x8xf32>
    %cst_16 = arith.constant dense<0.000000e+00> : vector<256x8xf32>
    %42 = tpu.matmul %39, %41, %cst_16 {dimension_numbers = #tpu.dot_dimension_numbers<[1], [0], [0], [1], [0, 0, 1, 1], [], []>} : vector<256x4xf32>, vector<4x8xf32>, vector<256x8xf32> -> vector<256x8xf32>
    %43 = arith.addf %37, %42 : vector<256x8xf32>
    %44 = vector.extract_strided_slice %6 {offsets = [0, 2, 0, 0], sizes = [1, 16, 16, 4], strides = [1, 1, 1, 1]} : vector<1x18x18x4xf32> to vector<1x16x16x4xf32>
    %45 = vector.shape_cast %44 : vector<1x16x16x4xf32> to vector<256x4xf32>
    %46 = vector.extract_strided_slice %0 {offsets = [6, 0, 0], sizes = [1, 4, 8], strides = [1, 1, 1]} : vector<9x4x8xf32> to vector<1x4x8xf32>
    %47 = vector.shape_cast %46 : vector<1x4x8xf32> to vector<4x8xf32>
    %cst_17 = arith.constant dense<0.000000e+00> : vector<256x8xf32>
    %48 = tpu.matmul %45, %47, %cst_17 {dimension_numbers = #tpu.dot_dimension_numbers<[1], [0], [0], [1], [0, 0, 1, 1], [], []>} : vector<256x4xf32>, vector<4x8xf32>, vector<256x8xf32> -> vector<256x8xf32>
    %49 = arith.addf %43, %48 : vector<256x8xf32>
    %50 = vector.extract_strided_slice %6 {offsets = [0, 2, 1, 0], sizes = [1, 16, 16, 4], strides = [1, 1, 1, 1]} : vector<1x18x18x4xf32> to vector<1x16x16x4xf32>
    %51 = vector.shape_cast %50 : vector<1x16x16x4xf32> to vector<256x4xf32>
    %52 = vector.extract_strided_slice %0 {offsets = [7, 0, 0], sizes = [1, 4, 8], strides = [1, 1, 1]} : vector<9x4x8xf32> to vector<1x4x8xf32>
    %53 = vector.shape_cast %52 : vector<1x4x8xf32> to vector<4x8xf32>
    %cst_18 = arith.constant dense<0.000000e+00> : vector<256x8xf32>
    %54 = tpu.matmul %51, %53, %cst_18 {dimension_numbers = #tpu.dot_dimension_numbers<[1], [0], [0], [1], [0, 0, 1, 1], [], []>} : vector<256x4xf32>, vector<4x8xf32>, vector<256x8xf32> -> vector<256x8xf32>
    %55 = arith.addf %49, %54 : vector<256x8xf32>
    %56 = vector.extract_strided_slice %6 {offsets = [0, 2, 2, 0], sizes = [1, 16, 16, 4], strides = [1, 1, 1, 1]} : vector<1x18x18x4xf32> to vector<1x16x16x4xf32>
    %57 = vector.shape_cast %56 : vector<1x16x16x4xf32> to vector<256x4xf32>
    %58 = vector.extract_strided_slice %0 {offsets = [8, 0, 0], sizes = [1, 4, 8], strides = [1, 1, 1]} : vector<9x4x8xf32> to vector<1x4x8xf32>
    %59 = vector.shape_cast %58 : vector<1x4x8xf32> to vector<4x8xf32>
    %cst_19 = arith.constant dense<0.000000e+00> : vector<256x8xf32>
    %60 = tpu.matmul %57, %59, %cst_19 {dimension_numbers = #tpu.dot_dimension_numbers<[1], [0], [0], [1], [0, 0, 1, 1], [], []>} : vector<256x4xf32>, vector<4x8xf32>, vector<256x8xf32> -> vector<256x8xf32>
    %61 = arith.addf %55, %60 : vector<256x8xf32>
    %c0_20 = arith.constant 0 : index
    %c0_21 = arith.constant 0 : index
    %62 = vector.load %arg3[%c0_20, %c0_21] : memref<1x8xf32, #tpu.memory_space<vmem>>, vector<1x8xf32>
    %63 = vector.broadcast %62 : vector<1x8xf32> to vector<256x8xf32>
    %64 = arith.addf %61, %63 : vector<256x8xf32>
    %cst_22 = arith.constant 0.000000e+00 : f32
    %65 = vector.broadcast %cst_22 : f32 to vector<256x8xf32>
    %66 = arith.maximumf %64, %65 : vector<256x8xf32>
    %67 = vector.shape_cast %66 : vector<256x8xf32> to vector<1x16x16x8xf32>
    %cst_23 = arith.constant 0.000000e+00 : f32
    %68 = vector.broadcast %cst_23 : f32 to vector<1x1x16x8xf32>
    %69 = tpu.concatenate %68, %67, %68 in 1 : vector<1x1x16x8xf32>, vector<1x16x16x8xf32>, vector<1x1x16x8xf32> -> vector<1x18x16x8xf32>
    %cst_24 = arith.constant 0.000000e+00 : f32
    %70 = vector.broadcast %cst_24 : f32 to vector<1x18x1x8xf32>
    %71 = tpu.concatenate %70, %69, %70 in 2 : vector<1x18x1x8xf32>, vector<1x18x16x8xf32>, vector<1x18x1x8xf32> -> vector<1x18x18x8xf32>
    %cst_25 = arith.constant 0.000000e+00 : f32
    %72 = vector.broadcast %cst_25 : f32 to vector<256x16xf32>
    %73 = vector.extract_strided_slice %71 {offsets = [0, 0, 0, 0], sizes = [1, 16, 16, 8], strides = [1, 1, 1, 1]} : vector<1x18x18x8xf32> to vector<1x16x16x8xf32>
    %74 = vector.shape_cast %73 : vector<1x16x16x8xf32> to vector<256x8xf32>
    %75 = vector.extract_strided_slice %1 {offsets = [0, 0, 0], sizes = [1, 8, 16], strides = [1, 1, 1]} : vector<9x8x16xf32> to vector<1x8x16xf32>
    %76 = vector.shape_cast %75 : vector<1x8x16xf32> to vector<8x16xf32>
    %cst_26 = arith.constant dense<0.000000e+00> : vector<256x16xf32>
    %77 = tpu.matmul %74, %76, %cst_26 {dimension_numbers = #tpu.dot_dimension_numbers<[1], [0], [0], [1], [0, 0, 1, 1], [], []>} : vector<256x8xf32>, vector<8x16xf32>, vector<256x16xf32> -> vector<256x16xf32>
    %78 = arith.addf %72, %77 : vector<256x16xf32>
    %79 = vector.extract_strided_slice %71 {offsets = [0, 0, 1, 0], sizes = [1, 16, 16, 8], strides = [1, 1, 1, 1]} : vector<1x18x18x8xf32> to vector<1x16x16x8xf32>
    %80 = vector.shape_cast %79 : vector<1x16x16x8xf32> to vector<256x8xf32>
    %81 = vector.extract_strided_slice %1 {offsets = [1, 0, 0], sizes = [1, 8, 16], strides = [1, 1, 1]} : vector<9x8x16xf32> to vector<1x8x16xf32>
    %82 = vector.shape_cast %81 : vector<1x8x16xf32> to vector<8x16xf32>
    %cst_27 = arith.constant dense<0.000000e+00> : vector<256x16xf32>
    %83 = tpu.matmul %80, %82, %cst_27 {dimension_numbers = #tpu.dot_dimension_numbers<[1], [0], [0], [1], [0, 0, 1, 1], [], []>} : vector<256x8xf32>, vector<8x16xf32>, vector<256x16xf32> -> vector<256x16xf32>
    %84 = arith.addf %78, %83 : vector<256x16xf32>
    %85 = vector.extract_strided_slice %71 {offsets = [0, 0, 2, 0], sizes = [1, 16, 16, 8], strides = [1, 1, 1, 1]} : vector<1x18x18x8xf32> to vector<1x16x16x8xf32>
    %86 = vector.shape_cast %85 : vector<1x16x16x8xf32> to vector<256x8xf32>
    %87 = vector.extract_strided_slice %1 {offsets = [2, 0, 0], sizes = [1, 8, 16], strides = [1, 1, 1]} : vector<9x8x16xf32> to vector<1x8x16xf32>
    %88 = vector.shape_cast %87 : vector<1x8x16xf32> to vector<8x16xf32>
    %cst_28 = arith.constant dense<0.000000e+00> : vector<256x16xf32>
    %89 = tpu.matmul %86, %88, %cst_28 {dimension_numbers = #tpu.dot_dimension_numbers<[1], [0], [0], [1], [0, 0, 1, 1], [], []>} : vector<256x8xf32>, vector<8x16xf32>, vector<256x16xf32> -> vector<256x16xf32>
    %90 = arith.addf %84, %89 : vector<256x16xf32>
    %91 = vector.extract_strided_slice %71 {offsets = [0, 1, 0, 0], sizes = [1, 16, 16, 8], strides = [1, 1, 1, 1]} : vector<1x18x18x8xf32> to vector<1x16x16x8xf32>
    %92 = vector.shape_cast %91 : vector<1x16x16x8xf32> to vector<256x8xf32>
    %93 = vector.extract_strided_slice %1 {offsets = [3, 0, 0], sizes = [1, 8, 16], strides = [1, 1, 1]} : vector<9x8x16xf32> to vector<1x8x16xf32>
    %94 = vector.shape_cast %93 : vector<1x8x16xf32> to vector<8x16xf32>
    %cst_29 = arith.constant dense<0.000000e+00> : vector<256x16xf32>
    %95 = tpu.matmul %92, %94, %cst_29 {dimension_numbers = #tpu.dot_dimension_numbers<[1], [0], [0], [1], [0, 0, 1, 1], [], []>} : vector<256x8xf32>, vector<8x16xf32>, vector<256x16xf32> -> vector<256x16xf32>
    %96 = arith.addf %90, %95 : vector<256x16xf32>
    %97 = vector.extract_strided_slice %71 {offsets = [0, 1, 1, 0], sizes = [1, 16, 16, 8], strides = [1, 1, 1, 1]} : vector<1x18x18x8xf32> to vector<1x16x16x8xf32>
    %98 = vector.shape_cast %97 : vector<1x16x16x8xf32> to vector<256x8xf32>
    %99 = vector.extract_strided_slice %1 {offsets = [4, 0, 0], sizes = [1, 8, 16], strides = [1, 1, 1]} : vector<9x8x16xf32> to vector<1x8x16xf32>
    %100 = vector.shape_cast %99 : vector<1x8x16xf32> to vector<8x16xf32>
    %cst_30 = arith.constant dense<0.000000e+00> : vector<256x16xf32>
    %101 = tpu.matmul %98, %100, %cst_30 {dimension_numbers = #tpu.dot_dimension_numbers<[1], [0], [0], [1], [0, 0, 1, 1], [], []>} : vector<256x8xf32>, vector<8x16xf32>, vector<256x16xf32> -> vector<256x16xf32>
    %102 = arith.addf %96, %101 : vector<256x16xf32>
    %103 = vector.extract_strided_slice %71 {offsets = [0, 1, 2, 0], sizes = [1, 16, 16, 8], strides = [1, 1, 1, 1]} : vector<1x18x18x8xf32> to vector<1x16x16x8xf32>
    %104 = vector.shape_cast %103 : vector<1x16x16x8xf32> to vector<256x8xf32>
    %105 = vector.extract_strided_slice %1 {offsets = [5, 0, 0], sizes = [1, 8, 16], strides = [1, 1, 1]} : vector<9x8x16xf32> to vector<1x8x16xf32>
    %106 = vector.shape_cast %105 : vector<1x8x16xf32> to vector<8x16xf32>
    %cst_31 = arith.constant dense<0.000000e+00> : vector<256x16xf32>
    %107 = tpu.matmul %104, %106, %cst_31 {dimension_numbers = #tpu.dot_dimension_numbers<[1], [0], [0], [1], [0, 0, 1, 1], [], []>} : vector<256x8xf32>, vector<8x16xf32>, vector<256x16xf32> -> vector<256x16xf32>
    %108 = arith.addf %102, %107 : vector<256x16xf32>
    %109 = vector.extract_strided_slice %71 {offsets = [0, 2, 0, 0], sizes = [1, 16, 16, 8], strides = [1, 1, 1, 1]} : vector<1x18x18x8xf32> to vector<1x16x16x8xf32>
    %110 = vector.shape_cast %109 : vector<1x16x16x8xf32> to vector<256x8xf32>
    %111 = vector.extract_strided_slice %1 {offsets = [6, 0, 0], sizes = [1, 8, 16], strides = [1, 1, 1]} : vector<9x8x16xf32> to vector<1x8x16xf32>
    %112 = vector.shape_cast %111 : vector<1x8x16xf32> to vector<8x16xf32>
    %cst_32 = arith.constant dense<0.000000e+00> : vector<256x16xf32>
    %113 = tpu.matmul %110, %112, %cst_32 {dimension_numbers = #tpu.dot_dimension_numbers<[1], [0], [0], [1], [0, 0, 1, 1], [], []>} : vector<256x8xf32>, vector<8x16xf32>, vector<256x16xf32> -> vector<256x16xf32>
    %114 = arith.addf %108, %113 : vector<256x16xf32>
    %115 = vector.extract_strided_slice %71 {offsets = [0, 2, 1, 0], sizes = [1, 16, 16, 8], strides = [1, 1, 1, 1]} : vector<1x18x18x8xf32> to vector<1x16x16x8xf32>
    %116 = vector.shape_cast %115 : vector<1x16x16x8xf32> to vector<256x8xf32>
    %117 = vector.extract_strided_slice %1 {offsets = [7, 0, 0], sizes = [1, 8, 16], strides = [1, 1, 1]} : vector<9x8x16xf32> to vector<1x8x16xf32>
    %118 = vector.shape_cast %117 : vector<1x8x16xf32> to vector<8x16xf32>
    %cst_33 = arith.constant dense<0.000000e+00> : vector<256x16xf32>
    %119 = tpu.matmul %116, %118, %cst_33 {dimension_numbers = #tpu.dot_dimension_numbers<[1], [0], [0], [1], [0, 0, 1, 1], [], []>} : vector<256x8xf32>, vector<8x16xf32>, vector<256x16xf32> -> vector<256x16xf32>
    %120 = arith.addf %114, %119 : vector<256x16xf32>
    %121 = vector.extract_strided_slice %71 {offsets = [0, 2, 2, 0], sizes = [1, 16, 16, 8], strides = [1, 1, 1, 1]} : vector<1x18x18x8xf32> to vector<1x16x16x8xf32>
    %122 = vector.shape_cast %121 : vector<1x16x16x8xf32> to vector<256x8xf32>
    %123 = vector.extract_strided_slice %1 {offsets = [8, 0, 0], sizes = [1, 8, 16], strides = [1, 1, 1]} : vector<9x8x16xf32> to vector<1x8x16xf32>
    %124 = vector.shape_cast %123 : vector<1x8x16xf32> to vector<8x16xf32>
    %cst_34 = arith.constant dense<0.000000e+00> : vector<256x16xf32>
    %125 = tpu.matmul %122, %124, %cst_34 {dimension_numbers = #tpu.dot_dimension_numbers<[1], [0], [0], [1], [0, 0, 1, 1], [], []>} : vector<256x8xf32>, vector<8x16xf32>, vector<256x16xf32> -> vector<256x16xf32>
    %126 = arith.addf %120, %125 : vector<256x16xf32>
    %c0_35 = arith.constant 0 : index
    %c0_36 = arith.constant 0 : index
    %127 = vector.load %arg5[%c0_35, %c0_36] : memref<1x16xf32, #tpu.memory_space<vmem>>, vector<1x16xf32>
    %128 = vector.broadcast %127 : vector<1x16xf32> to vector<256x16xf32>
    %129 = arith.addf %126, %128 : vector<256x16xf32>
    %cst_37 = arith.constant 0.000000e+00 : f32
    %130 = vector.broadcast %cst_37 : f32 to vector<256x16xf32>
    %131 = arith.maximumf %129, %130 : vector<256x16xf32>
    %132 = vector.shape_cast %131 : vector<256x16xf32> to vector<1x16x16x16xf32>
    %c0_38 = arith.constant 0 : index
    %c0_39 = arith.constant 0 : index
    %c0_40 = arith.constant 0 : index
    %c0_41 = arith.constant 0 : index
    %133 = vector.load %arg6[%c0_38, %c0_39, %c0_40, %c0_41] : memref<1x16x16x16xf32, #tpu.memory_space<vmem>>, vector<1x16x16x16xf32>
    tpu.vector_store %arg6[%c0_38, %c0_39, %c0_40, %c0_41], %132 {strides = array<i32>} : memref<1x16x16x16xf32, #tpu.memory_space<vmem>>, vector<1x16x16x16xf32>,
    return
  }
  func.func @transform_0(%arg0: i32) -> (i32, i32, i32, i32) {
    %c0_i32 = arith.constant 0 : i32
    %c0_i32_0 = arith.constant 0 : i32
    %c0_i32_1 = arith.constant 0 : i32
    %c0_i32_2 = arith.constant 0 : i32
    return %arg0, %c0_i32, %c0_i32_0, %c0_i32_1 : i32, i32, i32, i32
  }
  func.func @transform_1(%arg0: i32) -> (i32, i32, i32) {
    %c0_i32 = arith.constant 0 : i32
    %c0_i32_0 = arith.constant 0 : i32
    %c0_i32_1 = arith.constant 0 : i32
    %c0_i32_2 = arith.constant 0 : i32
    return %c0_i32, %c0_i32_0, %c0_i32_1 : i32, i32, i32
  }
  func.func @transform_2(%arg0: i32) -> (i32, i32) {
    %c0_i32 = arith.constant 0 : i32
    %c0_i32_0 = arith.constant 0 : i32
    %c0_i32_1 = arith.constant 0 : i32
    return %c0_i32, %c0_i32_0 : i32, i32
  }
  func.func @transform_3(%arg0: i32) -> (i32, i32, i32) {
    %c0_i32 = arith.constant 0 : i32
    %c0_i32_0 = arith.constant 0 : i32
    %c0_i32_1 = arith.constant 0 : i32
    %c0_i32_2 = arith.constant 0 : i32
    return %c0_i32, %c0_i32_0, %c0_i32_1 : i32, i32, i32
  }
  func.func @transform_4(%arg0: i32) -> (i32, i32) {
    %c0_i32 = arith.constant 0 : i32
    %c0_i32_0 = arith.constant 0 : i32
    %c0_i32_1 = arith.constant 0 : i32
    return %c0_i32, %c0_i32_0 : i32, i32
  }
  func.func @transform_5(%arg0: i32) -> (i32, i32, i32, i32) {
    %c0_i32 = arith.constant 0 : i32
    %c0_i32_0 = arith.constant 0 : i32
    %c0_i32_1 = arith.constant 0 : i32
    %c0_i32_2 = arith.constant 0 : i32
    return %arg0, %c0_i32, %c0_i32_0, %c0_i32_1 : i32, i32, i32, i32
  }
}

</mosaic_0001>

<llo_original>
// kernel: tpu_custom_call.1
$region0: #{tpu_custom_call.1}
  #allocation0 [shape = 'u32[]', space=smem, size = 0x4, offset = 0x4, fixed_abs, tag = 'smem constant byte address 0x4 - core index']
  #allocation1 [shape = 'u32[144,128]{1,0:T(1,128)}', space=vmem, size = 0x12000, scoped, tag = 'internal scratch']
  %s0 = inlined_call_operand.vmem [shape: f32[2,16,16,4], index: 0, kind: input, shape index: {}]
  %s1 = inlined_call_operand.vmem [shape: f32[9,4,8], index: 1, kind: input, shape index: {}]
  %s2 = inlined_call_operand.vmem [shape: f32[1,8], index: 2, kind: input, shape index: {}]
  %s3 = inlined_call_operand.vmem [shape: f32[9,8,16], index: 3, kind: input, shape index: {}]
  %s4 = inlined_call_operand.vmem [shape: f32[1,16], index: 4, kind: input, shape index: {}]
  %s5 = inlined_call_operand.hbm [shape: f32[2,16,16,16], index: 5, kind: output, shape index: {}]
  %s6 = sld [smem:[#allocation0]]
  $region53: #{tpu_custom_call.1} parent=0
    _
  %s8 = ssub.s32 1, %s6
  %s9 = scalar_select 0, %s8, %s6
  $region1: #{tpu_custom_call.1} parent=0
    #allocation2 [shape = 'u8[262144]{0}', space=vmem, size = 0x40000, scoped, tag = 'output window, operand 0']
    #allocation3 [shape = 's32[2]{0}', space=sflag, size = 0x8, scoped, tag = 'scoped memory for tpu_custom_call.1']
    %10 = vsyncpa [#allocation3], 0
    %s11 = scalar_lea.sflag [#allocation3], 1
    %12 = vsyncpa %s11, 0
    loop: start=0, step=1, limit=4
    $region2: #{tpu_custom_call.1} parent=1 // loop_pre_header
      _
    $region3: #{tpu_custom_call.1} parent=1 // loop_header
      %s14 = sphi 0, %s18
      %p15 = scmp.ge.s32.totalorder %s14, 4
      %s24 = sphi 0, %s26
      %s27 = sphi 0, %s24
      %s28 = sphi 0, %s27
      %s44 = sphi 0, %s28
      %s48 = sphi 0, %s48
      %s50 = sphi 0, %s48
      %s51 = sphi 0, %s50
      %s65 = sphi 0, %s51
      %s69 = sphi 0, %s69
      %s71 = sphi 0, %s69
      %s72 = sphi 0, %s71
      %s86 = sphi 0, %s72
      %s90 = sphi 0, %s90
      %s92 = sphi 0, %s90
      %s93 = sphi 0, %s92
      %s107 = sphi 0, %s93
      %s111 = sphi 0, %s111
      %s113 = sphi 0, %s111
      %s114 = sphi 0, %s113
      %s128 = sphi 0, %s114
      %s134 = sphi 0, %s136
      %s137 = sphi 0, %s134
      %s138 = sphi 0, %s137
      %s154 = sphi 0, %s138
    $region4: #{tpu_custom_call.1} parent=1 // loop_header_branch
      %17 = sbr.rel (%p15) target = $region8
    $region5: #{tpu_custom_call.1} parent=1 // loop_body
      %s19 = ssub.s32 %s14, 1
      %s20 = ssub.s32 %s14, 2
      %s21 = sadd.s32 %s14, 1
      %s22 = ssub.s32 %s14, %s21
      %p23 = scmp.eq.s32.totalorder %s22, 0
      %s25 = sadd.s32 %s24, 1
      %s26 = scalar_select %p23, %s24, %s25
      %p29 = pneg %p23
      %p30 = scmp.eq.s32.totalorder %s14, 1
      %p31 = por %p29, %p30
      %p32 = scmp.ne.s32.totalorder %s24, %s27
      %p33 = scmp.eq.s32.totalorder %s14, 0
      %p34 = por %p32, %p33
      %p35 = scmp.ne.s32.totalorder %s24, %s27
      %p36 = scmp.eq.s32.totalorder %s19, 1
      %p37 = por %p35, %p36
      %p38 = scmp.ne.s32.totalorder %s27, %s28
      %p39 = scmp.eq.s32.totalorder %s19, 0
      %p40 = por %p38, %p39
      %p41 = scmp.ne.s32.totalorder %s27, %s28
      %p42 = scmp.eq.s32.totalorder %s20, 1
      %p43 = por %p41, %p42
      %p45 = scmp.ne.s32.totalorder %s28, %s44
      %p46 = scmp.eq.s32.totalorder %s20, 0
      %p47 = por %p45, %p46
      %s49 = sadd.s32 %s48, 1
      %p52 = scmp.eq.s32.totalorder %s14, 1
      %p53 = scmp.ne.s32.totalorder %s48, %s50
      %p54 = scmp.eq.s32.totalorder %s14, 0
      %p55 = por %p53, %p54
      %p56 = scmp.ne.s32.totalorder %s48, %s50
      %p57 = scmp.eq.s32.totalorder %s19, 1
      %p58 = por %p56, %p57
      %p59 = scmp.ne.s32.totalorder %s50, %s51
      %p60 = scmp.eq.s32.totalorder %s19, 0
      %p61 = por %p59, %p60
      %p62 = scmp.ne.s32.totalorder %s50, %s51
      %p63 = scmp.eq.s32.totalorder %s20, 1
      %p64 = por %p62, %p63
      %p66 = scmp.ne.s32.totalorder %s51, %s65
      %p67 = scmp.eq.s32.totalorder %s20, 0
      %p68 = por %p66, %p67
      %s70 = sadd.s32 %s69, 1
      %p73 = scmp.eq.s32.totalorder %s14, 1
      %p74 = scmp.ne.s32.totalorder %s69, %s71
      %p75 = scmp.eq.s32.totalorder %s14, 0
      %p76 = por %p74, %p75
      %p77 = scmp.ne.s32.totalorder %s69, %s71
      %p78 = scmp.eq.s32.totalorder %s19, 1
      %p79 = por %p77, %p78
      %p80 = scmp.ne.s32.totalorder %s71, %s72
      %p81 = scmp.eq.s32.totalorder %s19, 0
      %p82 = por %p80, %p81
      %p83 = scmp.ne.s32.totalorder %s71, %s72
      %p84 = scmp.eq.s32.totalorder %s20, 1
      %p85 = por %p83, %p84
      %p87 = scmp.ne.s32.totalorder %s72, %s86
      %p88 = scmp.eq.s32.totalorder %s20, 0
      %p89 = por %p87, %p88
      %s91 = sadd.s32 %s90, 1
      %p94 = scmp.eq.s32.totalorder %s14, 1
      %p95 = scmp.ne.s32.totalorder %s90, %s92
      %p96 = scmp.eq.s32.totalorder %s14, 0
      %p97 = por %p95, %p96
      %p98 = scmp.ne.s32.totalorder %s90, %s92
      %p99 = scmp.eq.s32.totalorder %s19, 1
      %p100 = por %p98, %p99
      %p101 = scmp.ne.s32.totalorder %s92, %s93
      %p102 = scmp.eq.s32.totalorder %s19, 0
      %p103 = por %p101, %p102
      %p104 = scmp.ne.s32.totalorder %s92, %s93
      %p105 = scmp.eq.s32.totalorder %s20, 1
      %p106 = por %p104, %p105
      %p108 = scmp.ne.s32.totalorder %s93, %s107
      %p109 = scmp.eq.s32.totalorder %s20, 0
      %p110 = por %p108, %p109
      %s112 = sadd.s32 %s111, 1
      %p115 = scmp.eq.s32.totalorder %s14, 1
      %p116 = scmp.ne.s32.totalorder %s111, %s113
      %p117 = scmp.eq.s32.totalorder %s14, 0
      %p118 = por %p116, %p117
      %p119 = scmp.ne.s32.totalorder %s111, %s113
      %p120 = scmp.eq.s32.totalorder %s19, 1
      %p121 = por %p119, %p120
      %p122 = scmp.ne.s32.totalorder %s113, %s114
      %p123 = scmp.eq.s32.totalorder %s19, 0
      %p124 = por %p122, %p123
      %p125 = scmp.ne.s32.totalorder %s113, %s114
      %p126 = scmp.eq.s32.totalorder %s20, 1
      %p127 = por %p125, %p126
      %p129 = scmp.ne.s32.totalorder %s114, %s128
      %p130 = scmp.eq.s32.totalorder %s20, 0
      %p131 = por %p129, %p130
      %s132 = ssub.s32 %s14, %s21
      %p133 = scmp.eq.s32.totalorder %s132, 0
      %s135 = sadd.s32 %s134, 1
      %s136 = scalar_select %p133, %s134, %s135
      %p139 = pneg %p133
      %p140 = scmp.eq.s32.totalorder %s14, 1
      %p141 = por %p139, %p140
      %p142 = scmp.ne.s32.totalorder %s134, %s137
      %p143 = scmp.eq.s32.totalorder %s14, 0
      %p144 = por %p142, %p143
      %p145 = scmp.ne.s32.totalorder %s134, %s137
      %p146 = scmp.eq.s32.totalorder %s19, 1
      %p147 = por %p145, %p146
      %p148 = scmp.ne.s32.totalorder %s137, %s138
      %p149 = scmp.eq.s32.totalorder %s19, 0
      %p150 = por %p148, %p149
      %p151 = scmp.ne.s32.totalorder %s137, %s138
      %p152 = scmp.eq.s32.totalorder %s20, 1
      %p153 = por %p151, %p152
      %p155 = scmp.ne.s32.totalorder %s138, %s154
      %p156 = scmp.eq.s32.totalorder %s20, 0
      %p157 = por %p155, %p156
      %p158 = scmp.le.s32.totalorder 1, %s14
      %p159 = scmp.lt.s32.totalorder %s14, 3
      %p160 = pnand %p158, %p159
      %p161 = pneg %p160
      // Predicated region
      $region9: #{tpu_custom_call.1} parent=5 // pred_check
        _
      $region10: #{tpu_custom_call.1} parent=5 // pred_check_branch
        %163 = sbr.rel (%p160) target = $region12
      $region11: #{tpu_custom_call.1} parent=5 // pred_region
        %s164 = ssub.s32 %s14, 1
        // Predicated region
        $region13: #{tpu_custom_call.1} parent=11 // pred_check
          %p165 = pneg %p61
        $region14: #{tpu_custom_call.1} parent=11 // pred_check_branch
          %167 = sbr.rel (%p165) target = $region16
        $region15: #{tpu_custom_call.1} parent=11 // pred_region
          _
        $region16: #{tpu_custom_call.1} parent=11 // pred_fallthru
          _
        // Predicated region
        $region17: #{tpu_custom_call.1} parent=11 // pred_check
          %p168 = pneg %p82
        $region18: #{tpu_custom_call.1} parent=11 // pred_check_branch
          %170 = sbr.rel (%p168) target = $region20
        $region19: #{tpu_custom_call.1} parent=11 // pred_region
          _
        $region20: #{tpu_custom_call.1} parent=11 // pred_fallthru
          _
        // Predicated region
        $region21: #{tpu_custom_call.1} parent=11 // pred_check
          %p171 = pneg %p103
        $region22: #{tpu_custom_call.1} parent=11 // pred_check_branch
          %173 = sbr.rel (%p171) target = $region24
        $region23: #{tpu_custom_call.1} parent=11 // pred_region
          _
        $region24: #{tpu_custom_call.1} parent=11 // pred_fallthru
          _
        // Predicated region
        $region25: #{tpu_custom_call.1} parent=11 // pred_check
          %p174 = pneg %p124
        $region26: #{tpu_custom_call.1} parent=11 // pred_check_branch
          %176 = sbr.rel (%p174) target = $region28
        $region27: #{tpu_custom_call.1} parent=11 // pred_region
          _
        $region28: #{tpu_custom_call.1} parent=11 // pred_fallthru
          _
      $region12: #{tpu_custom_call.1} parent=5 // pred_fallthru
        _
      %p177 = scmp.lt.s32.totalorder %s14, 2
      // Predicated region
      $region29: #{tpu_custom_call.1} parent=5 // pred_check
        %p178 = pneg %p177
      $region30: #{tpu_custom_call.1} parent=5 // pred_check_branch
        %180 = sbr.rel (%p178) target = $region32
      $region31: #{tpu_custom_call.1} parent=5 // pred_region
        // Predicated region
        $region33: #{tpu_custom_call.1} parent=31 // pred_check
          %p181 = pneg %p34
        $region34: #{tpu_custom_call.1} parent=31 // pred_check_branch
          %183 = sbr.rel (%p181) target = $region36
        $region35: #{tpu_custom_call.1} parent=31 // pred_region
          %p184 = scmp.lt.s32.totalorder %s14, 1
          %s185 = scalar_select %p184, %s14, 1
          %s186 = smul.addr %s185, 32
          %s187 = smul.addr %s186, 8
          %s188 = scalar_lea.vmem %s0, %s187
        $region36: #{tpu_custom_call.1} parent=31 // pred_fallthru
          _
      $region32: #{tpu_custom_call.1} parent=5 // pred_fallthru
        _
      %p189 = scmp.le.s32.totalorder 1, %s14
      %p190 = scmp.lt.s32.totalorder %s14, 3
      %p191 = pnand %p189, %p190
      %p192 = pneg %p191
      // Predicated region
      $region37: #{tpu_custom_call.1} parent=5 // pred_check
        _
      $region38: #{tpu_custom_call.1} parent=5 // pred_check_branch
        %194 = sbr.rel (%p191) target = $region40
      $region39: #{tpu_custom_call.1} parent=5 // pred_region
        %s195 = ssub.s32 %s14, 1
        %p196 = scmp.lt.s32.totalorder %s19, 1
        %s197 = scalar_select %p196, %s19, 1
        %s198 = smul.addr %s197, 32
        %s199 = smul.addr %s198, 8
        %s200 = scalar_lea.vmem %s0, %s199
        %p201 = pneg %p40
        %p202 = pneg %p37
        %p203 = pneg %p61
        %p204 = pneg %p58
        %p205 = pneg %p82
        %p206 = pneg %p79
        %p207 = pneg %p103
        %p208 = pneg %p100
        %p209 = pneg %p124
        %p210 = pneg %p121
        %p211 = pneg %p150
        %p212 = pneg %p147
        %s213 = sand.u32 %s137, 1
        %s214 = scalar_lea.sflag [#allocation3], %s213
        %s215 = sand.u32 %s137, 1
        %s216 = smul.addr %s215, 256
        %s217 = scalar_lea.vmem [#allocation2], %s216
        %p218 = scmp.lt.s32.totalorder %s19, 1
        %s219 = scalar_select %p218, %s19, 1
        %s220 = smul.addr %s219, 32
        %s221 = smul.addr %s220, 8
        %s222 = scalar_lea.vmem %s0, %s221
        %v223 = vld [vmem:[%s1] sm:$0xf]
        %v224 = vld [vmem:[%s1 + $0x4] sm:$0xf]
        %v225 = vld [vmem:[%s1 + $0x8] sm:$0xf]
        %v226 = vld [vmem:[%s1 + $0xc] sm:$0xf]
        %v227 = vld [vmem:[%s1 + $0x10] sm:$0xf]
        %v228 = vld [vmem:[%s1 + $0x14] sm:$0xf]
        %v229 = vld [vmem:[%s1 + $0x18] sm:$0xf]
        %v230 = vld [vmem:[%s1 + $0x1c] sm:$0xf]
        %v231 = vld [vmem:[%s1 + $0x20] sm:$0xf]
        %v232 = vld [vmem:[%s3] sm:$0xff]
        %v233 = vld [vmem:[%s3 + $0x8] sm:$0xff]
        %v234 = vld [vmem:[%s3 + $0x10] sm:$0xff]
        %v235 = vld [vmem:[%s3 + $0x18] sm:$0xff]
        %v236 = vld [vmem:[%s3 + $0x20] sm:$0xff]
        %v237 = vld [vmem:[%s3 + $0x28] sm:$0xff]
        %v238 = vld [vmem:[%s3 + $0x30] sm:$0xff]
        %v239 = vld [vmem:[%s3 + $0x38] sm:$0xff]
        %v240 = vld [vmem:[%s3 + $0x40] sm:$0xff]
        %v241 = vld [vmem:[%s222] sm:$0xff]
        %v242 = vld [vmem:[%s222 + $0x8] sm:$0xff]
        %v243 = vld [vmem:[%s222 + $0x10] sm:$0xff]
        %v244 = vld [vmem:[%s222 + $0x18] sm:$0xff]
        %v245 = vld [vmem:[%s222 + $0x20] sm:$0xff]
        %v246 = vld [vmem:[%s222 + $0x28] sm:$0xff]
        %v247 = vld [vmem:[%s222 + $0x30] sm:$0xff]
        %v248 = vld [vmem:[%s222 + $0x38] sm:$0xff]
        %v249 = vld [vmem:[%s222 + $0x40] sm:$0xff]
        %v250 = vld [vmem:[%s222 + $0x48] sm:$0xff]
        %v251 = vld [vmem:[%s222 + $0x50] sm:$0xff]
        %v252 = vld [vmem:[%s222 + $0x58] sm:$0xff]
        %v253 = vld [vmem:[%s222 + $0x60] sm:$0xff]
        %v254 = vld [vmem:[%s222 + $0x68] sm:$0xff]
        %v255 = vld [vmem:[%s222 + $0x70] sm:$0xff]
        %v256 = vld [vmem:[%s222 + $0x78] sm:$0xff]
        %v257 = vld [vmem:[%s222 + $0x80] sm:$0xff]
        %v258 = vld [vmem:[%s222 + $0x88] sm:$0xff]
        %v259 = vld [vmem:[%s222 + $0x90] sm:$0xff]
        %v260 = vld [vmem:[%s222 + $0x98] sm:$0xff]
        %v261 = vld [vmem:[%s222 + $0xa0] sm:$0xff]
        %v262 = vld [vmem:[%s222 + $0xa8] sm:$0xff]
        %v263 = vld [vmem:[%s222 + $0xb0] sm:$0xff]
        %v264 = vld [vmem:[%s222 + $0xb8] sm:$0xff]
        %v265 = vld [vmem:[%s222 + $0xc0] sm:$0xff]
        %v266 = vld [vmem:[%s222 + $0xc8] sm:$0xff]
        %v267 = vld [vmem:[%s222 + $0xd0] sm:$0xff]
        %v268 = vld [vmem:[%s222 + $0xd8] sm:$0xff]
        %v269 = vld [vmem:[%s222 + $0xe0] sm:$0xff]
        %v270 = vld [vmem:[%s222 + $0xe8] sm:$0xff]
        %v271 = vld [vmem:[%s222 + $0xf0] sm:$0xff]
        %v272 = vld [vmem:[%s222 + $0xf8] sm:$0xff]
        %vm306 = vcmask 1040384
        %v307 = vrot.slane 0.0, 7
        %v308 = vsel %vm306, %v307, %v307
        %v309 = vrot.slane %v241, 7
        %v310 = vrot.slane %v242, 7
        %v311 = vsel %vm306, %v309, %v310
        %v312 = vrot.slane %v243, 7
        %v313 = vrot.slane %v244, 7
        %v314 = vsel %vm306, %v312, %v313
        %v315 = vrot.slane %v245, 7
        %v316 = vrot.slane %v246, 7
        %v317 = vsel %vm306, %v315, %v316
        %v318 = vrot.slane %v247, 7
        %v319 = vrot.slane %v248, 7
        %v320 = vsel %vm306, %v318, %v319
        %v321 = vrot.slane %v249, 7
        %v322 = vrot.slane %v250, 7
        %v323 = vsel %vm306, %v321, %v322
        %v324 = vrot.slane %v251, 7
        %v325 = vrot.slane %v252, 7
        %v326 = vsel %vm306, %v324, %v325
        %v327 = vrot.slane %v253, 7
        %v328 = vrot.slane %v254, 7
        %v329 = vsel %vm306, %v327, %v328
        %v330 = vrot.slane %v255, 7
        %v331 = vrot.slane %v256, 7
        %v332 = vsel %vm306, %v330, %v331
        %v333 = vrot.slane %v257, 7
        %v334 = vrot.slane %v258, 7
        %v335 = vsel %vm306, %v333, %v334
        %v336 = vrot.slane %v259, 7
        %v337 = vrot.slane %v260, 7
        %v338 = vsel %vm306, %v336, %v337
        %v339 = vrot.slane %v261, 7
        %v340 = vrot.slane %v262, 7
        %v341 = vsel %vm306, %v339, %v340
        %v342 = vrot.slane %v263, 7
        %v343 = vrot.slane %v264, 7
        %v344 = vsel %vm306, %v342, %v343
        %v345 = vrot.slane %v265, 7
        %v346 = vrot.slane %v266, 7
        %v347 = vsel %vm306, %v345, %v346
        %v348 = vrot.slane %v267, 7
        %v349 = vrot.slane %v268, 7
        %v350 = vsel %vm306, %v348, %v349
        %v351 = vrot.slane %v269, 7
        %v352 = vrot.slane %v270, 7
        %v353 = vsel %vm306, %v351, %v352
        %v354 = vrot.slane %v271, 7
        %v355 = vrot.slane %v272, 7
        %v356 = vsel %vm306, %v354, %v355
        %v390 = vsel %vm306, 0.0, %v307
        %v391 = vsel %vm306, 0.0, %v309
        %v392 = vsel %vm306, 0.0, %v312
        %v393 = vsel %vm306, 0.0, %v315
        %v394 = vsel %vm306, 0.0, %v318
        %v395 = vsel %vm306, 0.0, %v321
        %v396 = vsel %vm306, 0.0, %v324
        %v397 = vsel %vm306, 0.0, %v327
        %v398 = vsel %vm306, 0.0, %v330
        %v399 = vsel %vm306, 0.0, %v333
        %v400 = vsel %vm306, 0.0, %v336
        %v401 = vsel %vm306, 0.0, %v339
        %v402 = vsel %vm306, 0.0, %v342
        %v403 = vsel %vm306, 0.0, %v345
        %v404 = vsel %vm306, 0.0, %v348
        %v405 = vsel %vm306, 0.0, %v351
        %v406 = vsel %vm306, 0.0, %v354
        %v407 = vsel %vm306, %v307, 0.0
        %v408 = vsel %vm306, %v310, 0.0
        %v409 = vsel %vm306, %v313, 0.0
        %v410 = vsel %vm306, %v316, 0.0
        %v411 = vsel %vm306, %v319, 0.0
        %v412 = vsel %vm306, %v322, 0.0
        %v413 = vsel %vm306, %v325, 0.0
        %v414 = vsel %vm306, %v328, 0.0
        %v415 = vsel %vm306, %v331, 0.0
        %v416 = vsel %vm306, %v334, 0.0
        %v417 = vsel %vm306, %v337, 0.0
        %v418 = vsel %vm306, %v340, 0.0
        %v419 = vsel %vm306, %v343, 0.0
        %v420 = vsel %vm306, %v346, 0.0
        %v421 = vsel %vm306, %v349, 0.0
        %v422 = vsel %vm306, %v352, 0.0
        %v423 = vsel %vm306, %v355, 0.0
        %vm456 = vcmask 1046528
        %v457 = vrot.slane %v390, 1
        %v458 = vrot.slane %v308, 1
        %v459 = vsel %vm456, %v457, %v458
        %v460 = vrot.slane %v407, 1
        %v461 = vsel %vm456, %v458, %v460
        %v462 = vrot.slane %v391, 1
        %v463 = vrot.slane %v311, 1
        %v464 = vsel %vm456, %v462, %v463
        %v465 = vrot.slane %v408, 1
        %v466 = vsel %vm456, %v463, %v465
        %v467 = vrot.slane %v392, 1
        %v468 = vrot.slane %v314, 1
        %v469 = vsel %vm456, %v467, %v468
        %v470 = vrot.slane %v409, 1
        %v471 = vsel %vm456, %v468, %v470
        %v472 = vrot.slane %v393, 1
        %v473 = vrot.slane %v317, 1
        %v474 = vsel %vm456, %v472, %v473
        %v475 = vrot.slane %v410, 1
        %v476 = vsel %vm456, %v473, %v475
        %v477 = vrot.slane %v394, 1
        %v478 = vrot.slane %v320, 1
        %v479 = vsel %vm456, %v477, %v478
        %v480 = vrot.slane %v411, 1
        %v481 = vsel %vm456, %v478, %v480
        %v482 = vrot.slane %v395, 1
        %v483 = vrot.slane %v323, 1
        %v484 = vsel %vm456, %v482, %v483
        %v485 = vrot.slane %v412, 1
        %v486 = vsel %vm456, %v483, %v485
        %v487 = vrot.slane %v396, 1
        %v488 = vrot.slane %v326, 1
        %v489 = vsel %vm456, %v487, %v488
        %v490 = vrot.slane %v413, 1
        %v491 = vsel %vm456, %v488, %v490
        %v492 = vrot.slane %v397, 1
        %v493 = vrot.slane %v329, 1
        %v494 = vsel %vm456, %v492, %v493
        %v495 = vrot.slane %v414, 1
        %v496 = vsel %vm456, %v493, %v495
        %v497 = vrot.slane %v398, 1
        %v498 = vrot.slane %v332, 1
        %v499 = vsel %vm456, %v497, %v498
        %v500 = vrot.slane %v415, 1
        %v501 = vsel %vm456, %v498, %v500
        %v502 = vrot.slane %v399, 1
        %v503 = vrot.slane %v335, 1
        %v504 = vsel %vm456, %v502, %v503
        %v505 = vrot.slane %v416, 1
        %v506 = vsel %vm456, %v503, %v505
        %v507 = vrot.slane %v400, 1
        %v508 = vrot.slane %v338, 1
        %v509 = vsel %vm456, %v507, %v508
        %v510 = vrot.slane %v417, 1
        %v511 = vsel %vm456, %v508, %v510
        %v512 = vrot.slane %v401, 1
        %v513 = vrot.slane %v341, 1
        %v514 = vsel %vm456, %v512, %v513
        %v515 = vrot.slane %v418, 1
        %v516 = vsel %vm456, %v513, %v515
        %v517 = vrot.slane %v402, 1
        %v518 = vrot.slane %v344, 1
        %v519 = vsel %vm456, %v517, %v518
        %v520 = vrot.slane %v419, 1
        %v521 = vsel %vm456, %v518, %v520
        %v522 = vrot.slane %v403, 1
        %v523 = vrot.slane %v347, 1
        %v524 = vsel %vm456, %v522, %v523
        %v525 = vrot.slane %v420, 1
        %v526 = vsel %vm456, %v523, %v525
        %v527 = vrot.slane %v404, 1
        %v528 = vrot.slane %v350, 1
        %v529 = vsel %vm456, %v527, %v528
        %v530 = vrot.slane %v421, 1
        %v531 = vsel %vm456, %v528, %v530
        %v532 = vrot.slane %v405, 1
        %v533 = vrot.slane %v353, 1
        %v534 = vsel %vm456, %v532, %v533
        %v535 = vrot.slane %v422, 1
        %v536 = vsel %vm456, %v533, %v535
        %vm537 = vcmask 31744
        %v538 = vsel %vm537, %v459, 0
        %v540 = vsel %vm537, %v461, 0
        %v542 = vsel %vm537, %v464, 0
        %v544 = vsel %vm537, %v466, 0
        %v546 = vsel %vm537, %v469, 0
        %v548 = vsel %vm537, %v471, 0
        %v550 = vsel %vm537, %v474, 0
        %v552 = vsel %vm537, %v476, 0
        %v554 = vsel %vm537, %v479, 0
        %v556 = vsel %vm537, %v481, 0
        %v558 = vsel %vm537, %v484, 0
        %v560 = vsel %vm537, %v486, 0
        %v562 = vsel %vm537, %v489, 0
        %v564 = vsel %vm537, %v491, 0
        %v566 = vsel %vm537, %v494, 0
        %v568 = vsel %vm537, %v496, 0
        %v570 = vsel %vm537, %v499, 0
        %v572 = vsel %vm537, %v501, 0
        %v574 = vsel %vm537, %v504, 0
        %v576 = vsel %vm537, %v506, 0
        %v578 = vsel %vm537, %v509, 0
        %v580 = vsel %vm537, %v511, 0
        %v582 = vsel %vm537, %v514, 0
        %v584 = vsel %vm537, %v516, 0
        %v586 = vsel %vm537, %v519, 0
        %v588 = vsel %vm537, %v521, 0
        %v590 = vsel %vm537, %v524, 0
        %v592 = vsel %vm537, %v526, 0
        %v594 = vsel %vm537, %v529, 0
        %v596 = vsel %vm537, %v531, 0
        %v598 = vsel %vm537, %v534, 0
        %v600 = vsel %vm537, %v536, 0
        %vm602 = vcmask 1043456
        %v604 = vsel %vm602, %v224, 0
        %606 = vmatprep.subr.mxu0 0.0
        %607 = vmatpush1.msra.mxu0 %v604
        %608 = vmatprep.subr.mxu0 0.0
        %609 = vmatpush1.msra.mxu0 0.0
        %610 = vmatprep.subr.mxu0 0.0
        %611 = vmatpush1.msra.mxu0 0.0
        %612 = vmatprep.subr.mxu0 0.0
        %613 = vmatpush1.msra.mxu0 0.0
        %614 = vmatprep.subr.mxu0 0.0
        %615 = vmatpush1.msra.mxu0 0.0
        %616 = vmatprep.subr.mxu0 0.0
        %617 = vmatpush1.msra.mxu0 0.0
        %618 = vmatprep.subr.mxu0 0.0
        %619 = vmatpush1.msra.mxu0 0.0
        %620 = vmatprep.subr.mxu0 0.0
        %621 = vmatpush1.msra.mxu0 0.0
        %622 = vmatprep.subr.mxu0 0.0
        %623 = vmatpush1.msra.mxu0 0.0
        %624 = vmatprep.subr.mxu0 0.0
        %625 = vmatpush1.msra.mxu0 0.0
        %626 = vmatprep.subr.mxu0 0.0
        %627 = vmatpush1.msra.mxu0 0.0
        %628 = vmatprep.subr.mxu0 0.0
        %629 = vmatpush1.msra.mxu0 0.0
        %630 = vmatprep.subr.mxu0 0.0
        %631 = vmatpush1.msra.mxu0 0.0
        %632 = vmatprep.subr.mxu0 0.0
        %633 = vmatpush1.msra.mxu0 0.0
        %634 = vmatprep.subr.mxu0 0.0
        %635 = vmatpush1.msra.mxu0 0.0
        %636 = vmatprep.subr.mxu0 0.0
        %637 = vmatpush1.msra.mxu0 0.0
        %638 = vmatprep.subr.mxu0 0.0
        %639 = vmatpush1.msra.mxu0 0.0
        %640 = vmatprep.subr.mxu0 0.0
        %641 = vmatpush1.msra.mxu0 0.0
        %642 = vmatprep.subr.mxu0 0.0
        %643 = vmatpush1.msra.mxu0 0.0
        %644 = vmatprep.subr.mxu0 0.0
        %645 = vmatpush1.msra.mxu0 0.0
        %646 = vmatprep.subr.mxu0 0.0
        %647 = vmatpush1.msra.mxu0 0.0
        %648 = vmatprep.subr.mxu0 0.0
        %649 = vmatpush1.msra.mxu0 0.0
        %650 = vmatprep.subr.mxu0 0.0
        %651 = vmatpush1.msra.mxu0 0.0
        %652 = vmatprep.subr.mxu0 0.0
        %653 = vmatpush1.msra.mxu0 0.0
        %654 = vmatprep.subr.mxu0 0.0
        %655 = vmatpush1.msra.mxu0 0.0
        %656 = vmatprep.subr.mxu0 0.0
        %657 = vmatpush1.msra.mxu0 0.0
        %658 = vmatprep.subr.mxu0 0.0
        %659 = vmatpush1.msra.mxu0 0.0
        %660 = vmatprep.subr.mxu0 0.0
        %661 = vmatpush1.msra.mxu0 0.0
        %662 = vmatprep.subr.mxu0 0.0
        %663 = vmatpush1.msra.mxu0 0.0
        %664 = vmatprep.subr.mxu0 0.0
        %665 = vmatpush1.msra.mxu0 0.0
        %666 = vmatprep.subr.mxu0 0.0
        %667 = vmatpush1.msra.mxu0 0.0
        %668 = vmatprep.subr.mxu0 0.0
        %669 = vmatpush1.msra.mxu0 0.0
        %670 = vmatprep.mubr.f32.mxu0 0.0
        %671 = vmatmul.mubr.f32.gmra.mrb[0].mxu0 %v538
        %v672 = vpop.f32.mrb[0].mxu0
        %v673 = vadd.f32 0.0, %v672
        %v674 = vpop.f32.mrb[0].mxu0
        %675 = vmatprep.mubr.f32.mxu0 0.0
        %676 = vmatmul.mubr.f32.gmra.mrb[0].mxu0 %v540
        %v677 = vpop.f32.mrb[0].mxu0
        %v678 = vadd.f32 0.0, %v677
        %v679 = vpop.f32.mrb[0].mxu0
        %680 = vmatprep.mubr.f32.mxu0 0.0
        %681 = vmatmul.mubr.f32.gmra.mrb[0].mxu0 %v542
        %v682 = vpop.f32.mrb[0].mxu0
        %v683 = vadd.f32 0.0, %v682
        %v684 = vpop.f32.mrb[0].mxu0
        %685 = vmatprep.mubr.f32.mxu0 0.0
        %686 = vmatmul.mubr.f32.gmra.mrb[0].mxu0 %v544
        %v687 = vpop.f32.mrb[0].mxu0
        %v688 = vadd.f32 0.0, %v687
        %v689 = vpop.f32.mrb[0].mxu0
        %690 = vmatprep.mubr.f32.mxu0 0.0
        %691 = vmatmul.mubr.f32.gmra.mrb[0].mxu0 %v546
        %v692 = vpop.f32.mrb[0].mxu0
        %v693 = vadd.f32 0.0, %v692
        %v694 = vpop.f32.mrb[0].mxu0
        %695 = vmatprep.mubr.f32.mxu0 0.0
        %696 = vmatmul.mubr.f32.gmra.mrb[0].mxu0 %v548
        %v697 = vpop.f32.mrb[0].mxu0
        %v698 = vadd.f32 0.0, %v697
        %v699 = vpop.f32.mrb[0].mxu0
        %700 = vmatprep.mubr.f32.mxu0 0.0
        %701 = vmatmul.mubr.f32.gmra.mrb[0].mxu0 %v550
        %v702 = vpop.f32.mrb[0].mxu0
        %v703 = vadd.f32 0.0, %v702
        %v704 = vpop.f32.mrb[0].mxu0
        %705 = vmatprep.mubr.f32.mxu0 0.0
        %706 = vmatmul.mubr.f32.gmra.mrb[0].mxu0 %v552
        %v707 = vpop.f32.mrb[0].mxu0
        %v708 = vadd.f32 0.0, %v707
        %v709 = vpop.f32.mrb[0].mxu0
        %710 = vmatprep.mubr.f32.mxu0 0.0
        %711 = vmatmul.mubr.f32.gmra.mrb[0].mxu0 %v554
        %v712 = vpop.f32.mrb[0].mxu0
        %v713 = vadd.f32 0.0, %v712
        %v714 = vpop.f32.mrb[0].mxu0
        %715 = vmatprep.mubr.f32.mxu0 0.0
        %716 = vmatmul.mubr.f32.gmra.mrb[0].mxu0 %v556
        %v717 = vpop.f32.mrb[0].mxu0
        %v718 = vadd.f32 0.0, %v717
        %v719 = vpop.f32.mrb[0].mxu0
        %720 = vmatprep.mubr.f32.mxu0 0.0
        %721 = vmatmul.mubr.f32.gmra.mrb[0].mxu0 %v558
        %v722 = vpop.f32.mrb[0].mxu0
        %v723 = vadd.f32 0.0, %v722
        %v724 = vpop.f32.mrb[0].mxu0
        %725 = vmatprep.mubr.f32.mxu0 0.0
        %726 = vmatmul.mubr.f32.gmra.mrb[0].mxu0 %v560
        %v727 = vpop.f32.mrb[0].mxu0
        %v728 = vadd.f32 0.0, %v727
        %v729 = vpop.f32.mrb[0].mxu0
        %730 = vmatprep.mubr.f32.mxu0 0.0
        %731 = vmatmul.mubr.f32.gmra.mrb[0].mxu0 %v562
        %v732 = vpop.f32.mrb[0].mxu0
        %v733 = vadd.f32 0.0, %v732
        %v734 = vpop.f32.mrb[0].mxu0
        %735 = vmatprep.mubr.f32.mxu0 0.0
        %736 = vmatmul.mubr.f32.gmra.mrb[0].mxu0 %v564
        %v737 = vpop.f32.mrb[0].mxu0
        %v738 = vadd.f32 0.0, %v737
        %v739 = vpop.f32.mrb[0].mxu0
        %740 = vmatprep.mubr.f32.mxu0 0.0
        %741 = vmatmul.mubr.f32.gmra.mrb[0].mxu0 %v566
        %v742 = vpop.f32.mrb[0].mxu0
        %v743 = vadd.f32 0.0, %v742
        %v744 = vpop.f32.mrb[0].mxu0
        %745 = vmatprep.mubr.f32.mxu0 0.0
        %746 = vmatmul.mubr.f32.gmra.mrb[0].mxu0 %v568
        %v747 = vpop.f32.mrb[0].mxu0
        %v748 = vadd.f32 0.0, %v747
        %v749 = vpop.f32.mrb[0].mxu0
        %750 = vmatprep.mubr.f32.mxu0 0.0
        %751 = vmatmul.mubr.f32.gmra.mrb[0].mxu0 %v570
        %v752 = vpop.f32.mrb[0].mxu0
        %v753 = vadd.f32 0.0, %v752
        %v754 = vpop.f32.mrb[0].mxu0
        %755 = vmatprep.mubr.f32.mxu0 0.0
        %756 = vmatmul.mubr.f32.gmra.mrb[0].mxu0 %v572
        %v757 = vpop.f32.mrb[0].mxu0
        %v758 = vadd.f32 0.0, %v757
        %v759 = vpop.f32.mrb[0].mxu0
        %760 = vmatprep.mubr.f32.mxu0 0.0
        %761 = vmatmul.mubr.f32.gmra.mrb[0].mxu0 %v574
        %v762 = vpop.f32.mrb[0].mxu0
        %v763 = vadd.f32 0.0, %v762
        %v764 = vpop.f32.mrb[0].mxu0
        %765 = vmatprep.mubr.f32.mxu0 0.0
        %766 = vmatmul.mubr.f32.gmra.mrb[0].mxu0 %v576
        %v767 = vpop.f32.mrb[0].mxu0
        %v768 = vadd.f32 0.0, %v767
        %v769 = vpop.f32.mrb[0].mxu0
        %770 = vmatprep.mubr.f32.mxu0 0.0
        %771 = vmatmul.mubr.f32.gmra.mrb[0].mxu0 %v578
        %v772 = vpop.f32.mrb[0].mxu0
        %v773 = vadd.f32 0.0, %v772
        %v774 = vpop.f32.mrb[0].mxu0
        %775 = vmatprep.mubr.f32.mxu0 0.0
        %776 = vmatmul.mubr.f32.gmra.mrb[0].mxu0 %v580
        %v777 = vpop.f32.mrb[0].mxu0
        %v778 = vadd.f32 0.0, %v777
        %v779 = vpop.f32.mrb[0].mxu0
        %780 = vmatprep.mubr.f32.mxu0 0.0
        %781 = vmatmul.mubr.f32.gmra.mrb[0].mxu0 %v582
        %v782 = vpop.f32.mrb[0].mxu0
        %v783 = vadd.f32 0.0, %v782
        %v784 = vpop.f32.mrb[0].mxu0
        %785 = vmatprep.mubr.f32.mxu0 0.0
        %786 = vmatmul.mubr.f32.gmra.mrb[0].mxu0 %v584
        %v787 = vpop.f32.mrb[0].mxu0
        %v788 = vadd.f32 0.0, %v787
        %v789 = vpop.f32.mrb[0].mxu0
        %790 = vmatprep.mubr.f32.mxu0 0.0
        %791 = vmatmul.mubr.f32.gmra.mrb[0].mxu0 %v586
        %v792 = vpop.f32.mrb[0].mxu0
        %v793 = vadd.f32 0.0, %v792
        %v794 = vpop.f32.mrb[0].mxu0
        %795 = vmatprep.mubr.f32.mxu0 0.0
        %796 = vmatmul.mubr.f32.gmra.mrb[0].mxu0 %v588
        %v797 = vpop.f32.mrb[0].mxu0
        %v798 = vadd.f32 0.0, %v797
        %v799 = vpop.f32.mrb[0].mxu0
        %800 = vmatprep.mubr.f32.mxu0 0.0
        %801 = vmatmul.mubr.f32.gmra.mrb[0].mxu0 %v590
        %v802 = vpop.f32.mrb[0].mxu0
        %v803 = vadd.f32 0.0, %v802
        %v804 = vpop.f32.mrb[0].mxu0
        %805 = vmatprep.mubr.f32.mxu0 0.0
        %806 = vmatmul.mubr.f32.gmra.mrb[0].mxu0 %v592
        %v807 = vpop.f32.mrb[0].mxu0
        %v808 = vadd.f32 0.0, %v807
        %v809 = vpop.f32.mrb[0].mxu0
        %810 = vmatprep.mubr.f32.mxu0 0.0
        %811 = vmatmul.mubr.f32.gmra.mrb[0].mxu0 %v594
        %v812 = vpop.f32.mrb[0].mxu0
        %v813 = vadd.f32 0.0, %v812
        %v814 = vpop.f32.mrb[0].mxu0
        %815 = vmatprep.mubr.f32.mxu0 0.0
        %816 = vmatmul.mubr.f32.gmra.mrb[0].mxu0 %v596
        %v817 = vpop.f32.mrb[0].mxu0
        %v818 = vadd.f32 0.0, %v817
        %v819 = vpop.f32.mrb[0].mxu0
        %820 = vmatprep.mubr.f32.mxu0 0.0
        %821 = vmatmul.mubr.f32.gmra.mrb[0].mxu0 %v598
        %v822 = vpop.f32.mrb[0].mxu0
        %v823 = vadd.f32 0.0, %v822
        %v824 = vpop.f32.mrb[0].mxu0
        %825 = vmatprep.mubr.f32.mxu0 0.0
        %826 = vmatmul.mubr.f32.gmra.mrb[0].mxu0 %v600
        %v827 = vpop.f32.mrb[0].mxu0
        %v828 = vadd.f32 0.0, %v827
        %v829 = vpop.f32.mrb[0].mxu0
        %830 = vdwg.mxu0
        %v831 = vsel %vm537, %v390, 0
        %v833 = vsel %vm537, %v308, 0
        %v835 = vsel %vm537, %v391, 0
        %v837 = vsel %vm537, %v311, 0
        %v839 = vsel %vm537, %v392, 0
        %v841 = vsel %vm537, %v314, 0
        %v843 = vsel %vm537, %v393, 0
        %v845 = vsel %vm537, %v317, 0
        %v847 = vsel %vm537, %v394, 0
        %v849 = vsel %vm537, %v320, 0
        %v851 = vsel %vm537, %v395, 0
        %v853 = vsel %vm537, %v323, 0
        %v855 = vsel %vm537, %v396, 0
        %v857 = vsel %vm537, %v326, 0
        %v859 = vsel %vm537, %v397, 0
        %v861 = vsel %vm537, %v329, 0
        %v863 = vsel %vm537, %v398, 0
        %v865 = vsel %vm537, %v332, 0
        %v867 = vsel %vm537, %v399, 0
        %v869 = vsel %vm537, %v335, 0
        %v871 = vsel %vm537, %v400, 0
        %v873 = vsel %vm537, %v338, 0
        %v875 = vsel %vm537, %v401, 0
        %v877 = vsel %vm537, %v341, 0
        %v879 = vsel %vm537, %v402, 0
        %v881 = vsel %vm537, %v344, 0
        %v883 = vsel %vm537, %v403, 0
        %v885 = vsel %vm537, %v347, 0
        %v887 = vsel %vm537, %v404, 0
        %v889 = vsel %vm537, %v350, 0
        %v891 = vsel %vm537, %v405, 0
        %v893 = vsel %vm537, %v353, 0
        %v896 = vsel %vm602, %v223, 0
        %898 = vmatprep.subr.mxu0 0.0
        %899 = vmatpush1.msra.mxu0 %v896
        %900 = vmatprep.subr.mxu0 0.0
        %901 = vmatpush1.msra.mxu0 0.0
        %902 = vmatprep.subr.mxu0 0.0
        %903 = vmatpush1.msra.mxu0 0.0
        %904 = vmatprep.subr.mxu0 0.0
        %905 = vmatpush1.msra.mxu0 0.0
        %906 = vmatprep.subr.mxu0 0.0
        %907 = vmatpush1.msra.mxu0 0.0
        %908 = vmatprep.subr.mxu0 0.0
        %909 = vmatpush1.msra.mxu0 0.0
        %910 = vmatprep.subr.mxu0 0.0
        %911 = vmatpush1.msra.mxu0 0.0
        %912 = vmatprep.subr.mxu0 0.0
        %913 = vmatpush1.msra.mxu0 0.0
        %914 = vmatprep.subr.mxu0 0.0
        %915 = vmatpush1.msra.mxu0 0.0
        %916 = vmatprep.subr.mxu0 0.0
        %917 = vmatpush1.msra.mxu0 0.0
        %918 = vmatprep.subr.mxu0 0.0
        %919 = vmatpush1.msra.mxu0 0.0
        %920 = vmatprep.subr.mxu0 0.0
        %921 = vmatpush1.msra.mxu0 0.0
        %922 = vmatprep.subr.mxu0 0.0
        %923 = vmatpush1.msra.mxu0 0.0
        %924 = vmatprep.subr.mxu0 0.0
        %925 = vmatpush1.msra.mxu0 0.0
        %926 = vmatprep.subr.mxu0 0.0
        %927 = vmatpush1.msra.mxu0 0.0
        %928 = vmatprep.subr.mxu0 0.0
        %929 = vmatpush1.msra.mxu0 0.0
        %930 = vmatprep.subr.mxu0 0.0
        %931 = vmatpush1.msra.mxu0 0.0
        %932 = vmatprep.subr.mxu0 0.0
        %933 = vmatpush1.msra.mxu0 0.0
        %934 = vmatprep.subr.mxu0 0.0
        %935 = vmatpush1.msra.mxu0 0.0
        %936 = vmatprep.subr.mxu0 0.0
        %937 = vmatpush1.msra.mxu0 0.0
        %938 = vmatprep.subr.mxu0 0.0
        %939 = vmatpush1.msra.mxu0 0.0
        %940 = vmatprep.subr.mxu0 0.0
        %941 = vmatpush1.msra.mxu0 0.0
        %942 = vmatprep.subr.mxu0 0.0
        %943 = vmatpush1.msra.mxu0 0.0
        %944 = vmatprep.subr.mxu0 0.0
        %945 = vmatpush1.msra.mxu0 0.0
        %946 = vmatprep.subr.mxu0 0.0
        %947 = vmatpush1.msra.mxu0 0.0
        %948 = vmatprep.subr.mxu0 0.0
        %949 = vmatpush1.msra.mxu0 0.0
        %950 = vmatprep.subr.mxu0 0.0
        %951 = vmatpush1.msra.mxu0 0.0
        %952 = vmatprep.subr.mxu0 0.0
        %953 = vmatpush1.msra.mxu0 0.0
        %954 = vmatprep.subr.mxu0 0.0
        %955 = vmatpush1.msra.mxu0 0.0
        %956 = vmatprep.subr.mxu0 0.0
        %957 = vmatpush1.msra.mxu0 0.0
        %958 = vmatprep.subr.mxu0 0.0
        %959 = vmatpush1.msra.mxu0 0.0
        %960 = vmatprep.subr.mxu0 0.0
        %961 = vmatpush1.msra.mxu0 0.0
        %962 = vmatprep.mubr.f32.mxu0 0.0
        %963 = vmatmul.mubr.f32.gmra.mrb[0].mxu0 %v831
        %v964 = vpop.f32.mrb[0].mxu0
        %v965 = vadd.f32 %v673, %v964
        %v966 = vpop.f32.mrb[0].mxu0
        %967 = vmatprep.mubr.f32.mxu0 0.0
        %968 = vmatmul.mubr.f32.gmra.mrb[0].mxu0 %v833
        %v969 = vpop.f32.mrb[0].mxu0
        %v970 = vadd.f32 %v678, %v969
        %v971 = vpop.f32.mrb[0].mxu0
        %972 = vmatprep.mubr.f32.mxu0 0.0
        %973 = vmatmul.mubr.f32.gmra.mrb[0].mxu0 %v835
        %v974 = vpop.f32.mrb[0].mxu0
        %v975 = vadd.f32 %v683, %v974
        %v976 = vpop.f32.mrb[0].mxu0
        %977 = vmatprep.mubr.f32.mxu0 0.0
        %978 = vmatmul.mubr.f32.gmra.mrb[0].mxu0 %v837
        %v979 = vpop.f32.mrb[0].mxu0
        %v980 = vadd.f32 %v688, %v979
        %v981 = vpop.f32.mrb[0].mxu0
        %982 = vmatprep.mubr.f32.mxu0 0.0
        %983 = vmatmul.mubr.f32.gmra.mrb[0].mxu0 %v839
        %v984 = vpop.f32.mrb[0].mxu0
        %v985 = vadd.f32 %v693, %v984
        %v986 = vpop.f32.mrb[0].mxu0
        %987 = vmatprep.mubr.f32.mxu0 0.0
        %988 = vmatmul.mubr.f32.gmra.mrb[0].mxu0 %v841
        %v989 = vpop.f32.mrb[0].mxu0
        %v990 = vadd.f32 %v698, %v989
        %v991 = vpop.f32.mrb[0].mxu0
        %992 = vmatprep.mubr.f32.mxu0 0.0
        %993 = vmatmul.mubr.f32.gmra.mrb[0].mxu0 %v843
        %v994 = vpop.f32.mrb[0].mxu0
        %v995 = vadd.f32 %v703, %v994
        %v996 = vpop.f32.mrb[0].mxu0
        %997 = vmatprep.mubr.f32.mxu0 0.0
        %998 = vmatmul.mubr.f32.gmra.mrb[0].mxu0 %v845
        %v999 = vpop.f32.mrb[0].mxu0
        %v1000 = vadd.f32 %v708, %v999
        %v1001 = vpop.f32.mrb[0].mxu0
        %1002 = vmatprep.mubr.f32.mxu0 0.0
        %1003 = vmatmul.mubr.f32.gmra.mrb[0].mxu0 %v847
        %v1004 = vpop.f32.mrb[0].mxu0
        %v1005 = vadd.f32 %v713, %v1004
        %v1006 = vpop.f32.mrb[0].mxu0
        %1007 = vmatprep.mubr.f32.mxu0 0.0
        %1008 = vmatmul.mubr.f32.gmra.mrb[0].mxu0 %v849
        %v1009 = vpop.f32.mrb[0].mxu0
        %v1010 = vadd.f32 %v718, %v1009
        %v1011 = vpop.f32.mrb[0].mxu0
        %1012 = vmatprep.mubr.f32.mxu0 0.0
        %1013 = vmatmul.mubr.f32.gmra.mrb[0].mxu0 %v851
        %v1014 = vpop.f32.mrb[0].mxu0
        %v1015 = vadd.f32 %v723, %v1014
        %v1016 = vpop.f32.mrb[0].mxu0
        %1017 = vmatprep.mubr.f32.mxu0 0.0
        %1018 = vmatmul.mubr.f32.gmra.mrb[0].mxu0 %v853
        %v1019 = vpop.f32.mrb[0].mxu0
        %v1020 = vadd.f32 %v728, %v1019
        %v1021 = vpop.f32.mrb[0].mxu0
        %1022 = vmatprep.mubr.f32.mxu0 0.0
        %1023 = vmatmul.mubr.f32.gmra.mrb[0].mxu0 %v855
        %v1024 = vpop.f32.mrb[0].mxu0
        %v1025 = vadd.f32 %v733, %v1024
        %v1026 = vpop.f32.mrb[0].mxu0
        %1027 = vmatprep.mubr.f32.mxu0 0.0
        %1028 = vmatmul.mubr.f32.gmra.mrb[0].mxu0 %v857
        %v1029 = vpop.f32.mrb[0].mxu0
        %v1030 = vadd.f32 %v738, %v1029
        %v1031 = vpop.f32.mrb[0].mxu0
        %1032 = vmatprep.mubr.f32.mxu0 0.0
        %1033 = vmatmul.mubr.f32.gmra.mrb[0].mxu0 %v859
        %v1034 = vpop.f32.mrb[0].mxu0
        %v1035 = vadd.f32 %v743, %v1034
        %v1036 = vpop.f32.mrb[0].mxu0
        %1037 = vmatprep.mubr.f32.mxu0 0.0
        %1038 = vmatmul.mubr.f32.gmra.mrb[0].mxu0 %v861
        %v1039 = vpop.f32.mrb[0].mxu0
        %v1040 = vadd.f32 %v748, %v1039
        %v1041 = vpop.f32.mrb[0].mxu0
        %1042 = vmatprep.mubr.f32.mxu0 0.0
        %1043 = vmatmul.mubr.f32.gmra.mrb[0].mxu0 %v863
        %v1044 = vpop.f32.mrb[0].mxu0
        %v1045 = vadd.f32 %v753, %v1044
        %v1046 = vpop.f32.mrb[0].mxu0
        %1047 = vmatprep.mubr.f32.mxu0 0.0
        %1048 = vmatmul.mubr.f32.gmra.mrb[0].mxu0 %v865
        %v1049 = vpop.f32.mrb[0].mxu0
        %v1050 = vadd.f32 %v758, %v1049
        %v1051 = vpop.f32.mrb[0].mxu0
        %1052 = vmatprep.mubr.f32.mxu0 0.0
        %1053 = vmatmul.mubr.f32.gmra.mrb[0].mxu0 %v867
        %v1054 = vpop.f32.mrb[0].mxu0
        %v1055 = vadd.f32 %v763, %v1054
        %v1056 = vpop.f32.mrb[0].mxu0
        %1057 = vmatprep.mubr.f32.mxu0 0.0
        %1058 = vmatmul.mubr.f32.gmra.mrb[0].mxu0 %v869
        %v1059 = vpop.f32.mrb[0].mxu0
        %v1060 = vadd.f32 %v768, %v1059
        %v1061 = vpop.f32.mrb[0].mxu0
        %1062 = vmatprep.mubr.f32.mxu0 0.0
        %1063 = vmatmul.mubr.f32.gmra.mrb[0].mxu0 %v871
        %v1064 = vpop.f32.mrb[0].mxu0
        %v1065 = vadd.f32 %v773, %v1064
        %v1066 = vpop.f32.mrb[0].mxu0
        %1067 = vmatprep.mubr.f32.mxu0 0.0
        %1068 = vmatmul.mubr.f32.gmra.mrb[0].mxu0 %v873
        %v1069 = vpop.f32.mrb[0].mxu0
        %v1070 = vadd.f32 %v778, %v1069
        %v1071 = vpop.f32.mrb[0].mxu0
        %1072 = vmatprep.mubr.f32.mxu0 0.0
        %1073 = vmatmul.mubr.f32.gmra.mrb[0].mxu0 %v875
        %v1074 = vpop.f32.mrb[0].mxu0
        %v1075 = vadd.f32 %v783, %v1074
        %v1076 = vpop.f32.mrb[0].mxu0
        %1077 = vmatprep.mubr.f32.mxu0 0.0
        %1078 = vmatmul.mubr.f32.gmra.mrb[0].mxu0 %v877
        %v1079 = vpop.f32.mrb[0].mxu0
        %v1080 = vadd.f32 %v788, %v1079
        %v1081 = vpop.f32.mrb[0].mxu0
        %1082 = vmatprep.mubr.f32.mxu0 0.0
        %1083 = vmatmul.mubr.f32.gmra.mrb[0].mxu0 %v879
        %v1084 = vpop.f32.mrb[0].mxu0
        %v1085 = vadd.f32 %v793, %v1084
        %v1086 = vpop.f32.mrb[0].mxu0
        %1087 = vmatprep.mubr.f32.mxu0 0.0
        %1088 = vmatmul.mubr.f32.gmra.mrb[0].mxu0 %v881
        %v1089 = vpop.f32.mrb[0].mxu0
        %v1090 = vadd.f32 %v798, %v1089
        %v1091 = vpop.f32.mrb[0].mxu0
        %1092 = vmatprep.mubr.f32.mxu0 0.0
        %1093 = vmatmul.mubr.f32.gmra.mrb[0].mxu0 %v883
        %v1094 = vpop.f32.mrb[0].mxu0
        %v1095 = vadd.f32 %v803, %v1094
        %v1096 = vpop.f32.mrb[0].mxu0
        %1097 = vmatprep.mubr.f32.mxu0 0.0
        %1098 = vmatmul.mubr.f32.gmra.mrb[0].mxu0 %v885
        %v1099 = vpop.f32.mrb[0].mxu0
        %v1100 = vadd.f32 %v808, %v1099
        %v1101 = vpop.f32.mrb[0].mxu0
        %1102 = vmatprep.mubr.f32.mxu0 0.0
        %1103 = vmatmul.mubr.f32.gmra.mrb[0].mxu0 %v887
        %v1104 = vpop.f32.mrb[0].mxu0
        %v1105 = vadd.f32 %v813, %v1104
        %v1106 = vpop.f32.mrb[0].mxu0
        %1107 = vmatprep.mubr.f32.mxu0 0.0
        %1108 = vmatmul.mubr.f32.gmra.mrb[0].mxu0 %v889
        %v1109 = vpop.f32.mrb[0].mxu0
        %v1110 = vadd.f32 %v818, %v1109
        %v1111 = vpop.f32.mrb[0].mxu0
        %1112 = vmatprep.mubr.f32.mxu0 0.0
        %1113 = vmatmul.mubr.f32.gmra.mrb[0].mxu0 %v891
        %v1114 = vpop.f32.mrb[0].mxu0
        %v1115 = vadd.f32 %v823, %v1114
        %v1116 = vpop.f32.mrb[0].mxu0
        %1117 = vmatprep.mubr.f32.mxu0 0.0
        %1118 = vmatmul.mubr.f32.gmra.mrb[0].mxu0 %v893
        %v1119 = vpop.f32.mrb[0].mxu0
        %v1120 = vadd.f32 %v828, %v1119
        %v1121 = vpop.f32.mrb[0].mxu0
        %1122 = vdwg.mxu0
        %vm1123 = vcmask 1045504
        %v1124 = vrot.slane %v390, 2
        %v1125 = vrot.slane %v308, 2
        %v1126 = vsel %vm1123, %v1124, %v1125
        %v1127 = vrot.slane %v407, 2
        %v1128 = vsel %vm1123, %v1125, %v1127
        %v1129 = vrot.slane %v391, 2
        %v1130 = vrot.slane %v311, 2
        %v1131 = vsel %vm1123, %v1129, %v1130
        %v1132 = vrot.slane %v408, 2
        %v1133 = vsel %vm1123, %v1130, %v1132
        %v1134 = vrot.slane %v392, 2
        %v1135 = vrot.slane %v314, 2
        %v1136 = vsel %vm1123, %v1134, %v1135
        %v1137 = vrot.slane %v409, 2
        %v1138 = vsel %vm1123, %v1135, %v1137
        %v1139 = vrot.slane %v393, 2
        %v1140 = vrot.slane %v317, 2
        %v1141 = vsel %vm1123, %v1139, %v1140
        %v1142 = vrot.slane %v410, 2
        %v1143 = vsel %vm1123, %v1140, %v1142
        %v1144 = vrot.slane %v394, 2
        %v1145 = vrot.slane %v320, 2
        %v1146 = vsel %vm1123, %v1144, %v1145
        %v1147 = vrot.slane %v411, 2
        %v1148 = vsel %vm1123, %v1145, %v1147
        %v1149 = vrot.slane %v395, 2
        %v1150 = vrot.slane %v323, 2
        %v1151 = vsel %vm1123, %v1149, %v1150
        %v1152 = vrot.slane %v412, 2
        %v1153 = vsel %vm1123, %v1150, %v1152
        %v1154 = vrot.slane %v396, 2
        %v1155 = vrot.slane %v326, 2
        %v1156 = vsel %vm1123, %v1154, %v1155
        %v1157 = vrot.slane %v413, 2
        %v1158 = vsel %vm1123, %v1155, %v1157
        %v1159 = vrot.slane %v397, 2
        %v1160 = vrot.slane %v329, 2
        %v1161 = vsel %vm1123, %v1159, %v1160
        %v1162 = vrot.slane %v414, 2
        %v1163 = vsel %vm1123, %v1160, %v1162
        %v1164 = vrot.slane %v398, 2
        %v1165 = vrot.slane %v332, 2
        %v1166 = vsel %vm1123, %v1164, %v1165
        %v1167 = vrot.slane %v415, 2
        %v1168 = vsel %vm1123, %v1165, %v1167
        %v1169 = vrot.slane %v399, 2
        %v1170 = vrot.slane %v335, 2
        %v1171 = vsel %vm1123, %v1169, %v1170
        %v1172 = vrot.slane %v416, 2
        %v1173 = vsel %vm1123, %v1170, %v1172
        %v1174 = vrot.slane %v400, 2
        %v1175 = vrot.slane %v338, 2
        %v1176 = vsel %vm1123, %v1174, %v1175
        %v1177 = vrot.slane %v417, 2
        %v1178 = vsel %vm1123, %v1175, %v1177
        %v1179 = vrot.slane %v401, 2
        %v1180 = vrot.slane %v341, 2
        %v1181 = vsel %vm1123, %v1179, %v1180
        %v1182 = vrot.slane %v418, 2
        %v1183 = vsel %vm1123, %v1180, %v1182
        %v1184 = vrot.slane %v402, 2
        %v1185 = vrot.slane %v344, 2
        %v1186 = vsel %vm1123, %v1184, %v1185
        %v1187 = vrot.slane %v419, 2
        %v1188 = vsel %vm1123, %v1185, %v1187
        %v1189 = vrot.slane %v403, 2
        %v1190 = vrot.slane %v347, 2
        %v1191 = vsel %vm1123, %v1189, %v1190
        %v1192 = vrot.slane %v420, 2
        %v1193 = vsel %vm1123, %v1190, %v1192
        %v1194 = vrot.slane %v404, 2
        %v1195 = vrot.slane %v350, 2
        %v1196 = vsel %vm1123, %v1194, %v1195
        %v1197 = vrot.slane %v421, 2
        %v1198 = vsel %vm1123, %v1195, %v1197
        %v1199 = vrot.slane %v405, 2
        %v1200 = vrot.slane %v353, 2
        %v1201 = vsel %vm1123, %v1199, %v1200
        %v1202 = vrot.slane %v422, 2
        %v1203 = vsel %vm1123, %v1200, %v1202
        %v1204 = vsel %vm537, %v1126, 0
        %v1206 = vsel %vm537, %v1128, 0
        %v1208 = vsel %vm537, %v1131, 0
        %v1210 = vsel %vm537, %v1133, 0
        %v1212 = vsel %vm537, %v1136, 0
        %v1214 = vsel %vm537, %v1138, 0
        %v1216 = vsel %vm537, %v1141, 0
        %v1218 = vsel %vm537, %v1143, 0
        %v1220 = vsel %vm537, %v1146, 0
        %v1222 = vsel %vm537, %v1148, 0
        %v1224 = vsel %vm537, %v1151, 0
        %v1226 = vsel %vm537, %v1153, 0
        %v1228 = vsel %vm537, %v1156, 0
        %v1230 = vsel %vm537, %v1158, 0
        %v1232 = vsel %vm537, %v1161, 0
        %v1234 = vsel %vm537, %v1163, 0
        %v1236 = vsel %vm537, %v1166, 0
        %v1238 = vsel %vm537, %v1168, 0
        %v1240 = vsel %vm537, %v1171, 0
        %v1242 = vsel %vm537, %v1173, 0
        %v1244 = vsel %vm537, %v1176, 0
        %v1246 = vsel %vm537, %v1178, 0
        %v1248 = vsel %vm537, %v1181, 0
        %v1250 = vsel %vm537, %v1183, 0
        %v1252 = vsel %vm537, %v1186, 0
        %v1254 = vsel %vm537, %v1188, 0
        %v1256 = vsel %vm537, %v1191, 0
        %v1258 = vsel %vm537, %v1193, 0
        %v1260 = vsel %vm537, %v1196, 0
        %v1262 = vsel %vm537, %v1198, 0
        %v1264 = vsel %vm537, %v1201, 0
        %v1266 = vsel %vm537, %v1203, 0
        %v1269 = vsel %vm602, %v225, 0
        %1271 = vmatprep.subr.mxu0 0.0
        %1272 = vmatpush1.msra.mxu0 %v1269
        %1273 = vmatprep.subr.mxu0 0.0
        %1274 = vmatpush1.msra.mxu0 0.0
        %1275 = vmatprep.subr.mxu0 0.0
        %1276 = vmatpush1.msra.mxu0 0.0
        %1277 = vmatprep.subr.mxu0 0.0
        %1278 = vmatpush1.msra.mxu0 0.0
        %1279 = vmatprep.subr.mxu0 0.0
        %1280 = vmatpush1.msra.mxu0 0.0
        %1281 = vmatprep.subr.mxu0 0.0
        %1282 = vmatpush1.msra.mxu0 0.0
        %1283 = vmatprep.subr.mxu0 0.0
        %1284 = vmatpush1.msra.mxu0 0.0
        %1285 = vmatprep.subr.mxu0 0.0
        %1286 = vmatpush1.msra.mxu0 0.0
        %1287 = vmatprep.subr.mxu0 0.0
        %1288 = vmatpush1.msra.mxu0 0.0
        %1289 = vmatprep.subr.mxu0 0.0
        %1290 = vmatpush1.msra.mxu0 0.0
        %1291 = vmatprep.subr.mxu0 0.0
        %1292 = vmatpush1.msra.mxu0 0.0
        %1293 = vmatprep.subr.mxu0 0.0
        %1294 = vmatpush1.msra.mxu0 0.0
        %1295 = vmatprep.subr.mxu0 0.0
        %1296 = vmatpush1.msra.mxu0 0.0
        %1297 = vmatprep.subr.mxu0 0.0
        %1298 = vmatpush1.msra.mxu0 0.0
        %1299 = vmatprep.subr.mxu0 0.0
        %1300 = vmatpush1.msra.mxu0 0.0
        %1301 = vmatprep.subr.mxu0 0.0
        %1302 = vmatpush1.msra.mxu0 0.0
        %1303 = vmatprep.subr.mxu0 0.0
        %1304 = vmatpush1.msra.mxu0 0.0
        %1305 = vmatprep.subr.mxu0 0.0
        %1306 = vmatpush1.msra.mxu0 0.0
        %1307 = vmatprep.subr.mxu0 0.0
        %1308 = vmatpush1.msra.mxu0 0.0
        %1309 = vmatprep.subr.mxu0 0.0
        %1310 = vmatpush1.msra.mxu0 0.0
        %1311 = vmatprep.subr.mxu0 0.0
        %1312 = vmatpush1.msra.mxu0 0.0
        %1313 = vmatprep.subr.mxu0 0.0
        %1314 = vmatpush1.msra.mxu0 0.0
        %1315 = vmatprep.subr.mxu0 0.0
        %1316 = vmatpush1.msra.mxu0 0.0
        %1317 = vmatprep.subr.mxu0 0.0
        %1318 = vmatpush1.msra.mxu0 0.0
        %1319 = vmatprep.subr.mxu0 0.0
        %1320 = vmatpush1.msra.mxu0 0.0
        %1321 = vmatprep.subr.mxu0 0.0
        %1322 = vmatpush1.msra.mxu0 0.0
        %1323 = vmatprep.subr.mxu0 0.0
        %1324 = vmatpush1.msra.mxu0 0.0
        %1325 = vmatprep.subr.mxu0 0.0
        %1326 = vmatpush1.msra.mxu0 0.0
        %1327 = vmatprep.subr.mxu0 0.0
        %1328 = vmatpush1.msra.mxu0 0.0
        %1329 = vmatprep.subr.mxu0 0.0
        %1330 = vmatpush1.msra.mxu0 0.0
        %1331 = vmatprep.subr.mxu0 0.0
        %1332 = vmatpush1.msra.mxu0 0.0
        %1333 = vmatprep.subr.mxu0 0.0
        %1334 = vmatpush1.msra.mxu0 0.0
        %1335 = vmatprep.mubr.f32.mxu0 0.0
        %1336 = vmatmul.mubr.f32.gmra.mrb[0].mxu0 %v1204
        %v1337 = vpop.f32.mrb[0].mxu0
        %v1338 = vadd.f32 0.0, %v1337
        %v1339 = vpop.f32.mrb[0].mxu0
        %1340 = vmatprep.mubr.f32.mxu0 0.0
        %1341 = vmatmul.mubr.f32.gmra.mrb[0].mxu0 %v1206
        %v1342 = vpop.f32.mrb[0].mxu0
        %v1343 = vadd.f32 0.0, %v1342
        %v1344 = vpop.f32.mrb[0].mxu0
        %1345 = vmatprep.mubr.f32.mxu0 0.0
        %1346 = vmatmul.mubr.f32.gmra.mrb[0].mxu0 %v1208
        %v1347 = vpop.f32.mrb[0].mxu0
        %v1348 = vadd.f32 0.0, %v1347
        %v1349 = vpop.f32.mrb[0].mxu0
        %1350 = vmatprep.mubr.f32.mxu0 0.0
        %1351 = vmatmul.mubr.f32.gmra.mrb[0].mxu0 %v1210
        %v1352 = vpop.f32.mrb[0].mxu0
        %v1353 = vadd.f32 0.0, %v1352
        %v1354 = vpop.f32.mrb[0].mxu0
        %1355 = vmatprep.mubr.f32.mxu0 0.0
        %1356 = vmatmul.mubr.f32.gmra.mrb[0].mxu0 %v1212
        %v1357 = vpop.f32.mrb[0].mxu0
        %v1358 = vadd.f32 0.0, %v1357
        %v1359 = vpop.f32.mrb[0].mxu0
        %1360 = vmatprep.mubr.f32.mxu0 0.0
        %1361 = vmatmul.mubr.f32.gmra.mrb[0].mxu0 %v1214
        %v1362 = vpop.f32.mrb[0].mxu0
        %v1363 = vadd.f32 0.0, %v1362
        %v1364 = vpop.f32.mrb[0].mxu0
        %1365 = vmatprep.mubr.f32.mxu0 0.0
        %1366 = vmatmul.mubr.f32.gmra.mrb[0].mxu0 %v1216
        %v1367 = vpop.f32.mrb[0].mxu0
        %v1368 = vadd.f32 0.0, %v1367
        %v1369 = vpop.f32.mrb[0].mxu0
        %1370 = vmatprep.mubr.f32.mxu0 0.0
        %1371 = vmatmul.mubr.f32.gmra.mrb[0].mxu0 %v1218
        %v1372 = vpop.f32.mrb[0].mxu0
        %v1373 = vadd.f32 0.0, %v1372
        %v1374 = vpop.f32.mrb[0].mxu0
        %1375 = vmatprep.mubr.f32.mxu0 0.0
        %1376 = vmatmul.mubr.f32.gmra.mrb[0].mxu0 %v1220
        %v1377 = vpop.f32.mrb[0].mxu0
        %v1378 = vadd.f32 0.0, %v1377
        %v1379 = vpop.f32.mrb[0].mxu0
        %1380 = vmatprep.mubr.f32.mxu0 0.0
        %1381 = vmatmul.mubr.f32.gmra.mrb[0].mxu0 %v1222
        %v1382 = vpop.f32.mrb[0].mxu0
        %v1383 = vadd.f32 0.0, %v1382
        %v1384 = vpop.f32.mrb[0].mxu0
        %1385 = vmatprep.mubr.f32.mxu0 0.0
        %1386 = vmatmul.mubr.f32.gmra.mrb[0].mxu0 %v1224
        %v1387 = vpop.f32.mrb[0].mxu0
        %v1388 = vadd.f32 0.0, %v1387
        %v1389 = vpop.f32.mrb[0].mxu0
        %1390 = vmatprep.mubr.f32.mxu0 0.0
        %1391 = vmatmul.mubr.f32.gmra.mrb[0].mxu0 %v1226
        %v1392 = vpop.f32.mrb[0].mxu0
        %v1393 = vadd.f32 0.0, %v1392
        %v1394 = vpop.f32.mrb[0].mxu0
        %1395 = vmatprep.mubr.f32.mxu0 0.0
        %1396 = vmatmul.mubr.f32.gmra.mrb[0].mxu0 %v1228
        %v1397 = vpop.f32.mrb[0].mxu0
        %v1398 = vadd.f32 0.0, %v1397
        %v1399 = vpop.f32.mrb[0].mxu0
        %1400 = vmatprep.mubr.f32.mxu0 0.0
        %1401 = vmatmul.mubr.f32.gmra.mrb[0].mxu0 %v1230
        %v1402 = vpop.f32.mrb[0].mxu0
        %v1403 = vadd.f32 0.0, %v1402
        %v1404 = vpop.f32.mrb[0].mxu0
        %1405 = vmatprep.mubr.f32.mxu0 0.0
        %1406 = vmatmul.mubr.f32.gmra.mrb[0].mxu0 %v1232
        %v1407 = vpop.f32.mrb[0].mxu0
        %v1408 = vadd.f32 0.0, %v1407
        %v1409 = vpop.f32.mrb[0].mxu0
        %1410 = vmatprep.mubr.f32.mxu0 0.0
        %1411 = vmatmul.mubr.f32.gmra.mrb[0].mxu0 %v1234
        %v1412 = vpop.f32.mrb[0].mxu0
        %v1413 = vadd.f32 0.0, %v1412
        %v1414 = vpop.f32.mrb[0].mxu0
        %1415 = vmatprep.mubr.f32.mxu0 0.0
        %1416 = vmatmul.mubr.f32.gmra.mrb[0].mxu0 %v1236
        %v1417 = vpop.f32.mrb[0].mxu0
        %v1418 = vadd.f32 0.0, %v1417
        %v1419 = vpop.f32.mrb[0].mxu0
        %1420 = vmatprep.mubr.f32.mxu0 0.0
        %1421 = vmatmul.mubr.f32.gmra.mrb[0].mxu0 %v1238
        %v1422 = vpop.f32.mrb[0].mxu0
        %v1423 = vadd.f32 0.0, %v1422
        %v1424 = vpop.f32.mrb[0].mxu0
        %1425 = vmatprep.mubr.f32.mxu0 0.0
        %1426 = vmatmul.mubr.f32.gmra.mrb[0].mxu0 %v1240
        %v1427 = vpop.f32.mrb[0].mxu0
        %v1428 = vadd.f32 0.0, %v1427
        %v1429 = vpop.f32.mrb[0].mxu0
        %1430 = vmatprep.mubr.f32.mxu0 0.0
        %1431 = vmatmul.mubr.f32.gmra.mrb[0].mxu0 %v1242
        %v1432 = vpop.f32.mrb[0].mxu0
        %v1433 = vadd.f32 0.0, %v1432
        %v1434 = vpop.f32.mrb[0].mxu0
        %1435 = vmatprep.mubr.f32.mxu0 0.0
        %1436 = vmatmul.mubr.f32.gmra.mrb[0].mxu0 %v1244
        %v1437 = vpop.f32.mrb[0].mxu0
        %v1438 = vadd.f32 0.0, %v1437
        %v1439 = vpop.f32.mrb[0].mxu0
        %1440 = vmatprep.mubr.f32.mxu0 0.0
        %1441 = vmatmul.mubr.f32.gmra.mrb[0].mxu0 %v1246
        %v1442 = vpop.f32.mrb[0].mxu0
        %v1443 = vadd.f32 0.0, %v1442
        %v1444 = vpop.f32.mrb[0].mxu0
        %1445 = vmatprep.mubr.f32.mxu0 0.0
        %1446 = vmatmul.mubr.f32.gmra.mrb[0].mxu0 %v1248
        %v1447 = vpop.f32.mrb[0].mxu0
        %v1448 = vadd.f32 0.0, %v1447
        %v1449 = vpop.f32.mrb[0].mxu0
        %1450 = vmatprep.mubr.f32.mxu0 0.0
        %1451 = vmatmul.mubr.f32.gmra.mrb[0].mxu0 %v1250
        %v1452 = vpop.f32.mrb[0].mxu0
        %v1453 = vadd.f32 0.0, %v1452
        %v1454 = vpop.f32.mrb[0].mxu0
        %1455 = vmatprep.mubr.f32.mxu0 0.0
        %1456 = vmatmul.mubr.f32.gmra.mrb[0].mxu0 %v1252
        %v1457 = vpop.f32.mrb[0].mxu0
        %v1458 = vadd.f32 0.0, %v1457
        %v1459 = vpop.f32.mrb[0].mxu0
        %1460 = vmatprep.mubr.f32.mxu0 0.0
        %1461 = vmatmul.mubr.f32.gmra.mrb[0].mxu0 %v1254
        %v1462 = vpop.f32.mrb[0].mxu0
        %v1463 = vadd.f32 0.0, %v1462
        %v1464 = vpop.f32.mrb[0].mxu0
        %1465 = vmatprep.mubr.f32.mxu0 0.0
        %1466 = vmatmul.mubr.f32.gmra.mrb[0].mxu0 %v1256
        %v1467 = vpop.f32.mrb[0].mxu0
        %v1468 = vadd.f32 0.0, %v1467
        %v1469 = vpop.f32.mrb[0].mxu0
        %1470 = vmatprep.mubr.f32.mxu0 0.0
        %1471 = vmatmul.mubr.f32.gmra.mrb[0].mxu0 %v1258
        %v1472 = vpop.f32.mrb[0].mxu0
        %v1473 = vadd.f32 0.0, %v1472
        %v1474 = vpop.f32.mrb[0].mxu0
        %1475 = vmatprep.mubr.f32.mxu0 0.0
        %1476 = vmatmul.mubr.f32.gmra.mrb[0].mxu0 %v1260
        %v1477 = vpop.f32.mrb[0].mxu0
        %v1478 = vadd.f32 0.0, %v1477
        %v1479 = vpop.f32.mrb[0].mxu0
        %1480 = vmatprep.mubr.f32.mxu0 0.0
        %1481 = vmatmul.mubr.f32.gmra.mrb[0].mxu0 %v1262
        %v1482 = vpop.f32.mrb[0].mxu0
        %v1483 = vadd.f32 0.0, %v1482
        %v1484 = vpop.f32.mrb[0].mxu0
        %1485 = vmatprep.mubr.f32.mxu0 0.0
        %1486 = vmatmul.mubr.f32.gmra.mrb[0].mxu0 %v1264
        %v1487 = vpop.f32.mrb[0].mxu0
        %v1488 = vadd.f32 0.0, %v1487
        %v1489 = vpop.f32.mrb[0].mxu0
        %1490 = vmatprep.mubr.f32.mxu0 0.0
        %1491 = vmatmul.mubr.f32.gmra.mrb[0].mxu0 %v1266
        %v1492 = vpop.f32.mrb[0].mxu0
        %v1493 = vadd.f32 0.0, %v1492
        %v1494 = vpop.f32.mrb[0].mxu0
        %1495 = vdwg.mxu0
        %v1496 = vadd.f32 %v965, %v1338
        %v1497 = vadd.f32 %v970, %v1343
        %v1498 = vadd.f32 %v975, %v1348
        %v1499 = vadd.f32 %v980, %v1353
        %v1500 = vadd.f32 %v985, %v1358
        %v1501 = vadd.f32 %v990, %v1363
        %v1502 = vadd.f32 %v995, %v1368
        %v1503 = vadd.f32 %v1000, %v1373
        %v1504 = vadd.f32 %v1005, %v1378
        %v1505 = vadd.f32 %v1010, %v1383
        %v1506 = vadd.f32 %v1015, %v1388
        %v1507 = vadd.f32 %v1020, %v1393
        %v1508 = vadd.f32 %v1025, %v1398
        %v1509 = vadd.f32 %v1030, %v1403
        %v1510 = vadd.f32 %v1035, %v1408
        %v1511 = vadd.f32 %v1040, %v1413
        %v1512 = vadd.f32 %v1045, %v1418
        %v1513 = vadd.f32 %v1050, %v1423
        %v1514 = vadd.f32 %v1055, %v1428
        %v1515 = vadd.f32 %v1060, %v1433
        %v1516 = vadd.f32 %v1065, %v1438
        %v1517 = vadd.f32 %v1070, %v1443
        %v1518 = vadd.f32 %v1075, %v1448
        %v1519 = vadd.f32 %v1080, %v1453
        %v1520 = vadd.f32 %v1085, %v1458
        %v1521 = vadd.f32 %v1090, %v1463
        %v1522 = vadd.f32 %v1095, %v1468
        %v1523 = vadd.f32 %v1100, %v1473
        %v1524 = vadd.f32 %v1105, %v1478
        %v1525 = vadd.f32 %v1110, %v1483
        %v1526 = vadd.f32 %v1115, %v1488
        %v1527 = vadd.f32 %v1120, %v1493
        %v1529 = vsel %vm537, %v406, 0
        %v1531 = vsel %vm537, %v356, 0
        %v1534 = vsel %vm602, %v226, 0
        %1536 = vmatprep.subr.mxu0 0.0
        %1537 = vmatpush1.msra.mxu0 %v1534
        %1538 = vmatprep.subr.mxu0 0.0
        %1539 = vmatpush1.msra.mxu0 0.0
        %1540 = vmatprep.subr.mxu0 0.0
        %1541 = vmatpush1.msra.mxu0 0.0
        %1542 = vmatprep.subr.mxu0 0.0
        %1543 = vmatpush1.msra.mxu0 0.0
        %1544 = vmatprep.subr.mxu0 0.0
        %1545 = vmatpush1.msra.mxu0 0.0
        %1546 = vmatprep.subr.mxu0 0.0
        %1547 = vmatpush1.msra.mxu0 0.0
        %1548 = vmatprep.subr.mxu0 0.0
        %1549 = vmatpush1.msra.mxu0 0.0
        %1550 = vmatprep.subr.mxu0 0.0
        %1551 = vmatpush1.msra.mxu0 0.0
        %1552 = vmatprep.subr.mxu0 0.0
        %1553 = vmatpush1.msra.mxu0 0.0
        %1554 = vmatprep.subr.mxu0 0.0
        %1555 = vmatpush1.msra.mxu0 0.0
        %1556 = vmatprep.subr.mxu0 0.0
        %1557 = vmatpush1.msra.mxu0 0.0
        %1558 = vmatprep.subr.mxu0 0.0
        %1559 = vmatpush1.msra.mxu0 0.0
        %1560 = vmatprep.subr.mxu0 0.0
        %1561 = vmatpush1.msra.mxu0 0.0
        %1562 = vmatprep.subr.mxu0 0.0
        %1563 = vmatpush1.msra.mxu0 0.0
        %1564 = vmatprep.subr.mxu0 0.0
        %1565 = vmatpush1.msra.mxu0 0.0
        %1566 = vmatprep.subr.mxu0 0.0
        %1567 = vmatpush1.msra.mxu0 0.0
        %1568 = vmatprep.subr.mxu0 0.0
        %1569 = vmatpush1.msra.mxu0 0.0
        %1570 = vmatprep.subr.mxu0 0.0
        %1571 = vmatpush1.msra.mxu0 0.0
        %1572 = vmatprep.subr.mxu0 0.0
        %1573 = vmatpush1.msra.mxu0 0.0
        %1574 = vmatprep.subr.mxu0 0.0
        %1575 = vmatpush1.msra.mxu0 0.0
        %1576 = vmatprep.subr.mxu0 0.0
        %1577 = vmatpush1.msra.mxu0 0.0
        %1578 = vmatprep.subr.mxu0 0.0
        %1579 = vmatpush1.msra.mxu0 0.0
        %1580 = vmatprep.subr.mxu0 0.0
        %1581 = vmatpush1.msra.mxu0 0.0
        %1582 = vmatprep.subr.mxu0 0.0
        %1583 = vmatpush1.msra.mxu0 0.0
        %1584 = vmatprep.subr.mxu0 0.0
        %1585 = vmatpush1.msra.mxu0 0.0
        %1586 = vmatprep.subr.mxu0 0.0
        %1587 = vmatpush1.msra.mxu0 0.0
        %1588 = vmatprep.subr.mxu0 0.0
        %1589 = vmatpush1.msra.mxu0 0.0
        %1590 = vmatprep.subr.mxu0 0.0
        %1591 = vmatpush1.msra.mxu0 0.0
        %1592 = vmatprep.subr.mxu0 0.0
        %1593 = vmatpush1.msra.mxu0 0.0
        %1594 = vmatprep.subr.mxu0 0.0
        %1595 = vmatpush1.msra.mxu0 0.0
        %1596 = vmatprep.subr.mxu0 0.0
        %1597 = vmatpush1.msra.mxu0 0.0
        %1598 = vmatprep.subr.mxu0 0.0
        %1599 = vmatpush1.msra.mxu0 0.0
        %1600 = vmatprep.mubr.f32.mxu0 0.0
        %1601 = vmatmul.mubr.f32.gmra.mrb[0].mxu0 %v835
        %v1602 = vpop.f32.mrb[0].mxu0
        %v1603 = vadd.f32 0.0, %v1602
        %v1604 = vpop.f32.mrb[0].mxu0
        %1605 = vmatprep.mubr.f32.mxu0 0.0
        %1606 = vmatmul.mubr.f32.gmra.mrb[0].mxu0 %v837
        %v1607 = vpop.f32.mrb[0].mxu0
        %v1608 = vadd.f32 0.0, %v1607
        %v1609 = vpop.f32.mrb[0].mxu0
        %1610 = vmatprep.mubr.f32.mxu0 0.0
        %1611 = vmatmul.mubr.f32.gmra.mrb[0].mxu0 %v839
        %v1612 = vpop.f32.mrb[0].mxu0
        %v1613 = vadd.f32 0.0, %v1612
        %v1614 = vpop.f32.mrb[0].mxu0
        %1615 = vmatprep.mubr.f32.mxu0 0.0
        %1616 = vmatmul.mubr.f32.gmra.mrb[0].mxu0 %v841
        %v1617 = vpop.f32.mrb[0].mxu0
        %v1618 = vadd.f32 0.0, %v1617
        %v1619 = vpop.f32.mrb[0].mxu0
        %1620 = vmatprep.mubr.f32.mxu0 0.0
        %1621 = vmatmul.mubr.f32.gmra.mrb[0].mxu0 %v843
        %v1622 = vpop.f32.mrb[0].mxu0
        %v1623 = vadd.f32 0.0, %v1622
        %v1624 = vpop.f32.mrb[0].mxu0
        %1625 = vmatprep.mubr.f32.mxu0 0.0
        %1626 = vmatmul.mubr.f32.gmra.mrb[0].mxu0 %v845
        %v1627 = vpop.f32.mrb[0].mxu0
        %v1628 = vadd.f32 0.0, %v1627
        %v1629 = vpop.f32.mrb[0].mxu0
        %1630 = vmatprep.mubr.f32.mxu0 0.0
        %1631 = vmatmul.mubr.f32.gmra.mrb[0].mxu0 %v847
        %v1632 = vpop.f32.mrb[0].mxu0
        %v1633 = vadd.f32 0.0, %v1632
        %v1634 = vpop.f32.mrb[0].mxu0
        %1635 = vmatprep.mubr.f32.mxu0 0.0
        %1636 = vmatmul.mubr.f32.gmra.mrb[0].mxu0 %v849
        %v1637 = vpop.f32.mrb[0].mxu0
        %v1638 = vadd.f32 0.0, %v1637
        %v1639 = vpop.f32.mrb[0].mxu0
        %1640 = vmatprep.mubr.f32.mxu0 0.0
        %1641 = vmatmul.mubr.f32.gmra.mrb[0].mxu0 %v851
        %v1642 = vpop.f32.mrb[0].mxu0
        %v1643 = vadd.f32 0.0, %v1642
        %v1644 = vpop.f32.mrb[0].mxu0
        %1645 = vmatprep.mubr.f32.mxu0 0.0
        %1646 = vmatmul.mubr.f32.gmra.mrb[0].mxu0 %v853
        %v1647 = vpop.f32.mrb[0].mxu0
        %v1648 = vadd.f32 0.0, %v1647
        %v1649 = vpop.f32.mrb[0].mxu0
        %1650 = vmatprep.mubr.f32.mxu0 0.0
        %1651 = vmatmul.mubr.f32.gmra.mrb[0].mxu0 %v855
        %v1652 = vpop.f32.mrb[0].mxu0
        %v1653 = vadd.f32 0.0, %v1652
        %v1654 = vpop.f32.mrb[0].mxu0
        %1655 = vmatprep.mubr.f32.mxu0 0.0
        %1656 = vmatmul.mubr.f32.gmra.mrb[0].mxu0 %v857
        %v1657 = vpop.f32.mrb[0].mxu0
        %v1658 = vadd.f32 0.0, %v1657
        %v1659 = vpop.f32.mrb[0].mxu0
        %1660 = vmatprep.mubr.f32.mxu0 0.0
        %1661 = vmatmul.mubr.f32.gmra.mrb[0].mxu0 %v859
        %v1662 = vpop.f32.mrb[0].mxu0
        %v1663 = vadd.f32 0.0, %v1662
        %v1664 = vpop.f32.mrb[0].mxu0
        %1665 = vmatprep.mubr.f32.mxu0 0.0
        %1666 = vmatmul.mubr.f32.gmra.mrb[0].mxu0 %v861
        %v1667 = vpop.f32.mrb[0].mxu0
        %v1668 = vadd.f32 0.0, %v1667
        %v1669 = vpop.f32.mrb[0].mxu0
        %1670 = vmatprep.mubr.f32.mxu0 0.0
        %1671 = vmatmul.mubr.f32.gmra.mrb[0].mxu0 %v863
        %v1672 = vpop.f32.mrb[0].mxu0
        %v1673 = vadd.f32 0.0, %v1672
        %v1674 = vpop.f32.mrb[0].mxu0
        %1675 = vmatprep.mubr.f32.mxu0 0.0
        %1676 = vmatmul.mubr.f32.gmra.mrb[0].mxu0 %v865
        %v1677 = vpop.f32.mrb[0].mxu0
        %v1678 = vadd.f32 0.0, %v1677
        %v1679 = vpop.f32.mrb[0].mxu0
        %1680 = vmatprep.mubr.f32.mxu0 0.0
        %1681 = vmatmul.mubr.f32.gmra.mrb[0].mxu0 %v867
        %v1682 = vpop.f32.mrb[0].mxu0
        %v1683 = vadd.f32 0.0, %v1682
        %v1684 = vpop.f32.mrb[0].mxu0
        %1685 = vmatprep.mubr.f32.mxu0 0.0
        %1686 = vmatmul.mubr.f32.gmra.mrb[0].mxu0 %v869
        %v1687 = vpop.f32.mrb[0].mxu0
        %v1688 = vadd.f32 0.0, %v1687
        %v1689 = vpop.f32.mrb[0].mxu0
        %1690 = vmatprep.mubr.f32.mxu0 0.0
        %1691 = vmatmul.mubr.f32.gmra.mrb[0].mxu0 %v871
        %v1692 = vpop.f32.mrb[0].mxu0
        %v1693 = vadd.f32 0.0, %v1692
        %v1694 = vpop.f32.mrb[0].mxu0
        %1695 = vmatprep.mubr.f32.mxu0 0.0
        %1696 = vmatmul.mubr.f32.gmra.mrb[0].mxu0 %v873
        %v1697 = vpop.f32.mrb[0].mxu0
        %v1698 = vadd.f32 0.0, %v1697
        %v1699 = vpop.f32.mrb[0].mxu0
        %1700 = vmatprep.mubr.f32.mxu0 0.0
        %1701 = vmatmul.mubr.f32.gmra.mrb[0].mxu0 %v875
        %v1702 = vpop.f32.mrb[0].mxu0
        %v1703 = vadd.f32 0.0, %v1702
        %v1704 = vpop.f32.mrb[0].mxu0
        %1705 = vmatprep.mubr.f32.mxu0 0.0
        %1706 = vmatmul.mubr.f32.gmra.mrb[0].mxu0 %v877
        %v1707 = vpop.f32.mrb[0].mxu0
        %v1708 = vadd.f32 0.0, %v1707
        %v1709 = vpop.f32.mrb[0].mxu0
        %1710 = vmatprep.mubr.f32.mxu0 0.0
        %1711 = vmatmul.mubr.f32.gmra.mrb[0].mxu0 %v879
        %v1712 = vpop.f32.mrb[0].mxu0
        %v1713 = vadd.f32 0.0, %v1712
        %v1714 = vpop.f32.mrb[0].mxu0
        %1715 = vmatprep.mubr.f32.mxu0 0.0
        %1716 = vmatmul.mubr.f32.gmra.mrb[0].mxu0 %v881
        %v1717 = vpop.f32.mrb[0].mxu0
        %v1718 = vadd.f32 0.0, %v1717
        %v1719 = vpop.f32.mrb[0].mxu0
        %1720 = vmatprep.mubr.f32.mxu0 0.0
        %1721 = vmatmul.mubr.f32.gmra.mrb[0].mxu0 %v883
        %v1722 = vpop.f32.mrb[0].mxu0
        %v1723 = vadd.f32 0.0, %v1722
        %v1724 = vpop.f32.mrb[0].mxu0
        %1725 = vmatprep.mubr.f32.mxu0 0.0
        %1726 = vmatmul.mubr.f32.gmra.mrb[0].mxu0 %v885
        %v1727 = vpop.f32.mrb[0].mxu0
        %v1728 = vadd.f32 0.0, %v1727
        %v1729 = vpop.f32.mrb[0].mxu0
        %1730 = vmatprep.mubr.f32.mxu0 0.0
        %1731 = vmatmul.mubr.f32.gmra.mrb[0].mxu0 %v887
        %v1732 = vpop.f32.mrb[0].mxu0
        %v1733 = vadd.f32 0.0, %v1732
        %v1734 = vpop.f32.mrb[0].mxu0
        %1735 = vmatprep.mubr.f32.mxu0 0.0
        %1736 = vmatmul.mubr.f32.gmra.mrb[0].mxu0 %v889
        %v1737 = vpop.f32.mrb[0].mxu0
        %v1738 = vadd.f32 0.0, %v1737
        %v1739 = vpop.f32.mrb[0].mxu0
        %1740 = vmatprep.mubr.f32.mxu0 0.0
        %1741 = vmatmul.mubr.f32.gmra.mrb[0].mxu0 %v891
        %v1742 = vpop.f32.mrb[0].mxu0
        %v1743 = vadd.f32 0.0, %v1742
        %v1744 = vpop.f32.mrb[0].mxu0
        %1745 = vmatprep.mubr.f32.mxu0 0.0
        %1746 = vmatmul.mubr.f32.gmra.mrb[0].mxu0 %v893
        %v1747 = vpop.f32.mrb[0].mxu0
        %v1748 = vadd.f32 0.0, %v1747
        %v1749 = vpop.f32.mrb[0].mxu0
        %1750 = vmatprep.mubr.f32.mxu0 0.0
        %1751 = vmatmul.mubr.f32.gmra.mrb[0].mxu0 %v1529
        %v1752 = vpop.f32.mrb[0].mxu0
        %v1753 = vadd.f32 0.0, %v1752
        %v1754 = vpop.f32.mrb[0].mxu0
        %1755 = vmatprep.mubr.f32.mxu0 0.0
        %1756 = vmatmul.mubr.f32.gmra.mrb[0].mxu0 %v1531
        %v1757 = vpop.f32.mrb[0].mxu0
        %v1758 = vadd.f32 0.0, %v1757
        %v1759 = vpop.f32.mrb[0].mxu0
        %1760 = vdwg.mxu0
        %v1761 = vadd.f32 %v1496, %v1603
        %v1762 = vadd.f32 %v1497, %v1608
        %v1763 = vadd.f32 %v1498, %v1613
        %v1764 = vadd.f32 %v1499, %v1618
        %v1765 = vadd.f32 %v1500, %v1623
        %v1766 = vadd.f32 %v1501, %v1628
        %v1767 = vadd.f32 %v1502, %v1633
        %v1768 = vadd.f32 %v1503, %v1638
        %v1769 = vadd.f32 %v1504, %v1643
        %v1770 = vadd.f32 %v1505, %v1648
        %v1771 = vadd.f32 %v1506, %v1653
        %v1772 = vadd.f32 %v1507, %v1658
        %v1773 = vadd.f32 %v1508, %v1663
        %v1774 = vadd.f32 %v1509, %v1668
        %v1775 = vadd.f32 %v1510, %v1673
        %v1776 = vadd.f32 %v1511, %v1678
        %v1777 = vadd.f32 %v1512, %v1683
        %v1778 = vadd.f32 %v1513, %v1688
        %v1779 = vadd.f32 %v1514, %v1693
        %v1780 = vadd.f32 %v1515, %v1698
        %v1781 = vadd.f32 %v1516, %v1703
        %v1782 = vadd.f32 %v1517, %v1708
        %v1783 = vadd.f32 %v1518, %v1713
        %v1784 = vadd.f32 %v1519, %v1718
        %v1785 = vadd.f32 %v1520, %v1723
        %v1786 = vadd.f32 %v1521, %v1728
        %v1787 = vadd.f32 %v1522, %v1733
        %v1788 = vadd.f32 %v1523, %v1738
        %v1789 = vadd.f32 %v1524, %v1743
        %v1790 = vadd.f32 %v1525, %v1748
        %v1791 = vadd.f32 %v1526, %v1753
        %v1792 = vadd.f32 %v1527, %v1758
        %v1794 = vrot.slane %v406, 1
        %v1795 = vrot.slane %v356, 1
        %v1796 = vsel %vm456, %v1794, %v1795
        %v1797 = vrot.slane %v423, 1
        %v1798 = vsel %vm456, %v1795, %v1797
        %v1799 = vsel %vm537, %v1796, 0
        %v1801 = vsel %vm537, %v1798, 0
        %v1804 = vsel %vm602, %v227, 0
        %1806 = vmatprep.subr.mxu0 0.0
        %1807 = vmatpush1.msra.mxu0 %v1804
        %1808 = vmatprep.subr.mxu0 0.0
        %1809 = vmatpush1.msra.mxu0 0.0
        %1810 = vmatprep.subr.mxu0 0.0
        %1811 = vmatpush1.msra.mxu0 0.0
        %1812 = vmatprep.subr.mxu0 0.0
        %1813 = vmatpush1.msra.mxu0 0.0
        %1814 = vmatprep.subr.mxu0 0.0
        %1815 = vmatpush1.msra.mxu0 0.0
        %1816 = vmatprep.subr.mxu0 0.0
        %1817 = vmatpush1.msra.mxu0 0.0
        %1818 = vmatprep.subr.mxu0 0.0
        %1819 = vmatpush1.msra.mxu0 0.0
        %1820 = vmatprep.subr.mxu0 0.0
        %1821 = vmatpush1.msra.mxu0 0.0
        %1822 = vmatprep.subr.mxu0 0.0
        %1823 = vmatpush1.msra.mxu0 0.0
        %1824 = vmatprep.subr.mxu0 0.0
        %1825 = vmatpush1.msra.mxu0 0.0
        %1826 = vmatprep.subr.mxu0 0.0
        %1827 = vmatpush1.msra.mxu0 0.0
        %1828 = vmatprep.subr.mxu0 0.0
        %1829 = vmatpush1.msra.mxu0 0.0
        %1830 = vmatprep.subr.mxu0 0.0
        %1831 = vmatpush1.msra.mxu0 0.0
        %1832 = vmatprep.subr.mxu0 0.0
        %1833 = vmatpush1.msra.mxu0 0.0
        %1834 = vmatprep.subr.mxu0 0.0
        %1835 = vmatpush1.msra.mxu0 0.0
        %1836 = vmatprep.subr.mxu0 0.0
        %1837 = vmatpush1.msra.mxu0 0.0
        %1838 = vmatprep.subr.mxu0 0.0
        %1839 = vmatpush1.msra.mxu0 0.0
        %1840 = vmatprep.subr.mxu0 0.0
        %1841 = vmatpush1.msra.mxu0 0.0
        %1842 = vmatprep.subr.mxu0 0.0
        %1843 = vmatpush1.msra.mxu0 0.0
        %1844 = vmatprep.subr.mxu0 0.0
        %1845 = vmatpush1.msra.mxu0 0.0
        %1846 = vmatprep.subr.mxu0 0.0
        %1847 = vmatpush1.msra.mxu0 0.0
        %1848 = vmatprep.subr.mxu0 0.0
        %1849 = vmatpush1.msra.mxu0 0.0
        %1850 = vmatprep.subr.mxu0 0.0
        %1851 = vmatpush1.msra.mxu0 0.0
        %1852 = vmatprep.subr.mxu0 0.0
        %1853 = vmatpush1.msra.mxu0 0.0
        %1854 = vmatprep.subr.mxu0 0.0
        %1855 = vmatpush1.msra.mxu0 0.0
        %1856 = vmatprep.subr.mxu0 0.0
        %1857 = vmatpush1.msra.mxu0 0.0
        %1858 = vmatprep.subr.mxu0 0.0
        %1859 = vmatpush1.msra.mxu0 0.0
        %1860 = vmatprep.subr.mxu0 0.0
        %1861 = vmatpush1.msra.mxu0 0.0
        %1862 = vmatprep.subr.mxu0 0.0
        %1863 = vmatpush1.msra.mxu0 0.0
        %1864 = vmatprep.subr.mxu0 0.0
        %1865 = vmatpush1.msra.mxu0 0.0
        %1866 = vmatprep.subr.mxu0 0.0
        %1867 = vmatpush1.msra.mxu0 0.0
        %1868 = vmatprep.subr.mxu0 0.0
        %1869 = vmatpush1.msra.mxu0 0.0
        %1870 = vmatprep.mubr.f32.mxu0 0.0
        %1871 = vmatmul.mubr.f32.gmra.mrb[0].mxu0 %v542
        %v1872 = vpop.f32.mrb[0].mxu0
        %v1873 = vadd.f32 0.0, %v1872
        %v1874 = vpop.f32.mrb[0].mxu0
        %1875 = vmatprep.mubr.f32.mxu0 0.0
        %1876 = vmatmul.mubr.f32.gmra.mrb[0].mxu0 %v544
        %v1877 = vpop.f32.mrb[0].mxu0
        %v1878 = vadd.f32 0.0, %v1877
        %v1879 = vpop.f32.mrb[0].mxu0
        %1880 = vmatprep.mubr.f32.mxu0 0.0
        %1881 = vmatmul.mubr.f32.gmra.mrb[0].mxu0 %v546
        %v1882 = vpop.f32.mrb[0].mxu0
        %v1883 = vadd.f32 0.0, %v1882
        %v1884 = vpop.f32.mrb[0].mxu0
        %1885 = vmatprep.mubr.f32.mxu0 0.0
        %1886 = vmatmul.mubr.f32.gmra.mrb[0].mxu0 %v548
        %v1887 = vpop.f32.mrb[0].mxu0
        %v1888 = vadd.f32 0.0, %v1887
        %v1889 = vpop.f32.mrb[0].mxu0
        %1890 = vmatprep.mubr.f32.mxu0 0.0
        %1891 = vmatmul.mubr.f32.gmra.mrb[0].mxu0 %v550
        %v1892 = vpop.f32.mrb[0].mxu0
        %v1893 = vadd.f32 0.0, %v1892
        %v1894 = vpop.f32.mrb[0].mxu0
        %1895 = vmatprep.mubr.f32.mxu0 0.0
        %1896 = vmatmul.mubr.f32.gmra.mrb[0].mxu0 %v552
        %v1897 = vpop.f32.mrb[0].mxu0
        %v1898 = vadd.f32 0.0, %v1897
        %v1899 = vpop.f32.mrb[0].mxu0
        %1900 = vmatprep.mubr.f32.mxu0 0.0
        %1901 = vmatmul.mubr.f32.gmra.mrb[0].mxu0 %v554
        %v1902 = vpop.f32.mrb[0].mxu0
        %v1903 = vadd.f32 0.0, %v1902
        %v1904 = vpop.f32.mrb[0].mxu0
        %1905 = vmatprep.mubr.f32.mxu0 0.0
        %1906 = vmatmul.mubr.f32.gmra.mrb[0].mxu0 %v556
        %v1907 = vpop.f32.mrb[0].mxu0
        %v1908 = vadd.f32 0.0, %v1907
        %v1909 = vpop.f32.mrb[0].mxu0
        %1910 = vmatprep.mubr.f32.mxu0 0.0
        %1911 = vmatmul.mubr.f32.gmra.mrb[0].mxu0 %v558
        %v1912 = vpop.f32.mrb[0].mxu0
        %v1913 = vadd.f32 0.0, %v1912
        %v1914 = vpop.f32.mrb[0].mxu0
        %1915 = vmatprep.mubr.f32.mxu0 0.0
        %1916 = vmatmul.mubr.f32.gmra.mrb[0].mxu0 %v560
        %v1917 = vpop.f32.mrb[0].mxu0
        %v1918 = vadd.f32 0.0, %v1917
        %v1919 = vpop.f32.mrb[0].mxu0
        %1920 = vmatprep.mubr.f32.mxu0 0.0
        %1921 = vmatmul.mubr.f32.gmra.mrb[0].mxu0 %v562
        %v1922 = vpop.f32.mrb[0].mxu0
        %v1923 = vadd.f32 0.0, %v1922
        %v1924 = vpop.f32.mrb[0].mxu0
        %1925 = vmatprep.mubr.f32.mxu0 0.0
        %1926 = vmatmul.mubr.f32.gmra.mrb[0].mxu0 %v564
        %v1927 = vpop.f32.mrb[0].mxu0
        %v1928 = vadd.f32 0.0, %v1927
        %v1929 = vpop.f32.mrb[0].mxu0
        %1930 = vmatprep.mubr.f32.mxu0 0.0
        %1931 = vmatmul.mubr.f32.gmra.mrb[0].mxu0 %v566
        %v1932 = vpop.f32.mrb[0].mxu0
        %v1933 = vadd.f32 0.0, %v1932
        %v1934 = vpop.f32.mrb[0].mxu0
        %1935 = vmatprep.mubr.f32.mxu0 0.0
        %1936 = vmatmul.mubr.f32.gmra.mrb[0].mxu0 %v568
        %v1937 = vpop.f32.mrb[0].mxu0
        %v1938 = vadd.f32 0.0, %v1937
        %v1939 = vpop.f32.mrb[0].mxu0
        %1940 = vmatprep.mubr.f32.mxu0 0.0
        %1941 = vmatmul.mubr.f32.gmra.mrb[0].mxu0 %v570
        %v1942 = vpop.f32.mrb[0].mxu0
        %v1943 = vadd.f32 0.0, %v1942
        %v1944 = vpop.f32.mrb[0].mxu0
        %1945 = vmatprep.mubr.f32.mxu0 0.0
        %1946 = vmatmul.mubr.f32.gmra.mrb[0].mxu0 %v572
        %v1947 = vpop.f32.mrb[0].mxu0
        %v1948 = vadd.f32 0.0, %v1947
        %v1949 = vpop.f32.mrb[0].mxu0
        %1950 = vmatprep.mubr.f32.mxu0 0.0
        %1951 = vmatmul.mubr.f32.gmra.mrb[0].mxu0 %v574
        %v1952 = vpop.f32.mrb[0].mxu0
        %v1953 = vadd.f32 0.0, %v1952
        %v1954 = vpop.f32.mrb[0].mxu0
        %1955 = vmatprep.mubr.f32.mxu0 0.0
        %1956 = vmatmul.mubr.f32.gmra.mrb[0].mxu0 %v576
        %v1957 = vpop.f32.mrb[0].mxu0
        %v1958 = vadd.f32 0.0, %v1957
        %v1959 = vpop.f32.mrb[0].mxu0
        %1960 = vmatprep.mubr.f32.mxu0 0.0
        %1961 = vmatmul.mubr.f32.gmra.mrb[0].mxu0 %v578
        %v1962 = vpop.f32.mrb[0].mxu0
        %v1963 = vadd.f32 0.0, %v1962
        %v1964 = vpop.f32.mrb[0].mxu0
        %1965 = vmatprep.mubr.f32.mxu0 0.0
        %1966 = vmatmul.mubr.f32.gmra.mrb[0].mxu0 %v580
        %v1967 = vpop.f32.mrb[0].mxu0
        %v1968 = vadd.f32 0.0, %v1967
        %v1969 = vpop.f32.mrb[0].mxu0
        %1970 = vmatprep.mubr.f32.mxu0 0.0
        %1971 = vmatmul.mubr.f32.gmra.mrb[0].mxu0 %v582
        %v1972 = vpop.f32.mrb[0].mxu0
        %v1973 = vadd.f32 0.0, %v1972
        %v1974 = vpop.f32.mrb[0].mxu0
        %1975 = vmatprep.mubr.f32.mxu0 0.0
        %1976 = vmatmul.mubr.f32.gmra.mrb[0].mxu0 %v584
        %v1977 = vpop.f32.mrb[0].mxu0
        %v1978 = vadd.f32 0.0, %v1977
        %v1979 = vpop.f32.mrb[0].mxu0
        %1980 = vmatprep.mubr.f32.mxu0 0.0
        %1981 = vmatmul.mubr.f32.gmra.mrb[0].mxu0 %v586
        %v1982 = vpop.f32.mrb[0].mxu0
        %v1983 = vadd.f32 0.0, %v1982
        %v1984 = vpop.f32.mrb[0].mxu0
        %1985 = vmatprep.mubr.f32.mxu0 0.0
        %1986 = vmatmul.mubr.f32.gmra.mrb[0].mxu0 %v588
        %v1987 = vpop.f32.mrb[0].mxu0
        %v1988 = vadd.f32 0.0, %v1987
        %v1989 = vpop.f32.mrb[0].mxu0
        %1990 = vmatprep.mubr.f32.mxu0 0.0
        %1991 = vmatmul.mubr.f32.gmra.mrb[0].mxu0 %v590
        %v1992 = vpop.f32.mrb[0].mxu0
        %v1993 = vadd.f32 0.0, %v1992
        %v1994 = vpop.f32.mrb[0].mxu0
        %1995 = vmatprep.mubr.f32.mxu0 0.0
        %1996 = vmatmul.mubr.f32.gmra.mrb[0].mxu0 %v592
        %v1997 = vpop.f32.mrb[0].mxu0
        %v1998 = vadd.f32 0.0, %v1997
        %v1999 = vpop.f32.mrb[0].mxu0
        %2000 = vmatprep.mubr.f32.mxu0 0.0
        %2001 = vmatmul.mubr.f32.gmra.mrb[0].mxu0 %v594
        %v2002 = vpop.f32.mrb[0].mxu0
        %v2003 = vadd.f32 0.0, %v2002
        %v2004 = vpop.f32.mrb[0].mxu0
        %2005 = vmatprep.mubr.f32.mxu0 0.0
        %2006 = vmatmul.mubr.f32.gmra.mrb[0].mxu0 %v596
        %v2007 = vpop.f32.mrb[0].mxu0
        %v2008 = vadd.f32 0.0, %v2007
        %v2009 = vpop.f32.mrb[0].mxu0
        %2010 = vmatprep.mubr.f32.mxu0 0.0
        %2011 = vmatmul.mubr.f32.gmra.mrb[0].mxu0 %v598
        %v2012 = vpop.f32.mrb[0].mxu0
        %v2013 = vadd.f32 0.0, %v2012
        %v2014 = vpop.f32.mrb[0].mxu0
        %2015 = vmatprep.mubr.f32.mxu0 0.0
        %2016 = vmatmul.mubr.f32.gmra.mrb[0].mxu0 %v600
        %v2017 = vpop.f32.mrb[0].mxu0
        %v2018 = vadd.f32 0.0, %v2017
        %v2019 = vpop.f32.mrb[0].mxu0
        %2020 = vmatprep.mubr.f32.mxu0 0.0
        %2021 = vmatmul.mubr.f32.gmra.mrb[0].mxu0 %v1799
        %v2022 = vpop.f32.mrb[0].mxu0
        %v2023 = vadd.f32 0.0, %v2022
        %v2024 = vpop.f32.mrb[0].mxu0
        %2025 = vmatprep.mubr.f32.mxu0 0.0
        %2026 = vmatmul.mubr.f32.gmra.mrb[0].mxu0 %v1801
        %v2027 = vpop.f32.mrb[0].mxu0
        %v2028 = vadd.f32 0.0, %v2027
        %v2029 = vpop.f32.mrb[0].mxu0
        %2030 = vdwg.mxu0
        %v2031 = vadd.f32 %v1761, %v1873
        %v2032 = vadd.f32 %v1762, %v1878
        %v2033 = vadd.f32 %v1763, %v1883
        %v2034 = vadd.f32 %v1764, %v1888
        %v2035 = vadd.f32 %v1765, %v1893
        %v2036 = vadd.f32 %v1766, %v1898
        %v2037 = vadd.f32 %v1767, %v1903
        %v2038 = vadd.f32 %v1768, %v1908
        %v2039 = vadd.f32 %v1769, %v1913
        %v2040 = vadd.f32 %v1770, %v1918
        %v2041 = vadd.f32 %v1771, %v1923
        %v2042 = vadd.f32 %v1772, %v1928
        %v2043 = vadd.f32 %v1773, %v1933
        %v2044 = vadd.f32 %v1774, %v1938
        %v2045 = vadd.f32 %v1775, %v1943
        %v2046 = vadd.f32 %v1776, %v1948
        %v2047 = vadd.f32 %v1777, %v1953
        %v2048 = vadd.f32 %v1778, %v1958
        %v2049 = vadd.f32 %v1779, %v1963
        %v2050 = vadd.f32 %v1780, %v1968
        %v2051 = vadd.f32 %v1781, %v1973
        %v2052 = vadd.f32 %v1782, %v1978
        %v2053 = vadd.f32 %v1783, %v1983
        %v2054 = vadd.f32 %v1784, %v1988
        %v2055 = vadd.f32 %v1785, %v1993
        %v2056 = vadd.f32 %v1786, %v1998
        %v2057 = vadd.f32 %v1787, %v2003
        %v2058 = vadd.f32 %v1788, %v2008
        %v2059 = vadd.f32 %v1789, %v2013
        %v2060 = vadd.f32 %v1790, %v2018
        %v2061 = vadd.f32 %v1791, %v2023
        %v2062 = vadd.f32 %v1792, %v2028
        %v2063 = vrot.slane %v406, 2
        %v2064 = vrot.slane %v356, 2
        %v2065 = vsel %vm1123, %v2063, %v2064
        %v2066 = vrot.slane %v423, 2
        %v2067 = vsel %vm1123, %v2064, %v2066
        %v2068 = vsel %vm537, %v2065, 0
        %v2070 = vsel %vm537, %v2067, 0
        %v2073 = vsel %vm602, %v228, 0
        %2075 = vmatprep.subr.mxu0 0.0
        %2076 = vmatpush1.msra.mxu0 %v2073
        %2077 = vmatprep.subr.mxu0 0.0
        %2078 = vmatpush1.msra.mxu0 0.0
        %2079 = vmatprep.subr.mxu0 0.0
        %2080 = vmatpush1.msra.mxu0 0.0
        %2081 = vmatprep.subr.mxu0 0.0
        %2082 = vmatpush1.msra.mxu0 0.0
        %2083 = vmatprep.subr.mxu0 0.0
        %2084 = vmatpush1.msra.mxu0 0.0
        %2085 = vmatprep.subr.mxu0 0.0
        %2086 = vmatpush1.msra.mxu0 0.0
        %2087 = vmatprep.subr.mxu0 0.0
        %2088 = vmatpush1.msra.mxu0 0.0
        %2089 = vmatprep.subr.mxu0 0.0
        %2090 = vmatpush1.msra.mxu0 0.0
        %2091 = vmatprep.subr.mxu0 0.0
        %2092 = vmatpush1.msra.mxu0 0.0
        %2093 = vmatprep.subr.mxu0 0.0
        %2094 = vmatpush1.msra.mxu0 0.0
        %2095 = vmatprep.subr.mxu0 0.0
        %2096 = vmatpush1.msra.mxu0 0.0
        %2097 = vmatprep.subr.mxu0 0.0
        %2098 = vmatpush1.msra.mxu0 0.0
        %2099 = vmatprep.subr.mxu0 0.0
        %2100 = vmatpush1.msra.mxu0 0.0
        %2101 = vmatprep.subr.mxu0 0.0
        %2102 = vmatpush1.msra.mxu0 0.0
        %2103 = vmatprep.subr.mxu0 0.0
        %2104 = vmatpush1.msra.mxu0 0.0
        %2105 = vmatprep.subr.mxu0 0.0
        %2106 = vmatpush1.msra.mxu0 0.0
        %2107 = vmatprep.subr.mxu0 0.0
        %2108 = vmatpush1.msra.mxu0 0.0
        %2109 = vmatprep.subr.mxu0 0.0
        %2110 = vmatpush1.msra.mxu0 0.0
        %2111 = vmatprep.subr.mxu0 0.0
        %2112 = vmatpush1.msra.mxu0 0.0
        %2113 = vmatprep.subr.mxu0 0.0
        %2114 = vmatpush1.msra.mxu0 0.0
        %2115 = vmatprep.subr.mxu0 0.0
        %2116 = vmatpush1.msra.mxu0 0.0
        %2117 = vmatprep.subr.mxu0 0.0
        %2118 = vmatpush1.msra.mxu0 0.0
        %2119 = vmatprep.subr.mxu0 0.0
        %2120 = vmatpush1.msra.mxu0 0.0
        %2121 = vmatprep.subr.mxu0 0.0
        %2122 = vmatpush1.msra.mxu0 0.0
        %2123 = vmatprep.subr.mxu0 0.0
        %2124 = vmatpush1.msra.mxu0 0.0
        %2125 = vmatprep.subr.mxu0 0.0
        %2126 = vmatpush1.msra.mxu0 0.0
        %2127 = vmatprep.subr.mxu0 0.0
        %2128 = vmatpush1.msra.mxu0 0.0
        %2129 = vmatprep.subr.mxu0 0.0
        %2130 = vmatpush1.msra.mxu0 0.0
        %2131 = vmatprep.subr.mxu0 0.0
        %2132 = vmatpush1.msra.mxu0 0.0
        %2133 = vmatprep.subr.mxu0 0.0
        %2134 = vmatpush1.msra.mxu0 0.0
        %2135 = vmatprep.subr.mxu0 0.0
        %2136 = vmatpush1.msra.mxu0 0.0
        %2137 = vmatprep.subr.mxu0 0.0
        %2138 = vmatpush1.msra.mxu0 0.0
        %2139 = vmatprep.mubr.f32.mxu0 0.0
        %2140 = vmatmul.mubr.f32.gmra.mrb[0].mxu0 %v1208
        %v2141 = vpop.f32.mrb[0].mxu0
        %v2142 = vadd.f32 0.0, %v2141
        %v2143 = vpop.f32.mrb[0].mxu0
        %2144 = vmatprep.mubr.f32.mxu0 0.0
        %2145 = vmatmul.mubr.f32.gmra.mrb[0].mxu0 %v1210
        %v2146 = vpop.f32.mrb[0].mxu0
        %v2147 = vadd.f32 0.0, %v2146
        %v2148 = vpop.f32.mrb[0].mxu0
        %2149 = vmatprep.mubr.f32.mxu0 0.0
        %2150 = vmatmul.mubr.f32.gmra.mrb[0].mxu0 %v1212
        %v2151 = vpop.f32.mrb[0].mxu0
        %v2152 = vadd.f32 0.0, %v2151
        %v2153 = vpop.f32.mrb[0].mxu0
        %2154 = vmatprep.mubr.f32.mxu0 0.0
        %2155 = vmatmul.mubr.f32.gmra.mrb[0].mxu0 %v1214
        %v2156 = vpop.f32.mrb[0].mxu0
        %v2157 = vadd.f32 0.0, %v2156
        %v2158 = vpop.f32.mrb[0].mxu0
        %2159 = vmatprep.mubr.f32.mxu0 0.0
        %2160 = vmatmul.mubr.f32.gmra.mrb[0].mxu0 %v1216
        %v2161 = vpop.f32.mrb[0].mxu0
        %v2162 = vadd.f32 0.0, %v2161
        %v2163 = vpop.f32.mrb[0].mxu0
        %2164 = vmatprep.mubr.f32.mxu0 0.0
        %2165 = vmatmul.mubr.f32.gmra.mrb[0].mxu0 %v1218
        %v2166 = vpop.f32.mrb[0].mxu0
        %v2167 = vadd.f32 0.0, %v2166
        %v2168 = vpop.f32.mrb[0].mxu0
        %2169 = vmatprep.mubr.f32.mxu0 0.0
        %2170 = vmatmul.mubr.f32.gmra.mrb[0].mxu0 %v1220
        %v2171 = vpop.f32.mrb[0].mxu0
        %v2172 = vadd.f32 0.0, %v2171
        %v2173 = vpop.f32.mrb[0].mxu0
        %2174 = vmatprep.mubr.f32.mxu0 0.0
        %2175 = vmatmul.mubr.f32.gmra.mrb[0].mxu0 %v1222
        %v2176 = vpop.f32.mrb[0].mxu0
        %v2177 = vadd.f32 0.0, %v2176
        %v2178 = vpop.f32.mrb[0].mxu0
        %2179 = vmatprep.mubr.f32.mxu0 0.0
        %2180 = vmatmul.mubr.f32.gmra.mrb[0].mxu0 %v1224
        %v2181 = vpop.f32.mrb[0].mxu0
        %v2182 = vadd.f32 0.0, %v2181
        %v2183 = vpop.f32.mrb[0].mxu0
        %2184 = vmatprep.mubr.f32.mxu0 0.0
        %2185 = vmatmul.mubr.f32.gmra.mrb[0].mxu0 %v1226
        %v2186 = vpop.f32.mrb[0].mxu0
        %v2187 = vadd.f32 0.0, %v2186
        %v2188 = vpop.f32.mrb[0].mxu0
        %2189 = vmatprep.mubr.f32.mxu0 0.0
        %2190 = vmatmul.mubr.f32.gmra.mrb[0].mxu0 %v1228
        %v2191 = vpop.f32.mrb[0].mxu0
        %v2192 = vadd.f32 0.0, %v2191
        %v2193 = vpop.f32.mrb[0].mxu0
        %2194 = vmatprep.mubr.f32.mxu0 0.0
        %2195 = vmatmul.mubr.f32.gmra.mrb[0].mxu0 %v1230
        %v2196 = vpop.f32.mrb[0].mxu0
        %v2197 = vadd.f32 0.0, %v2196
        %v2198 = vpop.f32.mrb[0].mxu0
        %2199 = vmatprep.mubr.f32.mxu0 0.0
        %2200 = vmatmul.mubr.f32.gmra.mrb[0].mxu0 %v1232
        %v2201 = vpop.f32.mrb[0].mxu0
        %v2202 = vadd.f32 0.0, %v2201
        %v2203 = vpop.f32.mrb[0].mxu0
        %2204 = vmatprep.mubr.f32.mxu0 0.0
        %2205 = vmatmul.mubr.f32.gmra.mrb[0].mxu0 %v1234
        %v2206 = vpop.f32.mrb[0].mxu0
        %v2207 = vadd.f32 0.0, %v2206
        %v2208 = vpop.f32.mrb[0].mxu0
        %2209 = vmatprep.mubr.f32.mxu0 0.0
        %2210 = vmatmul.mubr.f32.gmra.mrb[0].mxu0 %v1236
        %v2211 = vpop.f32.mrb[0].mxu0
        %v2212 = vadd.f32 0.0, %v2211
        %v2213 = vpop.f32.mrb[0].mxu0
        %2214 = vmatprep.mubr.f32.mxu0 0.0
        %2215 = vmatmul.mubr.f32.gmra.mrb[0].mxu0 %v1238
        %v2216 = vpop.f32.mrb[0].mxu0
        %v2217 = vadd.f32 0.0, %v2216
        %v2218 = vpop.f32.mrb[0].mxu0
        %2219 = vmatprep.mubr.f32.mxu0 0.0
        %2220 = vmatmul.mubr.f32.gmra.mrb[0].mxu0 %v1240
        %v2221 = vpop.f32.mrb[0].mxu0
        %v2222 = vadd.f32 0.0, %v2221
        %v2223 = vpop.f32.mrb[0].mxu0
        %2224 = vmatprep.mubr.f32.mxu0 0.0
        %2225 = vmatmul.mubr.f32.gmra.mrb[0].mxu0 %v1242
        %v2226 = vpop.f32.mrb[0].mxu0
        %v2227 = vadd.f32 0.0, %v2226
        %v2228 = vpop.f32.mrb[0].mxu0
        %2229 = vmatprep.mubr.f32.mxu0 0.0
        %2230 = vmatmul.mubr.f32.gmra.mrb[0].mxu0 %v1244
        %v2231 = vpop.f32.mrb[0].mxu0
        %v2232 = vadd.f32 0.0, %v2231
        %v2233 = vpop.f32.mrb[0].mxu0
        %2234 = vmatprep.mubr.f32.mxu0 0.0
        %2235 = vmatmul.mubr.f32.gmra.mrb[0].mxu0 %v1246
        %v2236 = vpop.f32.mrb[0].mxu0
        %v2237 = vadd.f32 0.0, %v2236
        %v2238 = vpop.f32.mrb[0].mxu0
        %2239 = vmatprep.mubr.f32.mxu0 0.0
        %2240 = vmatmul.mubr.f32.gmra.mrb[0].mxu0 %v1248
        %v2241 = vpop.f32.mrb[0].mxu0
        %v2242 = vadd.f32 0.0, %v2241
        %v2243 = vpop.f32.mrb[0].mxu0
        %2244 = vmatprep.mubr.f32.mxu0 0.0
        %2245 = vmatmul.mubr.f32.gmra.mrb[0].mxu0 %v1250
        %v2246 = vpop.f32.mrb[0].mxu0
        %v2247 = vadd.f32 0.0, %v2246
        %v2248 = vpop.f32.mrb[0].mxu0
        %2249 = vmatprep.mubr.f32.mxu0 0.0
        %2250 = vmatmul.mubr.f32.gmra.mrb[0].mxu0 %v1252
        %v2251 = vpop.f32.mrb[0].mxu0
        %v2252 = vadd.f32 0.0, %v2251
        %v2253 = vpop.f32.mrb[0].mxu0
        %2254 = vmatprep.mubr.f32.mxu0 0.0
        %2255 = vmatmul.mubr.f32.gmra.mrb[0].mxu0 %v1254
        %v2256 = vpop.f32.mrb[0].mxu0
        %v2257 = vadd.f32 0.0, %v2256
        %v2258 = vpop.f32.mrb[0].mxu0
        %2259 = vmatprep.mubr.f32.mxu0 0.0
        %2260 = vmatmul.mubr.f32.gmra.mrb[0].mxu0 %v1256
        %v2261 = vpop.f32.mrb[0].mxu0
        %v2262 = vadd.f32 0.0, %v2261
        %v2263 = vpop.f32.mrb[0].mxu0
        %2264 = vmatprep.mubr.f32.mxu0 0.0
        %2265 = vmatmul.mubr.f32.gmra.mrb[0].mxu0 %v1258
        %v2266 = vpop.f32.mrb[0].mxu0
        %v2267 = vadd.f32 0.0, %v2266
        %v2268 = vpop.f32.mrb[0].mxu0
        %2269 = vmatprep.mubr.f32.mxu0 0.0
        %2270 = vmatmul.mubr.f32.gmra.mrb[0].mxu0 %v1260
        %v2271 = vpop.f32.mrb[0].mxu0
        %v2272 = vadd.f32 0.0, %v2271
        %v2273 = vpop.f32.mrb[0].mxu0
        %2274 = vmatprep.mubr.f32.mxu0 0.0
        %2275 = vmatmul.mubr.f32.gmra.mrb[0].mxu0 %v1262
        %v2276 = vpop.f32.mrb[0].mxu0
        %v2277 = vadd.f32 0.0, %v2276
        %v2278 = vpop.f32.mrb[0].mxu0
        %2279 = vmatprep.mubr.f32.mxu0 0.0
        %2280 = vmatmul.mubr.f32.gmra.mrb[0].mxu0 %v1264
        %v2281 = vpop.f32.mrb[0].mxu0
        %v2282 = vadd.f32 0.0, %v2281
        %v2283 = vpop.f32.mrb[0].mxu0
        %2284 = vmatprep.mubr.f32.mxu0 0.0
        %2285 = vmatmul.mubr.f32.gmra.mrb[0].mxu0 %v1266
        %v2286 = vpop.f32.mrb[0].mxu0
        %v2287 = vadd.f32 0.0, %v2286
        %v2288 = vpop.f32.mrb[0].mxu0
        %2289 = vmatprep.mubr.f32.mxu0 0.0
        %2290 = vmatmul.mubr.f32.gmra.mrb[0].mxu0 %v2068
        %v2291 = vpop.f32.mrb[0].mxu0
        %v2292 = vadd.f32 0.0, %v2291
        %v2293 = vpop.f32.mrb[0].mxu0
        %2294 = vmatprep.mubr.f32.mxu0 0.0
        %2295 = vmatmul.mubr.f32.gmra.mrb[0].mxu0 %v2070
        %v2296 = vpop.f32.mrb[0].mxu0
        %v2297 = vadd.f32 0.0, %v2296
        %v2298 = vpop.f32.mrb[0].mxu0
        %2299 = vdwg.mxu0
        %v2300 = vadd.f32 %v2031, %v2142
        %v2301 = vadd.f32 %v2032, %v2147
        %v2302 = vadd.f32 %v2033, %v2152
        %v2303 = vadd.f32 %v2034, %v2157
        %v2304 = vadd.f32 %v2035, %v2162
        %v2305 = vadd.f32 %v2036, %v2167
        %v2306 = vadd.f32 %v2037, %v2172
        %v2307 = vadd.f32 %v2038, %v2177
        %v2308 = vadd.f32 %v2039, %v2182
        %v2309 = vadd.f32 %v2040, %v2187
        %v2310 = vadd.f32 %v2041, %v2192
        %v2311 = vadd.f32 %v2042, %v2197
        %v2312 = vadd.f32 %v2043, %v2202
        %v2313 = vadd.f32 %v2044, %v2207
        %v2314 = vadd.f32 %v2045, %v2212
        %v2315 = vadd.f32 %v2046, %v2217
        %v2316 = vadd.f32 %v2047, %v2222
        %v2317 = vadd.f32 %v2048, %v2227
        %v2318 = vadd.f32 %v2049, %v2232
        %v2319 = vadd.f32 %v2050, %v2237
        %v2320 = vadd.f32 %v2051, %v2242
        %v2321 = vadd.f32 %v2052, %v2247
        %v2322 = vadd.f32 %v2053, %v2252
        %v2323 = vadd.f32 %v2054, %v2257
        %v2324 = vadd.f32 %v2055, %v2262
        %v2325 = vadd.f32 %v2056, %v2267
        %v2326 = vadd.f32 %v2057, %v2272
        %v2327 = vadd.f32 %v2058, %v2277
        %v2328 = vadd.f32 %v2059, %v2282
        %v2329 = vadd.f32 %v2060, %v2287
        %v2330 = vadd.f32 %v2061, %v2292
        %v2331 = vadd.f32 %v2062, %v2297
        %v2333 = vsel %vm602, %v229, 0
        %2335 = vmatprep.subr.mxu0 0.0
        %2336 = vmatpush1.msra.mxu0 %v2333
        %2337 = vmatprep.subr.mxu0 0.0
        %2338 = vmatpush1.msra.mxu0 0.0
        %2339 = vmatprep.subr.mxu0 0.0
        %2340 = vmatpush1.msra.mxu0 0.0
        %2341 = vmatprep.subr.mxu0 0.0
        %2342 = vmatpush1.msra.mxu0 0.0
        %2343 = vmatprep.subr.mxu0 0.0
        %2344 = vmatpush1.msra.mxu0 0.0
        %2345 = vmatprep.subr.mxu0 0.0
        %2346 = vmatpush1.msra.mxu0 0.0
        %2347 = vmatprep.subr.mxu0 0.0
        %2348 = vmatpush1.msra.mxu0 0.0
        %2349 = vmatprep.subr.mxu0 0.0
        %2350 = vmatpush1.msra.mxu0 0.0
        %2351 = vmatprep.subr.mxu0 0.0
        %2352 = vmatpush1.msra.mxu0 0.0
        %2353 = vmatprep.subr.mxu0 0.0
        %2354 = vmatpush1.msra.mxu0 0.0
        %2355 = vmatprep.subr.mxu0 0.0
        %2356 = vmatpush1.msra.mxu0 0.0
        %2357 = vmatprep.subr.mxu0 0.0
        %2358 = vmatpush1.msra.mxu0 0.0
        %2359 = vmatprep.subr.mxu0 0.0
        %2360 = vmatpush1.msra.mxu0 0.0
        %2361 = vmatprep.subr.mxu0 0.0
        %2362 = vmatpush1.msra.mxu0 0.0
        %2363 = vmatprep.subr.mxu0 0.0
        %2364 = vmatpush1.msra.mxu0 0.0
        %2365 = vmatprep.subr.mxu0 0.0
        %2366 = vmatpush1.msra.mxu0 0.0
        %2367 = vmatprep.subr.mxu0 0.0
        %2368 = vmatpush1.msra.mxu0 0.0
        %2369 = vmatprep.subr.mxu0 0.0
        %2370 = vmatpush1.msra.mxu0 0.0
        %2371 = vmatprep.subr.mxu0 0.0
        %2372 = vmatpush1.msra.mxu0 0.0
        %2373 = vmatprep.subr.mxu0 0.0
        %2374 = vmatpush1.msra.mxu0 0.0
        %2375 = vmatprep.subr.mxu0 0.0
        %2376 = vmatpush1.msra.mxu0 0.0
        %2377 = vmatprep.subr.mxu0 0.0
        %2378 = vmatpush1.msra.mxu0 0.0
        %2379 = vmatprep.subr.mxu0 0.0
        %2380 = vmatpush1.msra.mxu0 0.0
        %2381 = vmatprep.subr.mxu0 0.0
        %2382 = vmatpush1.msra.mxu0 0.0
        %2383 = vmatprep.subr.mxu0 0.0
        %2384 = vmatpush1.msra.mxu0 0.0
        %2385 = vmatprep.subr.mxu0 0.0
        %2386 = vmatpush1.msra.mxu0 0.0
        %2387 = vmatprep.subr.mxu0 0.0
        %2388 = vmatpush1.msra.mxu0 0.0
        %2389 = vmatprep.subr.mxu0 0.0
        %2390 = vmatpush1.msra.mxu0 0.0
        %2391 = vmatprep.subr.mxu0 0.0
        %2392 = vmatpush1.msra.mxu0 0.0
        %2393 = vmatprep.subr.mxu0 0.0
        %2394 = vmatpush1.msra.mxu0 0.0
        %2395 = vmatprep.subr.mxu0 0.0
        %2396 = vmatpush1.msra.mxu0 0.0
        %2397 = vmatprep.subr.mxu0 0.0
        %2398 = vmatpush1.msra.mxu0 0.0
        %2399 = vmatprep.mubr.f32.mxu0 0.0
        %2400 = vmatmul.mubr.f32.gmra.mrb[0].mxu0 %v839
        %v2401 = vpop.f32.mrb[0].mxu0
        %v2402 = vadd.f32 0.0, %v2401
        %v2403 = vpop.f32.mrb[0].mxu0
        %2404 = vmatprep.mubr.f32.mxu0 0.0
        %2405 = vmatmul.mubr.f32.gmra.mrb[0].mxu0 %v841
        %v2406 = vpop.f32.mrb[0].mxu0
        %v2407 = vadd.f32 0.0, %v2406
        %v2408 = vpop.f32.mrb[0].mxu0
        %2409 = vmatprep.mubr.f32.mxu0 0.0
        %2410 = vmatmul.mubr.f32.gmra.mrb[0].mxu0 %v843
        %v2411 = vpop.f32.mrb[0].mxu0
        %v2412 = vadd.f32 0.0, %v2411
        %v2413 = vpop.f32.mrb[0].mxu0
        %2414 = vmatprep.mubr.f32.mxu0 0.0
        %2415 = vmatmul.mubr.f32.gmra.mrb[0].mxu0 %v845
        %v2416 = vpop.f32.mrb[0].mxu0
        %v2417 = vadd.f32 0.0, %v2416
        %v2418 = vpop.f32.mrb[0].mxu0
        %2419 = vmatprep.mubr.f32.mxu0 0.0
        %2420 = vmatmul.mubr.f32.gmra.mrb[0].mxu0 %v847
        %v2421 = vpop.f32.mrb[0].mxu0
        %v2422 = vadd.f32 0.0, %v2421
        %v2423 = vpop.f32.mrb[0].mxu0
        %2424 = vmatprep.mubr.f32.mxu0 0.0
        %2425 = vmatmul.mubr.f32.gmra.mrb[0].mxu0 %v849
        %v2426 = vpop.f32.mrb[0].mxu0
        %v2427 = vadd.f32 0.0, %v2426
        %v2428 = vpop.f32.mrb[0].mxu0
        %2429 = vmatprep.mubr.f32.mxu0 0.0
        %2430 = vmatmul.mubr.f32.gmra.mrb[0].mxu0 %v851
        %v2431 = vpop.f32.mrb[0].mxu0
        %v2432 = vadd.f32 0.0, %v2431
        %v2433 = vpop.f32.mrb[0].mxu0
        %2434 = vmatprep.mubr.f32.mxu0 0.0
        %2435 = vmatmul.mubr.f32.gmra.mrb[0].mxu0 %v853
        %v2436 = vpop.f32.mrb[0].mxu0
        %v2437 = vadd.f32 0.0, %v2436
        %v2438 = vpop.f32.mrb[0].mxu0
        %2439 = vmatprep.mubr.f32.mxu0 0.0
        %2440 = vmatmul.mubr.f32.gmra.mrb[0].mxu0 %v855
        %v2441 = vpop.f32.mrb[0].mxu0
        %v2442 = vadd.f32 0.0, %v2441
        %v2443 = vpop.f32.mrb[0].mxu0
        %2444 = vmatprep.mubr.f32.mxu0 0.0
        %2445 = vmatmul.mubr.f32.gmra.mrb[0].mxu0 %v857
        %v2446 = vpop.f32.mrb[0].mxu0
        %v2447 = vadd.f32 0.0, %v2446
        %v2448 = vpop.f32.mrb[0].mxu0
        %2449 = vmatprep.mubr.f32.mxu0 0.0
        %2450 = vmatmul.mubr.f32.gmra.mrb[0].mxu0 %v859
        %v2451 = vpop.f32.mrb[0].mxu0
        %v2452 = vadd.f32 0.0, %v2451
        %v2453 = vpop.f32.mrb[0].mxu0
        %2454 = vmatprep.mubr.f32.mxu0 0.0
        %2455 = vmatmul.mubr.f32.gmra.mrb[0].mxu0 %v861
        %v2456 = vpop.f32.mrb[0].mxu0
        %v2457 = vadd.f32 0.0, %v2456
        %v2458 = vpop.f32.mrb[0].mxu0
        %2459 = vmatprep.mubr.f32.mxu0 0.0
        %2460 = vmatmul.mubr.f32.gmra.mrb[0].mxu0 %v863
        %v2461 = vpop.f32.mrb[0].mxu0
        %v2462 = vadd.f32 0.0, %v2461
        %v2463 = vpop.f32.mrb[0].mxu0
        %2464 = vmatprep.mubr.f32.mxu0 0.0
        %2465 = vmatmul.mubr.f32.gmra.mrb[0].mxu0 %v865
        %v2466 = vpop.f32.mrb[0].mxu0
        %v2467 = vadd.f32 0.0, %v2466
        %v2468 = vpop.f32.mrb[0].mxu0
        %2469 = vmatprep.mubr.f32.mxu0 0.0
        %2470 = vmatmul.mubr.f32.gmra.mrb[0].mxu0 %v867
        %v2471 = vpop.f32.mrb[0].mxu0
        %v2472 = vadd.f32 0.0, %v2471
        %v2473 = vpop.f32.mrb[0].mxu0
        %2474 = vmatprep.mubr.f32.mxu0 0.0
        %2475 = vmatmul.mubr.f32.gmra.mrb[0].mxu0 %v869
        %v2476 = vpop.f32.mrb[0].mxu0
        %v2477 = vadd.f32 0.0, %v2476
        %v2478 = vpop.f32.mrb[0].mxu0
        %2479 = vmatprep.mubr.f32.mxu0 0.0
        %2480 = vmatmul.mubr.f32.gmra.mrb[0].mxu0 %v871
        %v2481 = vpop.f32.mrb[0].mxu0
        %v2482 = vadd.f32 0.0, %v2481
        %v2483 = vpop.f32.mrb[0].mxu0
        %2484 = vmatprep.mubr.f32.mxu0 0.0
        %2485 = vmatmul.mubr.f32.gmra.mrb[0].mxu0 %v873
        %v2486 = vpop.f32.mrb[0].mxu0
        %v2487 = vadd.f32 0.0, %v2486
        %v2488 = vpop.f32.mrb[0].mxu0
        %2489 = vmatprep.mubr.f32.mxu0 0.0
        %2490 = vmatmul.mubr.f32.gmra.mrb[0].mxu0 %v875
        %v2491 = vpop.f32.mrb[0].mxu0
        %v2492 = vadd.f32 0.0, %v2491
        %v2493 = vpop.f32.mrb[0].mxu0
        %2494 = vmatprep.mubr.f32.mxu0 0.0
        %2495 = vmatmul.mubr.f32.gmra.mrb[0].mxu0 %v877
        %v2496 = vpop.f32.mrb[0].mxu0
        %v2497 = vadd.f32 0.0, %v2496
        %v2498 = vpop.f32.mrb[0].mxu0
        %2499 = vmatprep.mubr.f32.mxu0 0.0
        %2500 = vmatmul.mubr.f32.gmra.mrb[0].mxu0 %v879
        %v2501 = vpop.f32.mrb[0].mxu0
        %v2502 = vadd.f32 0.0, %v2501
        %v2503 = vpop.f32.mrb[0].mxu0
        %2504 = vmatprep.mubr.f32.mxu0 0.0
        %2505 = vmatmul.mubr.f32.gmra.mrb[0].mxu0 %v881
        %v2506 = vpop.f32.mrb[0].mxu0
        %v2507 = vadd.f32 0.0, %v2506
        %v2508 = vpop.f32.mrb[0].mxu0
        %2509 = vmatprep.mubr.f32.mxu0 0.0
        %2510 = vmatmul.mubr.f32.gmra.mrb[0].mxu0 %v883
        %v2511 = vpop.f32.mrb[0].mxu0
        %v2512 = vadd.f32 0.0, %v2511
        %v2513 = vpop.f32.mrb[0].mxu0
        %2514 = vmatprep.mubr.f32.mxu0 0.0
        %2515 = vmatmul.mubr.f32.gmra.mrb[0].mxu0 %v885
        %v2516 = vpop.f32.mrb[0].mxu0
        %v2517 = vadd.f32 0.0, %v2516
        %v2518 = vpop.f32.mrb[0].mxu0
        %2519 = vmatprep.mubr.f32.mxu0 0.0
        %2520 = vmatmul.mubr.f32.gmra.mrb[0].mxu0 %v887
        %v2521 = vpop.f32.mrb[0].mxu0
        %v2522 = vadd.f32 0.0, %v2521
        %v2523 = vpop.f32.mrb[0].mxu0
        %2524 = vmatprep.mubr.f32.mxu0 0.0
        %2525 = vmatmul.mubr.f32.gmra.mrb[0].mxu0 %v889
        %v2526 = vpop.f32.mrb[0].mxu0
        %v2527 = vadd.f32 0.0, %v2526
        %v2528 = vpop.f32.mrb[0].mxu0
        %2529 = vmatprep.mubr.f32.mxu0 0.0
        %2530 = vmatmul.mubr.f32.gmra.mrb[0].mxu0 %v891
        %v2531 = vpop.f32.mrb[0].mxu0
        %v2532 = vadd.f32 0.0, %v2531
        %v2533 = vpop.f32.mrb[0].mxu0
        %2534 = vmatprep.mubr.f32.mxu0 0.0
        %2535 = vmatmul.mubr.f32.gmra.mrb[0].mxu0 %v893
        %v2536 = vpop.f32.mrb[0].mxu0
        %v2537 = vadd.f32 0.0, %v2536
        %v2538 = vpop.f32.mrb[0].mxu0
        %2539 = vmatprep.mubr.f32.mxu0 0.0
        %2540 = vmatmul.mubr.f32.gmra.mrb[0].mxu0 %v1529
        %v2541 = vpop.f32.mrb[0].mxu0
        %v2542 = vadd.f32 0.0, %v2541
        %v2543 = vpop.f32.mrb[0].mxu0
        %2544 = vmatprep.mubr.f32.mxu0 0.0
        %2545 = vmatmul.mubr.f32.gmra.mrb[0].mxu0 %v1531
        %v2546 = vpop.f32.mrb[0].mxu0
        %v2547 = vadd.f32 0.0, %v2546
        %v2548 = vpop.f32.mrb[0].mxu0
        %2549 = vmatprep.mubr.f32.mxu0 0.0
        %2550 = vmatmul.mubr.f32.gmra.mrb[0].mxu0 %v831
        %v2551 = vpop.f32.mrb[0].mxu0
        %v2552 = vadd.f32 0.0, %v2551
        %v2553 = vpop.f32.mrb[0].mxu0
        %2554 = vmatprep.mubr.f32.mxu0 0.0
        %2555 = vmatmul.mubr.f32.gmra.mrb[0].mxu0 %v833
        %v2556 = vpop.f32.mrb[0].mxu0
        %v2557 = vadd.f32 0.0, %v2556
        %v2558 = vpop.f32.mrb[0].mxu0
        %2559 = vdwg.mxu0
        %v2560 = vadd.f32 %v2300, %v2402
        %v2561 = vadd.f32 %v2301, %v2407
        %v2562 = vadd.f32 %v2302, %v2412
        %v2563 = vadd.f32 %v2303, %v2417
        %v2564 = vadd.f32 %v2304, %v2422
        %v2565 = vadd.f32 %v2305, %v2427
        %v2566 = vadd.f32 %v2306, %v2432
        %v2567 = vadd.f32 %v2307, %v2437
        %v2568 = vadd.f32 %v2308, %v2442
        %v2569 = vadd.f32 %v2309, %v2447
        %v2570 = vadd.f32 %v2310, %v2452
        %v2571 = vadd.f32 %v2311, %v2457
        %v2572 = vadd.f32 %v2312, %v2462
        %v2573 = vadd.f32 %v2313, %v2467
        %v2574 = vadd.f32 %v2314, %v2472
        %v2575 = vadd.f32 %v2315, %v2477
        %v2576 = vadd.f32 %v2316, %v2482
        %v2577 = vadd.f32 %v2317, %v2487
        %v2578 = vadd.f32 %v2318, %v2492
        %v2579 = vadd.f32 %v2319, %v2497
        %v2580 = vadd.f32 %v2320, %v2502
        %v2581 = vadd.f32 %v2321, %v2507
        %v2582 = vadd.f32 %v2322, %v2512
        %v2583 = vadd.f32 %v2323, %v2517
        %v2584 = vadd.f32 %v2324, %v2522
        %v2585 = vadd.f32 %v2325, %v2527
        %v2586 = vadd.f32 %v2326, %v2532
        %v2587 = vadd.f32 %v2327, %v2537
        %v2588 = vadd.f32 %v2328, %v2542
        %v2589 = vadd.f32 %v2329, %v2547
        %v2590 = vadd.f32 %v2330, %v2552
        %v2591 = vadd.f32 %v2331, %v2557
        %v2593 = vsel %vm602, %v230, 0
        %2595 = vmatprep.subr.mxu0 0.0
        %2596 = vmatpush1.msra.mxu0 %v2593
        %2597 = vmatprep.subr.mxu0 0.0
        %2598 = vmatpush1.msra.mxu0 0.0
        %2599 = vmatprep.subr.mxu0 0.0
        %2600 = vmatpush1.msra.mxu0 0.0
        %2601 = vmatprep.subr.mxu0 0.0
        %2602 = vmatpush1.msra.mxu0 0.0
        %2603 = vmatprep.subr.mxu0 0.0
        %2604 = vmatpush1.msra.mxu0 0.0
        %2605 = vmatprep.subr.mxu0 0.0
        %2606 = vmatpush1.msra.mxu0 0.0
        %2607 = vmatprep.subr.mxu0 0.0
        %2608 = vmatpush1.msra.mxu0 0.0
        %2609 = vmatprep.subr.mxu0 0.0
        %2610 = vmatpush1.msra.mxu0 0.0
        %2611 = vmatprep.subr.mxu0 0.0
        %2612 = vmatpush1.msra.mxu0 0.0
        %2613 = vmatprep.subr.mxu0 0.0
        %2614 = vmatpush1.msra.mxu0 0.0
        %2615 = vmatprep.subr.mxu0 0.0
        %2616 = vmatpush1.msra.mxu0 0.0
        %2617 = vmatprep.subr.mxu0 0.0
        %2618 = vmatpush1.msra.mxu0 0.0
        %2619 = vmatprep.subr.mxu0 0.0
        %2620 = vmatpush1.msra.mxu0 0.0
        %2621 = vmatprep.subr.mxu0 0.0
        %2622 = vmatpush1.msra.mxu0 0.0
        %2623 = vmatprep.subr.mxu0 0.0
        %2624 = vmatpush1.msra.mxu0 0.0
        %2625 = vmatprep.subr.mxu0 0.0
        %2626 = vmatpush1.msra.mxu0 0.0
        %2627 = vmatprep.subr.mxu0 0.0
        %2628 = vmatpush1.msra.mxu0 0.0
        %2629 = vmatprep.subr.mxu0 0.0
        %2630 = vmatpush1.msra.mxu0 0.0
        %2631 = vmatprep.subr.mxu0 0.0
        %2632 = vmatpush1.msra.mxu0 0.0
        %2633 = vmatprep.subr.mxu0 0.0
        %2634 = vmatpush1.msra.mxu0 0.0
        %2635 = vmatprep.subr.mxu0 0.0
        %2636 = vmatpush1.msra.mxu0 0.0
        %2637 = vmatprep.subr.mxu0 0.0
        %2638 = vmatpush1.msra.mxu0 0.0
        %2639 = vmatprep.subr.mxu0 0.0
        %2640 = vmatpush1.msra.mxu0 0.0
        %2641 = vmatprep.subr.mxu0 0.0
        %2642 = vmatpush1.msra.mxu0 0.0
        %2643 = vmatprep.subr.mxu0 0.0
        %2644 = vmatpush1.msra.mxu0 0.0
        %2645 = vmatprep.subr.mxu0 0.0
        %2646 = vmatpush1.msra.mxu0 0.0
        %2647 = vmatprep.subr.mxu0 0.0
        %2648 = vmatpush1.msra.mxu0 0.0
        %2649 = vmatprep.subr.mxu0 0.0
        %2650 = vmatpush1.msra.mxu0 0.0
        %2651 = vmatprep.subr.mxu0 0.0
        %2652 = vmatpush1.msra.mxu0 0.0
        %2653 = vmatprep.subr.mxu0 0.0
        %2654 = vmatpush1.msra.mxu0 0.0
        %2655 = vmatprep.subr.mxu0 0.0
        %2656 = vmatpush1.msra.mxu0 0.0
        %2657 = vmatprep.subr.mxu0 0.0
        %2658 = vmatpush1.msra.mxu0 0.0
        %2659 = vmatprep.mubr.f32.mxu0 0.0
        %2660 = vmatmul.mubr.f32.gmra.mrb[0].mxu0 %v546
        %v2661 = vpop.f32.mrb[0].mxu0
        %v2662 = vadd.f32 0.0, %v2661
        %v2663 = vpop.f32.mrb[0].mxu0
        %2664 = vmatprep.mubr.f32.mxu0 0.0
        %2665 = vmatmul.mubr.f32.gmra.mrb[0].mxu0 %v548
        %v2666 = vpop.f32.mrb[0].mxu0
        %v2667 = vadd.f32 0.0, %v2666
        %v2668 = vpop.f32.mrb[0].mxu0
        %2669 = vmatprep.mubr.f32.mxu0 0.0
        %2670 = vmatmul.mubr.f32.gmra.mrb[0].mxu0 %v550
        %v2671 = vpop.f32.mrb[0].mxu0
        %v2672 = vadd.f32 0.0, %v2671
        %v2673 = vpop.f32.mrb[0].mxu0
        %2674 = vmatprep.mubr.f32.mxu0 0.0
        %2675 = vmatmul.mubr.f32.gmra.mrb[0].mxu0 %v552
        %v2676 = vpop.f32.mrb[0].mxu0
        %v2677 = vadd.f32 0.0, %v2676
        %v2678 = vpop.f32.mrb[0].mxu0
        %2679 = vmatprep.mubr.f32.mxu0 0.0
        %2680 = vmatmul.mubr.f32.gmra.mrb[0].mxu0 %v554
        %v2681 = vpop.f32.mrb[0].mxu0
        %v2682 = vadd.f32 0.0, %v2681
        %v2683 = vpop.f32.mrb[0].mxu0
        %2684 = vmatprep.mubr.f32.mxu0 0.0
        %2685 = vmatmul.mubr.f32.gmra.mrb[0].mxu0 %v556
        %v2686 = vpop.f32.mrb[0].mxu0
        %v2687 = vadd.f32 0.0, %v2686
        %v2688 = vpop.f32.mrb[0].mxu0
        %2689 = vmatprep.mubr.f32.mxu0 0.0
        %2690 = vmatmul.mubr.f32.gmra.mrb[0].mxu0 %v558
        %v2691 = vpop.f32.mrb[0].mxu0
        %v2692 = vadd.f32 0.0, %v2691
        %v2693 = vpop.f32.mrb[0].mxu0
        %2694 = vmatprep.mubr.f32.mxu0 0.0
        %2695 = vmatmul.mubr.f32.gmra.mrb[0].mxu0 %v560
        %v2696 = vpop.f32.mrb[0].mxu0
        %v2697 = vadd.f32 0.0, %v2696
        %v2698 = vpop.f32.mrb[0].mxu0
        %2699 = vmatprep.mubr.f32.mxu0 0.0
        %2700 = vmatmul.mubr.f32.gmra.mrb[0].mxu0 %v562
        %v2701 = vpop.f32.mrb[0].mxu0
        %v2702 = vadd.f32 0.0, %v2701
        %v2703 = vpop.f32.mrb[0].mxu0
        %2704 = vmatprep.mubr.f32.mxu0 0.0
        %2705 = vmatmul.mubr.f32.gmra.mrb[0].mxu0 %v564
        %v2706 = vpop.f32.mrb[0].mxu0
        %v2707 = vadd.f32 0.0, %v2706
        %v2708 = vpop.f32.mrb[0].mxu0
        %2709 = vmatprep.mubr.f32.mxu0 0.0
        %2710 = vmatmul.mubr.f32.gmra.mrb[0].mxu0 %v566
        %v2711 = vpop.f32.mrb[0].mxu0
        %v2712 = vadd.f32 0.0, %v2711
        %v2713 = vpop.f32.mrb[0].mxu0
        %2714 = vmatprep.mubr.f32.mxu0 0.0
        %2715 = vmatmul.mubr.f32.gmra.mrb[0].mxu0 %v568
        %v2716 = vpop.f32.mrb[0].mxu0
        %v2717 = vadd.f32 0.0, %v2716
        %v2718 = vpop.f32.mrb[0].mxu0
        %2719 = vmatprep.mubr.f32.mxu0 0.0
        %2720 = vmatmul.mubr.f32.gmra.mrb[0].mxu0 %v570
        %v2721 = vpop.f32.mrb[0].mxu0
        %v2722 = vadd.f32 0.0, %v2721
        %v2723 = vpop.f32.mrb[0].mxu0
        %2724 = vmatprep.mubr.f32.mxu0 0.0
        %2725 = vmatmul.mubr.f32.gmra.mrb[0].mxu0 %v572
        %v2726 = vpop.f32.mrb[0].mxu0
        %v2727 = vadd.f32 0.0, %v2726
        %v2728 = vpop.f32.mrb[0].mxu0
        %2729 = vmatprep.mubr.f32.mxu0 0.0
        %2730 = vmatmul.mubr.f32.gmra.mrb[0].mxu0 %v574
        %v2731 = vpop.f32.mrb[0].mxu0
        %v2732 = vadd.f32 0.0, %v2731
        %v2733 = vpop.f32.mrb[0].mxu0
        %2734 = vmatprep.mubr.f32.mxu0 0.0
        %2735 = vmatmul.mubr.f32.gmra.mrb[0].mxu0 %v576
        %v2736 = vpop.f32.mrb[0].mxu0
        %v2737 = vadd.f32 0.0, %v2736
        %v2738 = vpop.f32.mrb[0].mxu0
        %2739 = vmatprep.mubr.f32.mxu0 0.0
        %2740 = vmatmul.mubr.f32.gmra.mrb[0].mxu0 %v578
        %v2741 = vpop.f32.mrb[0].mxu0
        %v2742 = vadd.f32 0.0, %v2741
        %v2743 = vpop.f32.mrb[0].mxu0
        %2744 = vmatprep.mubr.f32.mxu0 0.0
        %2745 = vmatmul.mubr.f32.gmra.mrb[0].mxu0 %v580
        %v2746 = vpop.f32.mrb[0].mxu0
        %v2747 = vadd.f32 0.0, %v2746
        %v2748 = vpop.f32.mrb[0].mxu0
        %2749 = vmatprep.mubr.f32.mxu0 0.0
        %2750 = vmatmul.mubr.f32.gmra.mrb[0].mxu0 %v582
        %v2751 = vpop.f32.mrb[0].mxu0
        %v2752 = vadd.f32 0.0, %v2751
        %v2753 = vpop.f32.mrb[0].mxu0
        %2754 = vmatprep.mubr.f32.mxu0 0.0
        %2755 = vmatmul.mubr.f32.gmra.mrb[0].mxu0 %v584
        %v2756 = vpop.f32.mrb[0].mxu0
        %v2757 = vadd.f32 0.0, %v2756
        %v2758 = vpop.f32.mrb[0].mxu0
        %2759 = vmatprep.mubr.f32.mxu0 0.0
        %2760 = vmatmul.mubr.f32.gmra.mrb[0].mxu0 %v586
        %v2761 = vpop.f32.mrb[0].mxu0
        %v2762 = vadd.f32 0.0, %v2761
        %v2763 = vpop.f32.mrb[0].mxu0
        %2764 = vmatprep.mubr.f32.mxu0 0.0
        %2765 = vmatmul.mubr.f32.gmra.mrb[0].mxu0 %v588
        %v2766 = vpop.f32.mrb[0].mxu0
        %v2767 = vadd.f32 0.0, %v2766
        %v2768 = vpop.f32.mrb[0].mxu0
        %2769 = vmatprep.mubr.f32.mxu0 0.0
        %2770 = vmatmul.mubr.f32.gmra.mrb[0].mxu0 %v590
        %v2771 = vpop.f32.mrb[0].mxu0
        %v2772 = vadd.f32 0.0, %v2771
        %v2773 = vpop.f32.mrb[0].mxu0
        %2774 = vmatprep.mubr.f32.mxu0 0.0
        %2775 = vmatmul.mubr.f32.gmra.mrb[0].mxu0 %v592
        %v2776 = vpop.f32.mrb[0].mxu0
        %v2777 = vadd.f32 0.0, %v2776
        %v2778 = vpop.f32.mrb[0].mxu0
        %2779 = vmatprep.mubr.f32.mxu0 0.0
        %2780 = vmatmul.mubr.f32.gmra.mrb[0].mxu0 %v594
        %v2781 = vpop.f32.mrb[0].mxu0
        %v2782 = vadd.f32 0.0, %v2781
        %v2783 = vpop.f32.mrb[0].mxu0
        %2784 = vmatprep.mubr.f32.mxu0 0.0
        %2785 = vmatmul.mubr.f32.gmra.mrb[0].mxu0 %v596
        %v2786 = vpop.f32.mrb[0].mxu0
        %v2787 = vadd.f32 0.0, %v2786
        %v2788 = vpop.f32.mrb[0].mxu0
        %2789 = vmatprep.mubr.f32.mxu0 0.0
        %2790 = vmatmul.mubr.f32.gmra.mrb[0].mxu0 %v598
        %v2791 = vpop.f32.mrb[0].mxu0
        %v2792 = vadd.f32 0.0, %v2791
        %v2793 = vpop.f32.mrb[0].mxu0
        %2794 = vmatprep.mubr.f32.mxu0 0.0
        %2795 = vmatmul.mubr.f32.gmra.mrb[0].mxu0 %v600
        %v2796 = vpop.f32.mrb[0].mxu0
        %v2797 = vadd.f32 0.0, %v2796
        %v2798 = vpop.f32.mrb[0].mxu0
        %2799 = vmatprep.mubr.f32.mxu0 0.0
        %2800 = vmatmul.mubr.f32.gmra.mrb[0].mxu0 %v1799
        %v2801 = vpop.f32.mrb[0].mxu0
        %v2802 = vadd.f32 0.0, %v2801
        %v2803 = vpop.f32.mrb[0].mxu0
        %2804 = vmatprep.mubr.f32.mxu0 0.0
        %2805 = vmatmul.mubr.f32.gmra.mrb[0].mxu0 %v1801
        %v2806 = vpop.f32.mrb[0].mxu0
        %v2807 = vadd.f32 0.0, %v2806
        %v2808 = vpop.f32.mrb[0].mxu0
        %2809 = vmatprep.mubr.f32.mxu0 0.0
        %2810 = vmatmul.mubr.f32.gmra.mrb[0].mxu0 %v538
        %v2811 = vpop.f32.mrb[0].mxu0
        %v2812 = vadd.f32 0.0, %v2811
        %v2813 = vpop.f32.mrb[0].mxu0
        %2814 = vmatprep.mubr.f32.mxu0 0.0
        %2815 = vmatmul.mubr.f32.gmra.mrb[0].mxu0 %v540
        %v2816 = vpop.f32.mrb[0].mxu0
        %v2817 = vadd.f32 0.0, %v2816
        %v2818 = vpop.f32.mrb[0].mxu0
        %2819 = vdwg.mxu0
        %v2820 = vadd.f32 %v2560, %v2662
        %v2821 = vadd.f32 %v2561, %v2667
        %v2822 = vadd.f32 %v2562, %v2672
        %v2823 = vadd.f32 %v2563, %v2677
        %v2824 = vadd.f32 %v2564, %v2682
        %v2825 = vadd.f32 %v2565, %v2687
        %v2826 = vadd.f32 %v2566, %v2692
        %v2827 = vadd.f32 %v2567, %v2697
        %v2828 = vadd.f32 %v2568, %v2702
        %v2829 = vadd.f32 %v2569, %v2707
        %v2830 = vadd.f32 %v2570, %v2712
        %v2831 = vadd.f32 %v2571, %v2717
        %v2832 = vadd.f32 %v2572, %v2722
        %v2833 = vadd.f32 %v2573, %v2727
        %v2834 = vadd.f32 %v2574, %v2732
        %v2835 = vadd.f32 %v2575, %v2737
        %v2836 = vadd.f32 %v2576, %v2742
        %v2837 = vadd.f32 %v2577, %v2747
        %v2838 = vadd.f32 %v2578, %v2752
        %v2839 = vadd.f32 %v2579, %v2757
        %v2840 = vadd.f32 %v2580, %v2762
        %v2841 = vadd.f32 %v2581, %v2767
        %v2842 = vadd.f32 %v2582, %v2772
        %v2843 = vadd.f32 %v2583, %v2777
        %v2844 = vadd.f32 %v2584, %v2782
        %v2845 = vadd.f32 %v2585, %v2787
        %v2846 = vadd.f32 %v2586, %v2792
        %v2847 = vadd.f32 %v2587, %v2797
        %v2848 = vadd.f32 %v2588, %v2802
        %v2849 = vadd.f32 %v2589, %v2807
        %v2850 = vadd.f32 %v2590, %v2812
        %v2851 = vadd.f32 %v2591, %v2817
        %v2853 = vsel %vm602, %v231, 0
        %2855 = vmatprep.subr.mxu0 0.0
        %2856 = vmatpush1.msra.mxu0 %v2853
        %2857 = vmatprep.subr.mxu0 0.0
        %2858 = vmatpush1.msra.mxu0 0.0
        %2859 = vmatprep.subr.mxu0 0.0
        %2860 = vmatpush1.msra.mxu0 0.0
        %2861 = vmatprep.subr.mxu0 0.0
        %2862 = vmatpush1.msra.mxu0 0.0
        %2863 = vmatprep.subr.mxu0 0.0
        %2864 = vmatpush1.msra.mxu0 0.0
        %2865 = vmatprep.subr.mxu0 0.0
        %2866 = vmatpush1.msra.mxu0 0.0
        %2867 = vmatprep.subr.mxu0 0.0
        %2868 = vmatpush1.msra.mxu0 0.0
        %2869 = vmatprep.subr.mxu0 0.0
        %2870 = vmatpush1.msra.mxu0 0.0
        %2871 = vmatprep.subr.mxu0 0.0
        %2872 = vmatpush1.msra.mxu0 0.0
        %2873 = vmatprep.subr.mxu0 0.0
        %2874 = vmatpush1.msra.mxu0 0.0
        %2875 = vmatprep.subr.mxu0 0.0
        %2876 = vmatpush1.msra.mxu0 0.0
        %2877 = vmatprep.subr.mxu0 0.0
        %2878 = vmatpush1.msra.mxu0 0.0
        %2879 = vmatprep.subr.mxu0 0.0
        %2880 = vmatpush1.msra.mxu0 0.0
        %2881 = vmatprep.subr.mxu0 0.0
        %2882 = vmatpush1.msra.mxu0 0.0
        %2883 = vmatprep.subr.mxu0 0.0
        %2884 = vmatpush1.msra.mxu0 0.0
        %2885 = vmatprep.subr.mxu0 0.0
        %2886 = vmatpush1.msra.mxu0 0.0
        %2887 = vmatprep.subr.mxu0 0.0
        %2888 = vmatpush1.msra.mxu0 0.0
        %2889 = vmatprep.subr.mxu0 0.0
        %2890 = vmatpush1.msra.mxu0 0.0
        %2891 = vmatprep.subr.mxu0 0.0
        %2892 = vmatpush1.msra.mxu0 0.0
        %2893 = vmatprep.subr.mxu0 0.0
        %2894 = vmatpush1.msra.mxu0 0.0
        %2895 = vmatprep.subr.mxu0 0.0
        %2896 = vmatpush1.msra.mxu0 0.0
        %2897 = vmatprep.subr.mxu0 0.0
        %2898 = vmatpush1.msra.mxu0 0.0
        %2899 = vmatprep.subr.mxu0 0.0
        %2900 = vmatpush1.msra.mxu0 0.0
        %2901 = vmatprep.subr.mxu0 0.0
        %2902 = vmatpush1.msra.mxu0 0.0
        %2903 = vmatprep.subr.mxu0 0.0
        %2904 = vmatpush1.msra.mxu0 0.0
        %2905 = vmatprep.subr.mxu0 0.0
        %2906 = vmatpush1.msra.mxu0 0.0
        %2907 = vmatprep.subr.mxu0 0.0
        %2908 = vmatpush1.msra.mxu0 0.0
        %2909 = vmatprep.subr.mxu0 0.0
        %2910 = vmatpush1.msra.mxu0 0.0
        %2911 = vmatprep.subr.mxu0 0.0
        %2912 = vmatpush1.msra.mxu0 0.0
        %2913 = vmatprep.subr.mxu0 0.0
        %2914 = vmatpush1.msra.mxu0 0.0
        %2915 = vmatprep.subr.mxu0 0.0
        %2916 = vmatpush1.msra.mxu0 0.0
        %2917 = vmatprep.subr.mxu0 0.0
        %2918 = vmatpush1.msra.mxu0 0.0
        %2919 = vmatprep.mubr.f32.mxu0 0.0
        %2920 = vmatmul.mubr.f32.gmra.mrb[0].mxu0 %v1212
        %v2921 = vpop.f32.mrb[0].mxu0
        %v2922 = vadd.f32 0.0, %v2921
        %v2923 = vpop.f32.mrb[0].mxu0
        %2924 = vmatprep.mubr.f32.mxu0 0.0
        %2925 = vmatmul.mubr.f32.gmra.mrb[0].mxu0 %v1214
        %v2926 = vpop.f32.mrb[0].mxu0
        %v2927 = vadd.f32 0.0, %v2926
        %v2928 = vpop.f32.mrb[0].mxu0
        %2929 = vmatprep.mubr.f32.mxu0 0.0
        %2930 = vmatmul.mubr.f32.gmra.mrb[0].mxu0 %v1216
        %v2931 = vpop.f32.mrb[0].mxu0
        %v2932 = vadd.f32 0.0, %v2931
        %v2933 = vpop.f32.mrb[0].mxu0
        %2934 = vmatprep.mubr.f32.mxu0 0.0
        %2935 = vmatmul.mubr.f32.gmra.mrb[0].mxu0 %v1218
        %v2936 = vpop.f32.mrb[0].mxu0
        %v2937 = vadd.f32 0.0, %v2936
        %v2938 = vpop.f32.mrb[0].mxu0
        %2939 = vmatprep.mubr.f32.mxu0 0.0
        %2940 = vmatmul.mubr.f32.gmra.mrb[0].mxu0 %v1220
        %v2941 = vpop.f32.mrb[0].mxu0
        %v2942 = vadd.f32 0.0, %v2941
        %v2943 = vpop.f32.mrb[0].mxu0
        %2944 = vmatprep.mubr.f32.mxu0 0.0
        %2945 = vmatmul.mubr.f32.gmra.mrb[0].mxu0 %v1222
        %v2946 = vpop.f32.mrb[0].mxu0
        %v2947 = vadd.f32 0.0, %v2946
        %v2948 = vpop.f32.mrb[0].mxu0
        %2949 = vmatprep.mubr.f32.mxu0 0.0
        %2950 = vmatmul.mubr.f32.gmra.mrb[0].mxu0 %v1224
        %v2951 = vpop.f32.mrb[0].mxu0
        %v2952 = vadd.f32 0.0, %v2951
        %v2953 = vpop.f32.mrb[0].mxu0
        %2954 = vmatprep.mubr.f32.mxu0 0.0
        %2955 = vmatmul.mubr.f32.gmra.mrb[0].mxu0 %v1226
        %v2956 = vpop.f32.mrb[0].mxu0
        %v2957 = vadd.f32 0.0, %v2956
        %v2958 = vpop.f32.mrb[0].mxu0
        %2959 = vmatprep.mubr.f32.mxu0 0.0
        %2960 = vmatmul.mubr.f32.gmra.mrb[0].mxu0 %v1228
        %v2961 = vpop.f32.mrb[0].mxu0
        %v2962 = vadd.f32 0.0, %v2961
        %v2963 = vpop.f32.mrb[0].mxu0
        %2964 = vmatprep.mubr.f32.mxu0 0.0
        %2965 = vmatmul.mubr.f32.gmra.mrb[0].mxu0 %v1230
        %v2966 = vpop.f32.mrb[0].mxu0
        %v2967 = vadd.f32 0.0, %v2966
        %v2968 = vpop.f32.mrb[0].mxu0
        %2969 = vmatprep.mubr.f32.mxu0 0.0
        %2970 = vmatmul.mubr.f32.gmra.mrb[0].mxu0 %v1232
        %v2971 = vpop.f32.mrb[0].mxu0
        %v2972 = vadd.f32 0.0, %v2971
        %v2973 = vpop.f32.mrb[0].mxu0
        %2974 = vmatprep.mubr.f32.mxu0 0.0
        %2975 = vmatmul.mubr.f32.gmra.mrb[0].mxu0 %v1234
        %v2976 = vpop.f32.mrb[0].mxu0
        %v2977 = vadd.f32 0.0, %v2976
        %v2978 = vpop.f32.mrb[0].mxu0
        %2979 = vmatprep.mubr.f32.mxu0 0.0
        %2980 = vmatmul.mubr.f32.gmra.mrb[0].mxu0 %v1236
        %v2981 = vpop.f32.mrb[0].mxu0
        %v2982 = vadd.f32 0.0, %v2981
        %v2983 = vpop.f32.mrb[0].mxu0
        %2984 = vmatprep.mubr.f32.mxu0 0.0
        %2985 = vmatmul.mubr.f32.gmra.mrb[0].mxu0 %v1238
        %v2986 = vpop.f32.mrb[0].mxu0
        %v2987 = vadd.f32 0.0, %v2986
        %v2988 = vpop.f32.mrb[0].mxu0
        %2989 = vmatprep.mubr.f32.mxu0 0.0
        %2990 = vmatmul.mubr.f32.gmra.mrb[0].mxu0 %v1240
        %v2991 = vpop.f32.mrb[0].mxu0
        %v2992 = vadd.f32 0.0, %v2991
        %v2993 = vpop.f32.mrb[0].mxu0
        %2994 = vmatprep.mubr.f32.mxu0 0.0
        %2995 = vmatmul.mubr.f32.gmra.mrb[0].mxu0 %v1242
        %v2996 = vpop.f32.mrb[0].mxu0
        %v2997 = vadd.f32 0.0, %v2996
        %v2998 = vpop.f32.mrb[0].mxu0
        %2999 = vmatprep.mubr.f32.mxu0 0.0
        %3000 = vmatmul.mubr.f32.gmra.mrb[0].mxu0 %v1244
        %v3001 = vpop.f32.mrb[0].mxu0
        %v3002 = vadd.f32 0.0, %v3001
        %v3003 = vpop.f32.mrb[0].mxu0
        %3004 = vmatprep.mubr.f32.mxu0 0.0
        %3005 = vmatmul.mubr.f32.gmra.mrb[0].mxu0 %v1246
        %v3006 = vpop.f32.mrb[0].mxu0
        %v3007 = vadd.f32 0.0, %v3006
        %v3008 = vpop.f32.mrb[0].mxu0
        %3009 = vmatprep.mubr.f32.mxu0 0.0
        %3010 = vmatmul.mubr.f32.gmra.mrb[0].mxu0 %v1248
        %v3011 = vpop.f32.mrb[0].mxu0
        %v3012 = vadd.f32 0.0, %v3011
        %v3013 = vpop.f32.mrb[0].mxu0
        %3014 = vmatprep.mubr.f32.mxu0 0.0
        %3015 = vmatmul.mubr.f32.gmra.mrb[0].mxu0 %v1250
        %v3016 = vpop.f32.mrb[0].mxu0
        %v3017 = vadd.f32 0.0, %v3016
        %v3018 = vpop.f32.mrb[0].mxu0
        %3019 = vmatprep.mubr.f32.mxu0 0.0
        %3020 = vmatmul.mubr.f32.gmra.mrb[0].mxu0 %v1252
        %v3021 = vpop.f32.mrb[0].mxu0
        %v3022 = vadd.f32 0.0, %v3021
        %v3023 = vpop.f32.mrb[0].mxu0
        %3024 = vmatprep.mubr.f32.mxu0 0.0
        %3025 = vmatmul.mubr.f32.gmra.mrb[0].mxu0 %v1254
        %v3026 = vpop.f32.mrb[0].mxu0
        %v3027 = vadd.f32 0.0, %v3026
        %v3028 = vpop.f32.mrb[0].mxu0
        %3029 = vmatprep.mubr.f32.mxu0 0.0
        %3030 = vmatmul.mubr.f32.gmra.mrb[0].mxu0 %v1256
        %v3031 = vpop.f32.mrb[0].mxu0
        %v3032 = vadd.f32 0.0, %v3031
        %v3033 = vpop.f32.mrb[0].mxu0
        %3034 = vmatprep.mubr.f32.mxu0 0.0
        %3035 = vmatmul.mubr.f32.gmra.mrb[0].mxu0 %v1258
        %v3036 = vpop.f32.mrb[0].mxu0
        %v3037 = vadd.f32 0.0, %v3036
        %v3038 = vpop.f32.mrb[0].mxu0
        %3039 = vmatprep.mubr.f32.mxu0 0.0
        %3040 = vmatmul.mubr.f32.gmra.mrb[0].mxu0 %v1260
        %v3041 = vpop.f32.mrb[0].mxu0
        %v3042 = vadd.f32 0.0, %v3041
        %v3043 = vpop.f32.mrb[0].mxu0
        %3044 = vmatprep.mubr.f32.mxu0 0.0
        %3045 = vmatmul.mubr.f32.gmra.mrb[0].mxu0 %v1262
        %v3046 = vpop.f32.mrb[0].mxu0
        %v3047 = vadd.f32 0.0, %v3046
        %v3048 = vpop.f32.mrb[0].mxu0
        %3049 = vmatprep.mubr.f32.mxu0 0.0
        %3050 = vmatmul.mubr.f32.gmra.mrb[0].mxu0 %v1264
        %v3051 = vpop.f32.mrb[0].mxu0
        %v3052 = vadd.f32 0.0, %v3051
        %v3053 = vpop.f32.mrb[0].mxu0
        %3054 = vmatprep.mubr.f32.mxu0 0.0
        %3055 = vmatmul.mubr.f32.gmra.mrb[0].mxu0 %v1266
        %v3056 = vpop.f32.mrb[0].mxu0
        %v3057 = vadd.f32 0.0, %v3056
        %v3058 = vpop.f32.mrb[0].mxu0
        %3059 = vmatprep.mubr.f32.mxu0 0.0
        %3060 = vmatmul.mubr.f32.gmra.mrb[0].mxu0 %v2068
        %v3061 = vpop.f32.mrb[0].mxu0
        %v3062 = vadd.f32 0.0, %v3061
        %v3063 = vpop.f32.mrb[0].mxu0
        %3064 = vmatprep.mubr.f32.mxu0 0.0
        %3065 = vmatmul.mubr.f32.gmra.mrb[0].mxu0 %v2070
        %v3066 = vpop.f32.mrb[0].mxu0
        %v3067 = vadd.f32 0.0, %v3066
        %v3068 = vpop.f32.mrb[0].mxu0
        %3069 = vmatprep.mubr.f32.mxu0 0.0
        %3070 = vmatmul.mubr.f32.gmra.mrb[0].mxu0 %v1204
        %v3071 = vpop.f32.mrb[0].mxu0
        %v3072 = vadd.f32 0.0, %v3071
        %v3073 = vpop.f32.mrb[0].mxu0
        %3074 = vmatprep.mubr.f32.mxu0 0.0
        %3075 = vmatmul.mubr.f32.gmra.mrb[0].mxu0 %v1206
        %v3076 = vpop.f32.mrb[0].mxu0
        %v3077 = vadd.f32 0.0, %v3076
        %v3078 = vpop.f32.mrb[0].mxu0
        %3079 = vdwg.mxu0
        %v3080 = vadd.f32 %v2820, %v2922
        %v3081 = vadd.f32 %v2821, %v2927
        %v3082 = vadd.f32 %v2822, %v2932
        %v3083 = vadd.f32 %v2823, %v2937
        %v3084 = vadd.f32 %v2824, %v2942
        %v3085 = vadd.f32 %v2825, %v2947
        %v3086 = vadd.f32 %v2826, %v2952
        %v3087 = vadd.f32 %v2827, %v2957
        %v3088 = vadd.f32 %v2828, %v2962
        %v3089 = vadd.f32 %v2829, %v2967
        %v3090 = vadd.f32 %v2830, %v2972
        %v3091 = vadd.f32 %v2831, %v2977
        %v3092 = vadd.f32 %v2832, %v2982
        %v3093 = vadd.f32 %v2833, %v2987
        %v3094 = vadd.f32 %v2834, %v2992
        %v3095 = vadd.f32 %v2835, %v2997
        %v3096 = vadd.f32 %v2836, %v3002
        %v3097 = vadd.f32 %v2837, %v3007
        %v3098 = vadd.f32 %v2838, %v3012
        %v3099 = vadd.f32 %v2839, %v3017
        %v3100 = vadd.f32 %v2840, %v3022
        %v3101 = vadd.f32 %v2841, %v3027
        %v3102 = vadd.f32 %v2842, %v3032
        %v3103 = vadd.f32 %v2843, %v3037
        %v3104 = vadd.f32 %v2844, %v3042
        %v3105 = vadd.f32 %v2845, %v3047
        %v3106 = vadd.f32 %v2846, %v3052
        %v3107 = vadd.f32 %v2847, %v3057
        %v3108 = vadd.f32 %v2848, %v3062
        %v3109 = vadd.f32 %v2849, %v3067
        %v3110 = vadd.f32 %v2850, %v3072
        %v3111 = vadd.f32 %v2851, %v3077
        %v3112 = vld [vmem:[%s2] sm:$0x1]
        %v3114 = vlaneseq
        %v3115 = vshrl.u32 %v3114, 7
        %v3116 = vsub.s32 0, %v3115
        %v3117 = vrot.slane %v3112, %v3116
        %v3119 = vadd.f32 %v3080, %v3117
        %v3120 = vadd.f32 %v3081, %v3117
        %v3121 = vadd.f32 %v3082, %v3117
        %v3122 = vadd.f32 %v3083, %v3117
        %v3123 = vadd.f32 %v3084, %v3117
        %v3124 = vadd.f32 %v3085, %v3117
        %v3125 = vadd.f32 %v3086, %v3117
        %v3126 = vadd.f32 %v3087, %v3117
        %v3127 = vadd.f32 %v3088, %v3117
        %v3128 = vadd.f32 %v3089, %v3117
        %v3129 = vadd.f32 %v3090, %v3117
        %v3130 = vadd.f32 %v3091, %v3117
        %v3131 = vadd.f32 %v3092, %v3117
        %v3132 = vadd.f32 %v3093, %v3117
        %v3133 = vadd.f32 %v3094, %v3117
        %v3134 = vadd.f32 %v3095, %v3117
        %v3135 = vadd.f32 %v3096, %v3117
        %v3136 = vadd.f32 %v3097, %v3117
        %v3137 = vadd.f32 %v3098, %v3117
        %v3138 = vadd.f32 %v3099, %v3117
        %v3139 = vadd.f32 %v3100, %v3117
        %v3140 = vadd.f32 %v3101, %v3117
        %v3141 = vadd.f32 %v3102, %v3117
        %v3142 = vadd.f32 %v3103, %v3117
        %v3143 = vadd.f32 %v3104, %v3117
        %v3144 = vadd.f32 %v3105, %v3117
        %v3145 = vadd.f32 %v3106, %v3117
        %v3146 = vadd.f32 %v3107, %v3117
        %v3147 = vadd.f32 %v3108, %v3117
        %v3148 = vadd.f32 %v3109, %v3117
        %v3149 = vadd.f32 %v3110, %v3117
        %v3150 = vadd.f32 %v3111, %v3117
        %v3151 = vmax.f32 %v3119, 0.0
        %v3152 = vmax.f32 %v3120, 0.0
        %v3153 = vmax.f32 %v3121, 0.0
        %v3154 = vmax.f32 %v3122, 0.0
        %v3155 = vmax.f32 %v3123, 0.0
        %v3156 = vmax.f32 %v3124, 0.0
        %v3157 = vmax.f32 %v3125, 0.0
        %v3158 = vmax.f32 %v3126, 0.0
        %v3159 = vmax.f32 %v3127, 0.0
        %v3160 = vmax.f32 %v3128, 0.0
        %v3161 = vmax.f32 %v3129, 0.0
        %v3162 = vmax.f32 %v3130, 0.0
        %v3163 = vmax.f32 %v3131, 0.0
        %v3164 = vmax.f32 %v3132, 0.0
        %v3165 = vmax.f32 %v3133, 0.0
        %v3166 = vmax.f32 %v3134, 0.0
        %v3167 = vmax.f32 %v3135, 0.0
        %v3168 = vmax.f32 %v3136, 0.0
        %v3169 = vmax.f32 %v3137, 0.0
        %v3170 = vmax.f32 %v3138, 0.0
        %v3171 = vmax.f32 %v3139, 0.0
        %v3172 = vmax.f32 %v3140, 0.0
        %v3173 = vmax.f32 %v3141, 0.0
        %v3174 = vmax.f32 %v3142, 0.0
        %v3175 = vmax.f32 %v3143, 0.0
        %v3176 = vmax.f32 %v3144, 0.0
        %v3177 = vmax.f32 %v3145, 0.0
        %v3178 = vmax.f32 %v3146, 0.0
        %v3179 = vmax.f32 %v3147, 0.0
        %v3180 = vmax.f32 %v3148, 0.0
        %v3181 = vmax.f32 %v3149, 0.0
        %v3182 = vmax.f32 %v3150, 0.0
        %v3215 = vrot.slane %v3151, 7
        %v3216 = vrot.slane %v3152, 7
        %v3217 = vsel %vm306, %v3215, %v3216
        %v3218 = vrot.slane %v3153, 7
        %v3219 = vrot.slane %v3154, 7
        %v3220 = vsel %vm306, %v3218, %v3219
        %v3221 = vrot.slane %v3155, 7
        %v3222 = vrot.slane %v3156, 7
        %v3223 = vsel %vm306, %v3221, %v3222
        %v3224 = vrot.slane %v3157, 7
        %v3225 = vrot.slane %v3158, 7
        %v3226 = vsel %vm306, %v3224, %v3225
        %v3227 = vrot.slane %v3159, 7
        %v3228 = vrot.slane %v3160, 7
        %v3229 = vsel %vm306, %v3227, %v3228
        %v3230 = vrot.slane %v3161, 7
        %v3231 = vrot.slane %v3162, 7
        %v3232 = vsel %vm306, %v3230, %v3231
        %v3233 = vrot.slane %v3163, 7
        %v3234 = vrot.slane %v3164, 7
        %v3235 = vsel %vm306, %v3233, %v3234
        %v3236 = vrot.slane %v3165, 7
        %v3237 = vrot.slane %v3166, 7
        %v3238 = vsel %vm306, %v3236, %v3237
        %v3239 = vrot.slane %v3167, 7
        %v3240 = vrot.slane %v3168, 7
        %v3241 = vsel %vm306, %v3239, %v3240
        %v3242 = vrot.slane %v3169, 7
        %v3243 = vrot.slane %v3170, 7
        %v3244 = vsel %vm306, %v3242, %v3243
        %v3245 = vrot.slane %v3171, 7
        %v3246 = vrot.slane %v3172, 7
        %v3247 = vsel %vm306, %v3245, %v3246
        %v3248 = vrot.slane %v3173, 7
        %v3249 = vrot.slane %v3174, 7
        %v3250 = vsel %vm306, %v3248, %v3249
        %v3251 = vrot.slane %v3175, 7
        %v3252 = vrot.slane %v3176, 7
        %v3253 = vsel %vm306, %v3251, %v3252
        %v3254 = vrot.slane %v3177, 7
        %v3255 = vrot.slane %v3178, 7
        %v3256 = vsel %vm306, %v3254, %v3255
        %v3257 = vrot.slane %v3179, 7
        %v3258 = vrot.slane %v3180, 7
        %v3259 = vsel %vm306, %v3257, %v3258
        %v3260 = vrot.slane %v3181, 7
        %v3261 = vrot.slane %v3182, 7
        %v3262 = vsel %vm306, %v3260, %v3261
        %v3295 = vsel %vm306, 0.0, %v3215
        %v3296 = vsel %vm306, 0.0, %v3218
        %v3297 = vsel %vm306, 0.0, %v3221
        %v3298 = vsel %vm306, 0.0, %v3224
        %v3299 = vsel %vm306, 0.0, %v3227
        %v3300 = vsel %vm306, 0.0, %v3230
        %v3301 = vsel %vm306, 0.0, %v3233
        %v3302 = vsel %vm306, 0.0, %v3236
        %v3303 = vsel %vm306, 0.0, %v3239
        %v3304 = vsel %vm306, 0.0, %v3242
        %v3305 = vsel %vm306, 0.0, %v3245
        %v3306 = vsel %vm306, 0.0, %v3248
        %v3307 = vsel %vm306, 0.0, %v3251
        %v3308 = vsel %vm306, 0.0, %v3254
        %v3309 = vsel %vm306, 0.0, %v3257
        %v3310 = vsel %vm306, 0.0, %v3260
        %v3311 = vsel %vm306, %v3216, 0.0
        %v3312 = vsel %vm306, %v3219, 0.0
        %v3313 = vsel %vm306, %v3222, 0.0
        %v3314 = vsel %vm306, %v3225, 0.0
        %v3315 = vsel %vm306, %v3228, 0.0
        %v3316 = vsel %vm306, %v3231, 0.0
        %v3317 = vsel %vm306, %v3234, 0.0
        %v3318 = vsel %vm306, %v3237, 0.0
        %v3319 = vsel %vm306, %v3240, 0.0
        %v3320 = vsel %vm306, %v3243, 0.0
        %v3321 = vsel %vm306, %v3246, 0.0
        %v3322 = vsel %vm306, %v3249, 0.0
        %v3323 = vsel %vm306, %v3252, 0.0
        %v3324 = vsel %vm306, %v3255, 0.0
        %v3325 = vsel %vm306, %v3258, 0.0
        %v3326 = vsel %vm306, %v3261, 0.0
        %v3357 = vrot.slane %v3295, 1
        %v3358 = vrot.slane %v3217, 1
        %v3359 = vsel %vm456, %v3357, %v3358
        %v3360 = vrot.slane %v3311, 1
        %v3361 = vsel %vm456, %v3358, %v3360
        %v3362 = vrot.slane %v3296, 1
        %v3363 = vrot.slane %v3220, 1
        %v3364 = vsel %vm456, %v3362, %v3363
        %v3365 = vrot.slane %v3312, 1
        %v3366 = vsel %vm456, %v3363, %v3365
        %v3367 = vrot.slane %v3297, 1
        %v3368 = vrot.slane %v3223, 1
        %v3369 = vsel %vm456, %v3367, %v3368
        %v3370 = vrot.slane %v3313, 1
        %v3371 = vsel %vm456, %v3368, %v3370
        %v3372 = vrot.slane %v3298, 1
        %v3373 = vrot.slane %v3226, 1
        %v3374 = vsel %vm456, %v3372, %v3373
        %v3375 = vrot.slane %v3314, 1
        %v3376 = vsel %vm456, %v3373, %v3375
        %v3377 = vrot.slane %v3299, 1
        %v3378 = vrot.slane %v3229, 1
        %v3379 = vsel %vm456, %v3377, %v3378
        %v3380 = vrot.slane %v3315, 1
        %v3381 = vsel %vm456, %v3378, %v3380
        %v3382 = vrot.slane %v3300, 1
        %v3383 = vrot.slane %v3232, 1
        %v3384 = vsel %vm456, %v3382, %v3383
        %v3385 = vrot.slane %v3316, 1
        %v3386 = vsel %vm456, %v3383, %v3385
        %v3387 = vrot.slane %v3301, 1
        %v3388 = vrot.slane %v3235, 1
        %v3389 = vsel %vm456, %v3387, %v3388
        %v3390 = vrot.slane %v3317, 1
        %v3391 = vsel %vm456, %v3388, %v3390
        %v3392 = vrot.slane %v3302, 1
        %v3393 = vrot.slane %v3238, 1
        %v3394 = vsel %vm456, %v3392, %v3393
        %v3395 = vrot.slane %v3318, 1
        %v3396 = vsel %vm456, %v3393, %v3395
        %v3397 = vrot.slane %v3303, 1
        %v3398 = vrot.slane %v3241, 1
        %v3399 = vsel %vm456, %v3397, %v3398
        %v3400 = vrot.slane %v3319, 1
        %v3401 = vsel %vm456, %v3398, %v3400
        %v3402 = vrot.slane %v3304, 1
        %v3403 = vrot.slane %v3244, 1
        %v3404 = vsel %vm456, %v3402, %v3403
        %v3405 = vrot.slane %v3320, 1
        %v3406 = vsel %vm456, %v3403, %v3405
        %v3407 = vrot.slane %v3305, 1
        %v3408 = vrot.slane %v3247, 1
        %v3409 = vsel %vm456, %v3407, %v3408
        %v3410 = vrot.slane %v3321, 1
        %v3411 = vsel %vm456, %v3408, %v3410
        %v3412 = vrot.slane %v3306, 1
        %v3413 = vrot.slane %v3250, 1
        %v3414 = vsel %vm456, %v3412, %v3413
        %v3415 = vrot.slane %v3322, 1
        %v3416 = vsel %vm456, %v3413, %v3415
        %v3417 = vrot.slane %v3307, 1
        %v3418 = vrot.slane %v3253, 1
        %v3419 = vsel %vm456, %v3417, %v3418
        %v3420 = vrot.slane %v3323, 1
        %v3421 = vsel %vm456, %v3418, %v3420
        %v3422 = vrot.slane %v3308, 1
        %v3423 = vrot.slane %v3256, 1
        %v3424 = vsel %vm456, %v3422, %v3423
        %v3425 = vrot.slane %v3324, 1
        %v3426 = vsel %vm456, %v3423, %v3425
        %v3427 = vrot.slane %v3309, 1
        %v3428 = vrot.slane %v3259, 1
        %v3429 = vsel %vm456, %v3427, %v3428
        %v3430 = vrot.slane %v3325, 1
        %v3431 = vsel %vm456, %v3428, %v3430
        %vm3432 = vcmask 64512
        %v3433 = vsel %vm3432, %v459, 0
        %v3435 = vsel %vm3432, %v461, 0
        %v3437 = vsel %vm3432, %v3359, 0
        %v3439 = vsel %vm3432, %v3361, 0
        %v3441 = vsel %vm3432, %v3364, 0
        %v3443 = vsel %vm3432, %v3366, 0
        %v3445 = vsel %vm3432, %v3369, 0
        %v3447 = vsel %vm3432, %v3371, 0
        %v3449 = vsel %vm3432, %v3374, 0
        %v3451 = vsel %vm3432, %v3376, 0
        %v3453 = vsel %vm3432, %v3379, 0
        %v3455 = vsel %vm3432, %v3381, 0
        %v3457 = vsel %vm3432, %v3384, 0
        %v3459 = vsel %vm3432, %v3386, 0
        %v3461 = vsel %vm3432, %v3389, 0
        %v3463 = vsel %vm3432, %v3391, 0
        %v3465 = vsel %vm3432, %v3394, 0
        %v3467 = vsel %vm3432, %v3396, 0
        %v3469 = vsel %vm3432, %v3399, 0
        %v3471 = vsel %vm3432, %v3401, 0
        %v3473 = vsel %vm3432, %v3404, 0
        %v3475 = vsel %vm3432, %v3406, 0
        %v3477 = vsel %vm3432, %v3409, 0
        %v3479 = vsel %vm3432, %v3411, 0
        %v3481 = vsel %vm3432, %v3414, 0
        %v3483 = vsel %vm3432, %v3416, 0
        %v3485 = vsel %vm3432, %v3419, 0
        %v3487 = vsel %vm3432, %v3421, 0
        %v3489 = vsel %vm3432, %v3424, 0
        %v3491 = vsel %vm3432, %v3426, 0
        %v3493 = vsel %vm3432, %v3429, 0
        %v3495 = vsel %vm3432, %v3431, 0
        %3497 = vmatprep.subr.mxu0 0.0
        %3498 = vmatpush1.msra.mxu0 %v233
        %3499 = vmatprep.subr.mxu0 0.0
        %3500 = vmatpush1.msra.mxu0 0.0
        %3501 = vmatprep.subr.mxu0 0.0
        %3502 = vmatpush1.msra.mxu0 0.0
        %3503 = vmatprep.subr.mxu0 0.0
        %3504 = vmatpush1.msra.mxu0 0.0
        %3505 = vmatprep.subr.mxu0 0.0
        %3506 = vmatpush1.msra.mxu0 0.0
        %3507 = vmatprep.subr.mxu0 0.0
        %3508 = vmatpush1.msra.mxu0 0.0
        %3509 = vmatprep.subr.mxu0 0.0
        %3510 = vmatpush1.msra.mxu0 0.0
        %3511 = vmatprep.subr.mxu0 0.0
        %3512 = vmatpush1.msra.mxu0 0.0
        %3513 = vmatprep.subr.mxu0 0.0
        %3514 = vmatpush1.msra.mxu0 0.0
        %3515 = vmatprep.subr.mxu0 0.0
        %3516 = vmatpush1.msra.mxu0 0.0
        %3517 = vmatprep.subr.mxu0 0.0
        %3518 = vmatpush1.msra.mxu0 0.0
        %3519 = vmatprep.subr.mxu0 0.0
        %3520 = vmatpush1.msra.mxu0 0.0
        %3521 = vmatprep.subr.mxu0 0.0
        %3522 = vmatpush1.msra.mxu0 0.0
        %3523 = vmatprep.subr.mxu0 0.0
        %3524 = vmatpush1.msra.mxu0 0.0
        %3525 = vmatprep.subr.mxu0 0.0
        %3526 = vmatpush1.msra.mxu0 0.0
        %3527 = vmatprep.subr.mxu0 0.0
        %3528 = vmatpush1.msra.mxu0 0.0
        %3529 = vmatprep.subr.mxu0 0.0
        %3530 = vmatpush1.msra.mxu0 0.0
        %3531 = vmatprep.subr.mxu0 0.0
        %3532 = vmatpush1.msra.mxu0 0.0
        %3533 = vmatprep.subr.mxu0 0.0
        %3534 = vmatpush1.msra.mxu0 0.0
        %3535 = vmatprep.subr.mxu0 0.0
        %3536 = vmatpush1.msra.mxu0 0.0
        %3537 = vmatprep.subr.mxu0 0.0
        %3538 = vmatpush1.msra.mxu0 0.0
        %3539 = vmatprep.subr.mxu0 0.0
        %3540 = vmatpush1.msra.mxu0 0.0
        %3541 = vmatprep.subr.mxu0 0.0
        %3542 = vmatpush1.msra.mxu0 0.0
        %3543 = vmatprep.subr.mxu0 0.0
        %3544 = vmatpush1.msra.mxu0 0.0
        %3545 = vmatprep.subr.mxu0 0.0
        %3546 = vmatpush1.msra.mxu0 0.0
        %3547 = vmatprep.subr.mxu0 0.0
        %3548 = vmatpush1.msra.mxu0 0.0
        %3549 = vmatprep.subr.mxu0 0.0
        %3550 = vmatpush1.msra.mxu0 0.0
        %3551 = vmatprep.subr.mxu0 0.0
        %3552 = vmatpush1.msra.mxu0 0.0
        %3553 = vmatprep.subr.mxu0 0.0
        %3554 = vmatpush1.msra.mxu0 0.0
        %3555 = vmatprep.subr.mxu0 0.0
        %3556 = vmatpush1.msra.mxu0 0.0
        %3557 = vmatprep.subr.mxu0 0.0
        %3558 = vmatpush1.msra.mxu0 0.0
        %3559 = vmatprep.subr.mxu0 0.0
        %3560 = vmatpush1.msra.mxu0 0.0
        %3561 = vmatprep.mubr.f32.mxu0 0.0
        %3562 = vmatmul.mubr.f32.gmra.mrb[0].mxu0 %v3433
        %v3563 = vpop.f32.mrb[0].mxu0
        %v3564 = vadd.f32 0.0, %v3563
        %v3565 = vpop.f32.mrb[0].mxu0
        %3566 = vmatprep.mubr.f32.mxu0 0.0
        %3567 = vmatmul.mubr.f32.gmra.mrb[0].mxu0 %v3435
        %v3568 = vpop.f32.mrb[0].mxu0
        %v3569 = vadd.f32 0.0, %v3568
        %v3570 = vpop.f32.mrb[0].mxu0
        %3571 = vmatprep.mubr.f32.mxu0 0.0
        %3572 = vmatmul.mubr.f32.gmra.mrb[0].mxu0 %v3437
        %v3573 = vpop.f32.mrb[0].mxu0
        %v3574 = vadd.f32 0.0, %v3573
        %v3575 = vpop.f32.mrb[0].mxu0
        %3576 = vmatprep.mubr.f32.mxu0 0.0
        %3577 = vmatmul.mubr.f32.gmra.mrb[0].mxu0 %v3439
        %v3578 = vpop.f32.mrb[0].mxu0
        %v3579 = vadd.f32 0.0, %v3578
        %v3580 = vpop.f32.mrb[0].mxu0
        %3581 = vmatprep.mubr.f32.mxu0 0.0
        %3582 = vmatmul.mubr.f32.gmra.mrb[0].mxu0 %v3441
        %v3583 = vpop.f32.mrb[0].mxu0
        %v3584 = vadd.f32 0.0, %v3583
        %v3585 = vpop.f32.mrb[0].mxu0
        %3586 = vmatprep.mubr.f32.mxu0 0.0
        %3587 = vmatmul.mubr.f32.gmra.mrb[0].mxu0 %v3443
        %v3588 = vpop.f32.mrb[0].mxu0
        %v3589 = vadd.f32 0.0, %v3588
        %v3590 = vpop.f32.mrb[0].mxu0
        %3591 = vmatprep.mubr.f32.mxu0 0.0
        %3592 = vmatmul.mubr.f32.gmra.mrb[0].mxu0 %v3445
        %v3593 = vpop.f32.mrb[0].mxu0
        %v3594 = vadd.f32 0.0, %v3593
        %v3595 = vpop.f32.mrb[0].mxu0
        %3596 = vmatprep.mubr.f32.mxu0 0.0
        %3597 = vmatmul.mubr.f32.gmra.mrb[0].mxu0 %v3447
        %v3598 = vpop.f32.mrb[0].mxu0
        %v3599 = vadd.f32 0.0, %v3598
        %v3600 = vpop.f32.mrb[0].mxu0
        %3601 = vmatprep.mubr.f32.mxu0 0.0
        %3602 = vmatmul.mubr.f32.gmra.mrb[0].mxu0 %v3449
        %v3603 = vpop.f32.mrb[0].mxu0
        %v3604 = vadd.f32 0.0, %v3603
        %v3605 = vpop.f32.mrb[0].mxu0
        %3606 = vmatprep.mubr.f32.mxu0 0.0
        %3607 = vmatmul.mubr.f32.gmra.mrb[0].mxu0 %v3451
        %v3608 = vpop.f32.mrb[0].mxu0
        %v3609 = vadd.f32 0.0, %v3608
        %v3610 = vpop.f32.mrb[0].mxu0
        %3611 = vmatprep.mubr.f32.mxu0 0.0
        %3612 = vmatmul.mubr.f32.gmra.mrb[0].mxu0 %v3453
        %v3613 = vpop.f32.mrb[0].mxu0
        %v3614 = vadd.f32 0.0, %v3613
        %v3615 = vpop.f32.mrb[0].mxu0
        %3616 = vmatprep.mubr.f32.mxu0 0.0
        %3617 = vmatmul.mubr.f32.gmra.mrb[0].mxu0 %v3455
        %v3618 = vpop.f32.mrb[0].mxu0
        %v3619 = vadd.f32 0.0, %v3618
        %v3620 = vpop.f32.mrb[0].mxu0
        %3621 = vmatprep.mubr.f32.mxu0 0.0
        %3622 = vmatmul.mubr.f32.gmra.mrb[0].mxu0 %v3457
        %v3623 = vpop.f32.mrb[0].mxu0
        %v3624 = vadd.f32 0.0, %v3623
        %v3625 = vpop.f32.mrb[0].mxu0
        %3626 = vmatprep.mubr.f32.mxu0 0.0
        %3627 = vmatmul.mubr.f32.gmra.mrb[0].mxu0 %v3459
        %v3628 = vpop.f32.mrb[0].mxu0
        %v3629 = vadd.f32 0.0, %v3628
        %v3630 = vpop.f32.mrb[0].mxu0
        %3631 = vmatprep.mubr.f32.mxu0 0.0
        %3632 = vmatmul.mubr.f32.gmra.mrb[0].mxu0 %v3461
        %v3633 = vpop.f32.mrb[0].mxu0
        %v3634 = vadd.f32 0.0, %v3633
        %v3635 = vpop.f32.mrb[0].mxu0
        %3636 = vmatprep.mubr.f32.mxu0 0.0
        %3637 = vmatmul.mubr.f32.gmra.mrb[0].mxu0 %v3463
        %v3638 = vpop.f32.mrb[0].mxu0
        %v3639 = vadd.f32 0.0, %v3638
        %v3640 = vpop.f32.mrb[0].mxu0
        %3641 = vmatprep.mubr.f32.mxu0 0.0
        %3642 = vmatmul.mubr.f32.gmra.mrb[0].mxu0 %v3465
        %v3643 = vpop.f32.mrb[0].mxu0
        %v3644 = vadd.f32 0.0, %v3643
        %v3645 = vpop.f32.mrb[0].mxu0
        %3646 = vmatprep.mubr.f32.mxu0 0.0
        %3647 = vmatmul.mubr.f32.gmra.mrb[0].mxu0 %v3467
        %v3648 = vpop.f32.mrb[0].mxu0
        %v3649 = vadd.f32 0.0, %v3648
        %v3650 = vpop.f32.mrb[0].mxu0
        %3651 = vmatprep.mubr.f32.mxu0 0.0
        %3652 = vmatmul.mubr.f32.gmra.mrb[0].mxu0 %v3469
        %v3653 = vpop.f32.mrb[0].mxu0
        %v3654 = vadd.f32 0.0, %v3653
        %v3655 = vpop.f32.mrb[0].mxu0
        %3656 = vmatprep.mubr.f32.mxu0 0.0
        %3657 = vmatmul.mubr.f32.gmra.mrb[0].mxu0 %v3471
        %v3658 = vpop.f32.mrb[0].mxu0
        %v3659 = vadd.f32 0.0, %v3658
        %v3660 = vpop.f32.mrb[0].mxu0
        %3661 = vmatprep.mubr.f32.mxu0 0.0
        %3662 = vmatmul.mubr.f32.gmra.mrb[0].mxu0 %v3473
        %v3663 = vpop.f32.mrb[0].mxu0
        %v3664 = vadd.f32 0.0, %v3663
        %v3665 = vpop.f32.mrb[0].mxu0
        %3666 = vmatprep.mubr.f32.mxu0 0.0
        %3667 = vmatmul.mubr.f32.gmra.mrb[0].mxu0 %v3475
        %v3668 = vpop.f32.mrb[0].mxu0
        %v3669 = vadd.f32 0.0, %v3668
        %v3670 = vpop.f32.mrb[0].mxu0
        %3671 = vmatprep.mubr.f32.mxu0 0.0
        %3672 = vmatmul.mubr.f32.gmra.mrb[0].mxu0 %v3477
        %v3673 = vpop.f32.mrb[0].mxu0
        %v3674 = vadd.f32 0.0, %v3673
        %v3675 = vpop.f32.mrb[0].mxu0
        %3676 = vmatprep.mubr.f32.mxu0 0.0
        %3677 = vmatmul.mubr.f32.gmra.mrb[0].mxu0 %v3479
        %v3678 = vpop.f32.mrb[0].mxu0
        %v3679 = vadd.f32 0.0, %v3678
        %v3680 = vpop.f32.mrb[0].mxu0
        %3681 = vmatprep.mubr.f32.mxu0 0.0
        %3682 = vmatmul.mubr.f32.gmra.mrb[0].mxu0 %v3481
        %v3683 = vpop.f32.mrb[0].mxu0
        %v3684 = vadd.f32 0.0, %v3683
        %v3685 = vpop.f32.mrb[0].mxu0
        %3686 = vmatprep.mubr.f32.mxu0 0.0
        %3687 = vmatmul.mubr.f32.gmra.mrb[0].mxu0 %v3483
        %v3688 = vpop.f32.mrb[0].mxu0
        %v3689 = vadd.f32 0.0, %v3688
        %v3690 = vpop.f32.mrb[0].mxu0
        %3691 = vmatprep.mubr.f32.mxu0 0.0
        %3692 = vmatmul.mubr.f32.gmra.mrb[0].mxu0 %v3485
        %v3693 = vpop.f32.mrb[0].mxu0
        %v3694 = vadd.f32 0.0, %v3693
        %v3695 = vpop.f32.mrb[0].mxu0
        %3696 = vmatprep.mubr.f32.mxu0 0.0
        %3697 = vmatmul.mubr.f32.gmra.mrb[0].mxu0 %v3487
        %v3698 = vpop.f32.mrb[0].mxu0
        %v3699 = vadd.f32 0.0, %v3698
        %v3700 = vpop.f32.mrb[0].mxu0
        %3701 = vmatprep.mubr.f32.mxu0 0.0
        %3702 = vmatmul.mubr.f32.gmra.mrb[0].mxu0 %v3489
        %v3703 = vpop.f32.mrb[0].mxu0
        %v3704 = vadd.f32 0.0, %v3703
        %v3705 = vpop.f32.mrb[0].mxu0
        %3706 = vmatprep.mubr.f32.mxu0 0.0
        %3707 = vmatmul.mubr.f32.gmra.mrb[0].mxu0 %v3491
        %v3708 = vpop.f32.mrb[0].mxu0
        %v3709 = vadd.f32 0.0, %v3708
        %v3710 = vpop.f32.mrb[0].mxu0
        %3711 = vmatprep.mubr.f32.mxu0 0.0
        %3712 = vmatmul.mubr.f32.gmra.mrb[0].mxu0 %v3493
        %v3713 = vpop.f32.mrb[0].mxu0
        %v3714 = vadd.f32 0.0, %v3713
        %v3715 = vpop.f32.mrb[0].mxu0
        %3716 = vmatprep.mubr.f32.mxu0 0.0
        %3717 = vmatmul.mubr.f32.gmra.mrb[0].mxu0 %v3495
        %v3718 = vpop.f32.mrb[0].mxu0
        %v3719 = vadd.f32 0.0, %v3718
        %v3720 = vpop.f32.mrb[0].mxu0
        %3721 = vdwg.mxu0
        %v3722 = vsel %vm3432, %v390, 0
        %v3724 = vsel %vm3432, %v308, 0
        %v3726 = vsel %vm3432, %v3295, 0
        %v3728 = vsel %vm3432, %v3217, 0
        %v3730 = vsel %vm3432, %v3296, 0
        %v3732 = vsel %vm3432, %v3220, 0
        %v3734 = vsel %vm3432, %v3297, 0
        %v3736 = vsel %vm3432, %v3223, 0
        %v3738 = vsel %vm3432, %v3298, 0
        %v3740 = vsel %vm3432, %v3226, 0
        %v3742 = vsel %vm3432, %v3299, 0
        %v3744 = vsel %vm3432, %v3229, 0
        %v3746 = vsel %vm3432, %v3300, 0
        %v3748 = vsel %vm3432, %v3232, 0
        %v3750 = vsel %vm3432, %v3301, 0
        %v3752 = vsel %vm3432, %v3235, 0
        %v3754 = vsel %vm3432, %v3302, 0
        %v3756 = vsel %vm3432, %v3238, 0
        %v3758 = vsel %vm3432, %v3303, 0
        %v3760 = vsel %vm3432, %v3241, 0
        %v3762 = vsel %vm3432, %v3304, 0
        %v3764 = vsel %vm3432, %v3244, 0
        %v3766 = vsel %vm3432, %v3305, 0
        %v3768 = vsel %vm3432, %v3247, 0
        %v3770 = vsel %vm3432, %v3306, 0
        %v3772 = vsel %vm3432, %v3250, 0
        %v3774 = vsel %vm3432, %v3307, 0
        %v3776 = vsel %vm3432, %v3253, 0
        %v3778 = vsel %vm3432, %v3308, 0
        %v3780 = vsel %vm3432, %v3256, 0
        %v3782 = vsel %vm3432, %v3309, 0
        %v3784 = vsel %vm3432, %v3259, 0
        %3786 = vmatprep.subr.mxu0 0.0
        %3787 = vmatpush1.msra.mxu0 %v232
        %3788 = vmatprep.subr.mxu0 0.0
        %3789 = vmatpush1.msra.mxu0 0.0
        %3790 = vmatprep.subr.mxu0 0.0
        %3791 = vmatpush1.msra.mxu0 0.0
        %3792 = vmatprep.subr.mxu0 0.0
        %3793 = vmatpush1.msra.mxu0 0.0
        %3794 = vmatprep.subr.mxu0 0.0
        %3795 = vmatpush1.msra.mxu0 0.0
        %3796 = vmatprep.subr.mxu0 0.0
        %3797 = vmatpush1.msra.mxu0 0.0
        %3798 = vmatprep.subr.mxu0 0.0
        %3799 = vmatpush1.msra.mxu0 0.0
        %3800 = vmatprep.subr.mxu0 0.0
        %3801 = vmatpush1.msra.mxu0 0.0
        %3802 = vmatprep.subr.mxu0 0.0
        %3803 = vmatpush1.msra.mxu0 0.0
        %3804 = vmatprep.subr.mxu0 0.0
        %3805 = vmatpush1.msra.mxu0 0.0
        %3806 = vmatprep.subr.mxu0 0.0
        %3807 = vmatpush1.msra.mxu0 0.0
        %3808 = vmatprep.subr.mxu0 0.0
        %3809 = vmatpush1.msra.mxu0 0.0
        %3810 = vmatprep.subr.mxu0 0.0
        %3811 = vmatpush1.msra.mxu0 0.0
        %3812 = vmatprep.subr.mxu0 0.0
        %3813 = vmatpush1.msra.mxu0 0.0
        %3814 = vmatprep.subr.mxu0 0.0
        %3815 = vmatpush1.msra.mxu0 0.0
        %3816 = vmatprep.subr.mxu0 0.0
        %3817 = vmatpush1.msra.mxu0 0.0
        %3818 = vmatprep.subr.mxu0 0.0
        %3819 = vmatpush1.msra.mxu0 0.0
        %3820 = vmatprep.subr.mxu0 0.0
        %3821 = vmatpush1.msra.mxu0 0.0
        %3822 = vmatprep.subr.mxu0 0.0
        %3823 = vmatpush1.msra.mxu0 0.0
        %3824 = vmatprep.subr.mxu0 0.0
        %3825 = vmatpush1.msra.mxu0 0.0
        %3826 = vmatprep.subr.mxu0 0.0
        %3827 = vmatpush1.msra.mxu0 0.0
        %3828 = vmatprep.subr.mxu0 0.0
        %3829 = vmatpush1.msra.mxu0 0.0
        %3830 = vmatprep.subr.mxu0 0.0
        %3831 = vmatpush1.msra.mxu0 0.0
        %3832 = vmatprep.subr.mxu0 0.0
        %3833 = vmatpush1.msra.mxu0 0.0
        %3834 = vmatprep.subr.mxu0 0.0
        %3835 = vmatpush1.msra.mxu0 0.0
        %3836 = vmatprep.subr.mxu0 0.0
        %3837 = vmatpush1.msra.mxu0 0.0
        %3838 = vmatprep.subr.mxu0 0.0
        %3839 = vmatpush1.msra.mxu0 0.0
        %3840 = vmatprep.subr.mxu0 0.0
        %3841 = vmatpush1.msra.mxu0 0.0
        %3842 = vmatprep.subr.mxu0 0.0
        %3843 = vmatpush1.msra.mxu0 0.0
        %3844 = vmatprep.subr.mxu0 0.0
        %3845 = vmatpush1.msra.mxu0 0.0
        %3846 = vmatprep.subr.mxu0 0.0
        %3847 = vmatpush1.msra.mxu0 0.0
        %3848 = vmatprep.subr.mxu0 0.0
        %3849 = vmatpush1.msra.mxu0 0.0
        %3850 = vmatprep.mubr.f32.mxu0 0.0
        %3851 = vmatmul.mubr.f32.gmra.mrb[0].mxu0 %v3722
        %v3852 = vpop.f32.mrb[0].mxu0
        %v3853 = vadd.f32 %v3564, %v3852
        %v3854 = vpop.f32.mrb[0].mxu0
        %3855 = vmatprep.mubr.f32.mxu0 0.0
        %3856 = vmatmul.mubr.f32.gmra.mrb[0].mxu0 %v3724
        %v3857 = vpop.f32.mrb[0].mxu0
        %v3858 = vadd.f32 %v3569, %v3857
        %v3859 = vpop.f32.mrb[0].mxu0
        %3860 = vmatprep.mubr.f32.mxu0 0.0
        %3861 = vmatmul.mubr.f32.gmra.mrb[0].mxu0 %v3726
        %v3862 = vpop.f32.mrb[0].mxu0
        %v3863 = vadd.f32 %v3574, %v3862
        %v3864 = vpop.f32.mrb[0].mxu0
        %3865 = vmatprep.mubr.f32.mxu0 0.0
        %3866 = vmatmul.mubr.f32.gmra.mrb[0].mxu0 %v3728
        %v3867 = vpop.f32.mrb[0].mxu0
        %v3868 = vadd.f32 %v3579, %v3867
        %v3869 = vpop.f32.mrb[0].mxu0
        %3870 = vmatprep.mubr.f32.mxu0 0.0
        %3871 = vmatmul.mubr.f32.gmra.mrb[0].mxu0 %v3730
        %v3872 = vpop.f32.mrb[0].mxu0
        %v3873 = vadd.f32 %v3584, %v3872
        %v3874 = vpop.f32.mrb[0].mxu0
        %3875 = vmatprep.mubr.f32.mxu0 0.0
        %3876 = vmatmul.mubr.f32.gmra.mrb[0].mxu0 %v3732
        %v3877 = vpop.f32.mrb[0].mxu0
        %v3878 = vadd.f32 %v3589, %v3877
        %v3879 = vpop.f32.mrb[0].mxu0
        %3880 = vmatprep.mubr.f32.mxu0 0.0
        %3881 = vmatmul.mubr.f32.gmra.mrb[0].mxu0 %v3734
        %v3882 = vpop.f32.mrb[0].mxu0
        %v3883 = vadd.f32 %v3594, %v3882
        %v3884 = vpop.f32.mrb[0].mxu0
        %3885 = vmatprep.mubr.f32.mxu0 0.0
        %3886 = vmatmul.mubr.f32.gmra.mrb[0].mxu0 %v3736
        %v3887 = vpop.f32.mrb[0].mxu0
        %v3888 = vadd.f32 %v3599, %v3887
        %v3889 = vpop.f32.mrb[0].mxu0
        %3890 = vmatprep.mubr.f32.mxu0 0.0
        %3891 = vmatmul.mubr.f32.gmra.mrb[0].mxu0 %v3738
        %v3892 = vpop.f32.mrb[0].mxu0
        %v3893 = vadd.f32 %v3604, %v3892
        %v3894 = vpop.f32.mrb[0].mxu0
        %3895 = vmatprep.mubr.f32.mxu0 0.0
        %3896 = vmatmul.mubr.f32.gmra.mrb[0].mxu0 %v3740
        %v3897 = vpop.f32.mrb[0].mxu0
        %v3898 = vadd.f32 %v3609, %v3897
        %v3899 = vpop.f32.mrb[0].mxu0
        %3900 = vmatprep.mubr.f32.mxu0 0.0
        %3901 = vmatmul.mubr.f32.gmra.mrb[0].mxu0 %v3742
        %v3902 = vpop.f32.mrb[0].mxu0
        %v3903 = vadd.f32 %v3614, %v3902
        %v3904 = vpop.f32.mrb[0].mxu0
        %3905 = vmatprep.mubr.f32.mxu0 0.0
        %3906 = vmatmul.mubr.f32.gmra.mrb[0].mxu0 %v3744
        %v3907 = vpop.f32.mrb[0].mxu0
        %v3908 = vadd.f32 %v3619, %v3907
        %v3909 = vpop.f32.mrb[0].mxu0
        %3910 = vmatprep.mubr.f32.mxu0 0.0
        %3911 = vmatmul.mubr.f32.gmra.mrb[0].mxu0 %v3746
        %v3912 = vpop.f32.mrb[0].mxu0
        %v3913 = vadd.f32 %v3624, %v3912
        %v3914 = vpop.f32.mrb[0].mxu0
        %3915 = vmatprep.mubr.f32.mxu0 0.0
        %3916 = vmatmul.mubr.f32.gmra.mrb[0].mxu0 %v3748
        %v3917 = vpop.f32.mrb[0].mxu0
        %v3918 = vadd.f32 %v3629, %v3917
        %v3919 = vpop.f32.mrb[0].mxu0
        %3920 = vmatprep.mubr.f32.mxu0 0.0
        %3921 = vmatmul.mubr.f32.gmra.mrb[0].mxu0 %v3750
        %v3922 = vpop.f32.mrb[0].mxu0
        %v3923 = vadd.f32 %v3634, %v3922
        %v3924 = vpop.f32.mrb[0].mxu0
        %3925 = vmatprep.mubr.f32.mxu0 0.0
        %3926 = vmatmul.mubr.f32.gmra.mrb[0].mxu0 %v3752
        %v3927 = vpop.f32.mrb[0].mxu0
        %v3928 = vadd.f32 %v3639, %v3927
        %v3929 = vpop.f32.mrb[0].mxu0
        %3930 = vmatprep.mubr.f32.mxu0 0.0
        %3931 = vmatmul.mubr.f32.gmra.mrb[0].mxu0 %v3754
        %v3932 = vpop.f32.mrb[0].mxu0
        %v3933 = vadd.f32 %v3644, %v3932
        %v3934 = vpop.f32.mrb[0].mxu0
        %3935 = vmatprep.mubr.f32.mxu0 0.0
        %3936 = vmatmul.mubr.f32.gmra.mrb[0].mxu0 %v3756
        %v3937 = vpop.f32.mrb[0].mxu0
        %v3938 = vadd.f32 %v3649, %v3937
        %v3939 = vpop.f32.mrb[0].mxu0
        %3940 = vmatprep.mubr.f32.mxu0 0.0
        %3941 = vmatmul.mubr.f32.gmra.mrb[0].mxu0 %v3758
        %v3942 = vpop.f32.mrb[0].mxu0
        %v3943 = vadd.f32 %v3654, %v3942
        %v3944 = vpop.f32.mrb[0].mxu0
        %3945 = vmatprep.mubr.f32.mxu0 0.0
        %3946 = vmatmul.mubr.f32.gmra.mrb[0].mxu0 %v3760
        %v3947 = vpop.f32.mrb[0].mxu0
        %v3948 = vadd.f32 %v3659, %v3947
        %v3949 = vpop.f32.mrb[0].mxu0
        %3950 = vmatprep.mubr.f32.mxu0 0.0
        %3951 = vmatmul.mubr.f32.gmra.mrb[0].mxu0 %v3762
        %v3952 = vpop.f32.mrb[0].mxu0
        %v3953 = vadd.f32 %v3664, %v3952
        %v3954 = vpop.f32.mrb[0].mxu0
        %3955 = vmatprep.mubr.f32.mxu0 0.0
        %3956 = vmatmul.mubr.f32.gmra.mrb[0].mxu0 %v3764
        %v3957 = vpop.f32.mrb[0].mxu0
        %v3958 = vadd.f32 %v3669, %v3957
        %v3959 = vpop.f32.mrb[0].mxu0
        %3960 = vmatprep.mubr.f32.mxu0 0.0
        %3961 = vmatmul.mubr.f32.gmra.mrb[0].mxu0 %v3766
        %v3962 = vpop.f32.mrb[0].mxu0
        %v3963 = vadd.f32 %v3674, %v3962
        %v3964 = vpop.f32.mrb[0].mxu0
        %3965 = vmatprep.mubr.f32.mxu0 0.0
        %3966 = vmatmul.mubr.f32.gmra.mrb[0].mxu0 %v3768
        %v3967 = vpop.f32.mrb[0].mxu0
        %v3968 = vadd.f32 %v3679, %v3967
        %v3969 = vpop.f32.mrb[0].mxu0
        %3970 = vmatprep.mubr.f32.mxu0 0.0
        %3971 = vmatmul.mubr.f32.gmra.mrb[0].mxu0 %v3770
        %v3972 = vpop.f32.mrb[0].mxu0
        %v3973 = vadd.f32 %v3684, %v3972
        %v3974 = vpop.f32.mrb[0].mxu0
        %3975 = vmatprep.mubr.f32.mxu0 0.0
        %3976 = vmatmul.mubr.f32.gmra.mrb[0].mxu0 %v3772
        %v3977 = vpop.f32.mrb[0].mxu0
        %v3978 = vadd.f32 %v3689, %v3977
        %v3979 = vpop.f32.mrb[0].mxu0
        %3980 = vmatprep.mubr.f32.mxu0 0.0
        %3981 = vmatmul.mubr.f32.gmra.mrb[0].mxu0 %v3774
        %v3982 = vpop.f32.mrb[0].mxu0
        %v3983 = vadd.f32 %v3694, %v3982
        %v3984 = vpop.f32.mrb[0].mxu0
        %3985 = vmatprep.mubr.f32.mxu0 0.0
        %3986 = vmatmul.mubr.f32.gmra.mrb[0].mxu0 %v3776
        %v3987 = vpop.f32.mrb[0].mxu0
        %v3988 = vadd.f32 %v3699, %v3987
        %v3989 = vpop.f32.mrb[0].mxu0
        %3990 = vmatprep.mubr.f32.mxu0 0.0
        %3991 = vmatmul.mubr.f32.gmra.mrb[0].mxu0 %v3778
        %v3992 = vpop.f32.mrb[0].mxu0
        %v3993 = vadd.f32 %v3704, %v3992
        %v3994 = vpop.f32.mrb[0].mxu0
        %3995 = vmatprep.mubr.f32.mxu0 0.0
        %3996 = vmatmul.mubr.f32.gmra.mrb[0].mxu0 %v3780
        %v3997 = vpop.f32.mrb[0].mxu0
        %v3998 = vadd.f32 %v3709, %v3997
        %v3999 = vpop.f32.mrb[0].mxu0
        %4000 = vmatprep.mubr.f32.mxu0 0.0
        %4001 = vmatmul.mubr.f32.gmra.mrb[0].mxu0 %v3782
        %v4002 = vpop.f32.mrb[0].mxu0
        %v4003 = vadd.f32 %v3714, %v4002
        %v4004 = vpop.f32.mrb[0].mxu0
        %4005 = vmatprep.mubr.f32.mxu0 0.0
        %4006 = vmatmul.mubr.f32.gmra.mrb[0].mxu0 %v3784
        %v4007 = vpop.f32.mrb[0].mxu0
        %v4008 = vadd.f32 %v3719, %v4007
        %v4009 = vpop.f32.mrb[0].mxu0
        %4010 = vdwg.mxu0
        %v4011 = vrot.slane %v3295, 2
        %v4012 = vrot.slane %v3217, 2
        %v4013 = vsel %vm1123, %v4011, %v4012
        %v4014 = vrot.slane %v3311, 2
        %v4015 = vsel %vm1123, %v4012, %v4014
        %v4016 = vrot.slane %v3296, 2
        %v4017 = vrot.slane %v3220, 2
        %v4018 = vsel %vm1123, %v4016, %v4017
        %v4019 = vrot.slane %v3312, 2
        %v4020 = vsel %vm1123, %v4017, %v4019
        %v4021 = vrot.slane %v3297, 2
        %v4022 = vrot.slane %v3223, 2
        %v4023 = vsel %vm1123, %v4021, %v4022
        %v4024 = vrot.slane %v3313, 2
        %v4025 = vsel %vm1123, %v4022, %v4024
        %v4026 = vrot.slane %v3298, 2
        %v4027 = vrot.slane %v3226, 2
        %v4028 = vsel %vm1123, %v4026, %v4027
        %v4029 = vrot.slane %v3314, 2
        %v4030 = vsel %vm1123, %v4027, %v4029
        %v4031 = vrot.slane %v3299, 2
        %v4032 = vrot.slane %v3229, 2
        %v4033 = vsel %vm1123, %v4031, %v4032
        %v4034 = vrot.slane %v3315, 2
        %v4035 = vsel %vm1123, %v4032, %v4034
        %v4036 = vrot.slane %v3300, 2
        %v4037 = vrot.slane %v3232, 2
        %v4038 = vsel %vm1123, %v4036, %v4037
        %v4039 = vrot.slane %v3316, 2
        %v4040 = vsel %vm1123, %v4037, %v4039
        %v4041 = vrot.slane %v3301, 2
        %v4042 = vrot.slane %v3235, 2
        %v4043 = vsel %vm1123, %v4041, %v4042
        %v4044 = vrot.slane %v3317, 2
        %v4045 = vsel %vm1123, %v4042, %v4044
        %v4046 = vrot.slane %v3302, 2
        %v4047 = vrot.slane %v3238, 2
        %v4048 = vsel %vm1123, %v4046, %v4047
        %v4049 = vrot.slane %v3318, 2
        %v4050 = vsel %vm1123, %v4047, %v4049
        %v4051 = vrot.slane %v3303, 2
        %v4052 = vrot.slane %v3241, 2
        %v4053 = vsel %vm1123, %v4051, %v4052
        %v4054 = vrot.slane %v3319, 2
        %v4055 = vsel %vm1123, %v4052, %v4054
        %v4056 = vrot.slane %v3304, 2
        %v4057 = vrot.slane %v3244, 2
        %v4058 = vsel %vm1123, %v4056, %v4057
        %v4059 = vrot.slane %v3320, 2
        %v4060 = vsel %vm1123, %v4057, %v4059
        %v4061 = vrot.slane %v3305, 2
        %v4062 = vrot.slane %v3247, 2
        %v4063 = vsel %vm1123, %v4061, %v4062
        %v4064 = vrot.slane %v3321, 2
        %v4065 = vsel %vm1123, %v4062, %v4064
        %v4066 = vrot.slane %v3306, 2
        %v4067 = vrot.slane %v3250, 2
        %v4068 = vsel %vm1123, %v4066, %v4067
        %v4069 = vrot.slane %v3322, 2
        %v4070 = vsel %vm1123, %v4067, %v4069
        %v4071 = vrot.slane %v3307, 2
        %v4072 = vrot.slane %v3253, 2
        %v4073 = vsel %vm1123, %v4071, %v4072
        %v4074 = vrot.slane %v3323, 2
        %v4075 = vsel %vm1123, %v4072, %v4074
        %v4076 = vrot.slane %v3308, 2
        %v4077 = vrot.slane %v3256, 2
        %v4078 = vsel %vm1123, %v4076, %v4077
        %v4079 = vrot.slane %v3324, 2
        %v4080 = vsel %vm1123, %v4077, %v4079
        %v4081 = vrot.slane %v3309, 2
        %v4082 = vrot.slane %v3259, 2
        %v4083 = vsel %vm1123, %v4081, %v4082
        %v4084 = vrot.slane %v3325, 2
        %v4085 = vsel %vm1123, %v4082, %v4084
        %v4086 = vsel %vm3432, %v1126, 0
        %v4088 = vsel %vm3432, %v1128, 0
        %v4090 = vsel %vm3432, %v4013, 0
        %v4092 = vsel %vm3432, %v4015, 0
        %v4094 = vsel %vm3432, %v4018, 0
        %v4096 = vsel %vm3432, %v4020, 0
        %v4098 = vsel %vm3432, %v4023, 0
        %v4100 = vsel %vm3432, %v4025, 0
        %v4102 = vsel %vm3432, %v4028, 0
        %v4104 = vsel %vm3432, %v4030, 0
        %v4106 = vsel %vm3432, %v4033, 0
        %v4108 = vsel %vm3432, %v4035, 0
        %v4110 = vsel %vm3432, %v4038, 0
        %v4112 = vsel %vm3432, %v4040, 0
        %v4114 = vsel %vm3432, %v4043, 0
        %v4116 = vsel %vm3432, %v4045, 0
        %v4118 = vsel %vm3432, %v4048, 0
        %v4120 = vsel %vm3432, %v4050, 0
        %v4122 = vsel %vm3432, %v4053, 0
        %v4124 = vsel %vm3432, %v4055, 0
        %v4126 = vsel %vm3432, %v4058, 0
        %v4128 = vsel %vm3432, %v4060, 0
        %v4130 = vsel %vm3432, %v4063, 0
        %v4132 = vsel %vm3432, %v4065, 0
        %v4134 = vsel %vm3432, %v4068, 0
        %v4136 = vsel %vm3432, %v4070, 0
        %v4138 = vsel %vm3432, %v4073, 0
        %v4140 = vsel %vm3432, %v4075, 0
        %v4142 = vsel %vm3432, %v4078, 0
        %v4144 = vsel %vm3432, %v4080, 0
        %v4146 = vsel %vm3432, %v4083, 0
        %v4148 = vsel %vm3432, %v4085, 0
        %4150 = vmatprep.subr.mxu0 0.0
        %4151 = vmatpush1.msra.mxu0 %v234
        %4152 = vmatprep.subr.mxu0 0.0
        %4153 = vmatpush1.msra.mxu0 0.0
        %4154 = vmatprep.subr.mxu0 0.0
        %4155 = vmatpush1.msra.mxu0 0.0
        %4156 = vmatprep.subr.mxu0 0.0
        %4157 = vmatpush1.msra.mxu0 0.0
        %4158 = vmatprep.subr.mxu0 0.0
        %4159 = vmatpush1.msra.mxu0 0.0
        %4160 = vmatprep.subr.mxu0 0.0
        %4161 = vmatpush1.msra.mxu0 0.0
        %4162 = vmatprep.subr.mxu0 0.0
        %4163 = vmatpush1.msra.mxu0 0.0
        %4164 = vmatprep.subr.mxu0 0.0
        %4165 = vmatpush1.msra.mxu0 0.0
        %4166 = vmatprep.subr.mxu0 0.0
        %4167 = vmatpush1.msra.mxu0 0.0
        %4168 = vmatprep.subr.mxu0 0.0
        %4169 = vmatpush1.msra.mxu0 0.0
        %4170 = vmatprep.subr.mxu0 0.0
        %4171 = vmatpush1.msra.mxu0 0.0
        %4172 = vmatprep.subr.mxu0 0.0
        %4173 = vmatpush1.msra.mxu0 0.0
        %4174 = vmatprep.subr.mxu0 0.0
        %4175 = vmatpush1.msra.mxu0 0.0
        %4176 = vmatprep.subr.mxu0 0.0
        %4177 = vmatpush1.msra.mxu0 0.0
        %4178 = vmatprep.subr.mxu0 0.0
        %4179 = vmatpush1.msra.mxu0 0.0
        %4180 = vmatprep.subr.mxu0 0.0
        %4181 = vmatpush1.msra.mxu0 0.0
        %4182 = vmatprep.subr.mxu0 0.0
        %4183 = vmatpush1.msra.mxu0 0.0
        %4184 = vmatprep.subr.mxu0 0.0
        %4185 = vmatpush1.msra.mxu0 0.0
        %4186 = vmatprep.subr.mxu0 0.0
        %4187 = vmatpush1.msra.mxu0 0.0
        %4188 = vmatprep.subr.mxu0 0.0
        %4189 = vmatpush1.msra.mxu0 0.0
        %4190 = vmatprep.subr.mxu0 0.0
        %4191 = vmatpush1.msra.mxu0 0.0
        %4192 = vmatprep.subr.mxu0 0.0
        %4193 = vmatpush1.msra.mxu0 0.0
        %4194 = vmatprep.subr.mxu0 0.0
        %4195 = vmatpush1.msra.mxu0 0.0
        %4196 = vmatprep.subr.mxu0 0.0
        %4197 = vmatpush1.msra.mxu0 0.0
        %4198 = vmatprep.subr.mxu0 0.0
        %4199 = vmatpush1.msra.mxu0 0.0
        %4200 = vmatprep.subr.mxu0 0.0
        %4201 = vmatpush1.msra.mxu0 0.0
        %4202 = vmatprep.subr.mxu0 0.0
        %4203 = vmatpush1.msra.mxu0 0.0
        %4204 = vmatprep.subr.mxu0 0.0
        %4205 = vmatpush1.msra.mxu0 0.0
        %4206 = vmatprep.subr.mxu0 0.0
        %4207 = vmatpush1.msra.mxu0 0.0
        %4208 = vmatprep.subr.mxu0 0.0
        %4209 = vmatpush1.msra.mxu0 0.0
        %4210 = vmatprep.subr.mxu0 0.0
        %4211 = vmatpush1.msra.mxu0 0.0
        %4212 = vmatprep.subr.mxu0 0.0
        %4213 = vmatpush1.msra.mxu0 0.0
        %4214 = vmatprep.mubr.f32.mxu0 0.0
        %4215 = vmatmul.mubr.f32.gmra.mrb[0].mxu0 %v4086
        %v4216 = vpop.f32.mrb[0].mxu0
        %v4217 = vadd.f32 0.0, %v4216
        %v4218 = vpop.f32.mrb[0].mxu0
        %4219 = vmatprep.mubr.f32.mxu0 0.0
        %4220 = vmatmul.mubr.f32.gmra.mrb[0].mxu0 %v4088
        %v4221 = vpop.f32.mrb[0].mxu0
        %v4222 = vadd.f32 0.0, %v4221
        %v4223 = vpop.f32.mrb[0].mxu0
        %4224 = vmatprep.mubr.f32.mxu0 0.0
        %4225 = vmatmul.mubr.f32.gmra.mrb[0].mxu0 %v4090
        %v4226 = vpop.f32.mrb[0].mxu0
        %v4227 = vadd.f32 0.0, %v4226
        %v4228 = vpop.f32.mrb[0].mxu0
        %4229 = vmatprep.mubr.f32.mxu0 0.0
        %4230 = vmatmul.mubr.f32.gmra.mrb[0].mxu0 %v4092
        %v4231 = vpop.f32.mrb[0].mxu0
        %v4232 = vadd.f32 0.0, %v4231
        %v4233 = vpop.f32.mrb[0].mxu0
        %4234 = vmatprep.mubr.f32.mxu0 0.0
        %4235 = vmatmul.mubr.f32.gmra.mrb[0].mxu0 %v4094
        %v4236 = vpop.f32.mrb[0].mxu0
        %v4237 = vadd.f32 0.0, %v4236
        %v4238 = vpop.f32.mrb[0].mxu0
        %4239 = vmatprep.mubr.f32.mxu0 0.0
        %4240 = vmatmul.mubr.f32.gmra.mrb[0].mxu0 %v4096
        %v4241 = vpop.f32.mrb[0].mxu0
        %v4242 = vadd.f32 0.0, %v4241
        %v4243 = vpop.f32.mrb[0].mxu0
        %4244 = vmatprep.mubr.f32.mxu0 0.0
        %4245 = vmatmul.mubr.f32.gmra.mrb[0].mxu0 %v4098
        %v4246 = vpop.f32.mrb[0].mxu0
        %v4247 = vadd.f32 0.0, %v4246
        %v4248 = vpop.f32.mrb[0].mxu0
        %4249 = vmatprep.mubr.f32.mxu0 0.0
        %4250 = vmatmul.mubr.f32.gmra.mrb[0].mxu0 %v4100
        %v4251 = vpop.f32.mrb[0].mxu0
        %v4252 = vadd.f32 0.0, %v4251
        %v4253 = vpop.f32.mrb[0].mxu0
        %4254 = vmatprep.mubr.f32.mxu0 0.0
        %4255 = vmatmul.mubr.f32.gmra.mrb[0].mxu0 %v4102
        %v4256 = vpop.f32.mrb[0].mxu0
        %v4257 = vadd.f32 0.0, %v4256
        %v4258 = vpop.f32.mrb[0].mxu0
        %4259 = vmatprep.mubr.f32.mxu0 0.0
        %4260 = vmatmul.mubr.f32.gmra.mrb[0].mxu0 %v4104
        %v4261 = vpop.f32.mrb[0].mxu0
        %v4262 = vadd.f32 0.0, %v4261
        %v4263 = vpop.f32.mrb[0].mxu0
        %4264 = vmatprep.mubr.f32.mxu0 0.0
        %4265 = vmatmul.mubr.f32.gmra.mrb[0].mxu0 %v4106
        %v4266 = vpop.f32.mrb[0].mxu0
        %v4267 = vadd.f32 0.0, %v4266
        %v4268 = vpop.f32.mrb[0].mxu0
        %4269 = vmatprep.mubr.f32.mxu0 0.0
        %4270 = vmatmul.mubr.f32.gmra.mrb[0].mxu0 %v4108
        %v4271 = vpop.f32.mrb[0].mxu0
        %v4272 = vadd.f32 0.0, %v4271
        %v4273 = vpop.f32.mrb[0].mxu0
        %4274 = vmatprep.mubr.f32.mxu0 0.0
        %4275 = vmatmul.mubr.f32.gmra.mrb[0].mxu0 %v4110
        %v4276 = vpop.f32.mrb[0].mxu0
        %v4277 = vadd.f32 0.0, %v4276
        %v4278 = vpop.f32.mrb[0].mxu0
        %4279 = vmatprep.mubr.f32.mxu0 0.0
        %4280 = vmatmul.mubr.f32.gmra.mrb[0].mxu0 %v4112
        %v4281 = vpop.f32.mrb[0].mxu0
        %v4282 = vadd.f32 0.0, %v4281
        %v4283 = vpop.f32.mrb[0].mxu0
        %4284 = vmatprep.mubr.f32.mxu0 0.0
        %4285 = vmatmul.mubr.f32.gmra.mrb[0].mxu0 %v4114
        %v4286 = vpop.f32.mrb[0].mxu0
        %v4287 = vadd.f32 0.0, %v4286
        %v4288 = vpop.f32.mrb[0].mxu0
        %4289 = vmatprep.mubr.f32.mxu0 0.0
        %4290 = vmatmul.mubr.f32.gmra.mrb[0].mxu0 %v4116
        %v4291 = vpop.f32.mrb[0].mxu0
        %v4292 = vadd.f32 0.0, %v4291
        %v4293 = vpop.f32.mrb[0].mxu0
        %4294 = vmatprep.mubr.f32.mxu0 0.0
        %4295 = vmatmul.mubr.f32.gmra.mrb[0].mxu0 %v4118
        %v4296 = vpop.f32.mrb[0].mxu0
        %v4297 = vadd.f32 0.0, %v4296
        %v4298 = vpop.f32.mrb[0].mxu0
        %4299 = vmatprep.mubr.f32.mxu0 0.0
        %4300 = vmatmul.mubr.f32.gmra.mrb[0].mxu0 %v4120
        %v4301 = vpop.f32.mrb[0].mxu0
        %v4302 = vadd.f32 0.0, %v4301
        %v4303 = vpop.f32.mrb[0].mxu0
        %4304 = vmatprep.mubr.f32.mxu0 0.0
        %4305 = vmatmul.mubr.f32.gmra.mrb[0].mxu0 %v4122
        %v4306 = vpop.f32.mrb[0].mxu0
        %v4307 = vadd.f32 0.0, %v4306
        %v4308 = vpop.f32.mrb[0].mxu0
        %4309 = vmatprep.mubr.f32.mxu0 0.0
        %4310 = vmatmul.mubr.f32.gmra.mrb[0].mxu0 %v4124
        %v4311 = vpop.f32.mrb[0].mxu0
        %v4312 = vadd.f32 0.0, %v4311
        %v4313 = vpop.f32.mrb[0].mxu0
        %4314 = vmatprep.mubr.f32.mxu0 0.0
        %4315 = vmatmul.mubr.f32.gmra.mrb[0].mxu0 %v4126
        %v4316 = vpop.f32.mrb[0].mxu0
        %v4317 = vadd.f32 0.0, %v4316
        %v4318 = vpop.f32.mrb[0].mxu0
        %4319 = vmatprep.mubr.f32.mxu0 0.0
        %4320 = vmatmul.mubr.f32.gmra.mrb[0].mxu0 %v4128
        %v4321 = vpop.f32.mrb[0].mxu0
        %v4322 = vadd.f32 0.0, %v4321
        %v4323 = vpop.f32.mrb[0].mxu0
        %4324 = vmatprep.mubr.f32.mxu0 0.0
        %4325 = vmatmul.mubr.f32.gmra.mrb[0].mxu0 %v4130
        %v4326 = vpop.f32.mrb[0].mxu0
        %v4327 = vadd.f32 0.0, %v4326
        %v4328 = vpop.f32.mrb[0].mxu0
        %4329 = vmatprep.mubr.f32.mxu0 0.0
        %4330 = vmatmul.mubr.f32.gmra.mrb[0].mxu0 %v4132
        %v4331 = vpop.f32.mrb[0].mxu0
        %v4332 = vadd.f32 0.0, %v4331
        %v4333 = vpop.f32.mrb[0].mxu0
        %4334 = vmatprep.mubr.f32.mxu0 0.0
        %4335 = vmatmul.mubr.f32.gmra.mrb[0].mxu0 %v4134
        %v4336 = vpop.f32.mrb[0].mxu0
        %v4337 = vadd.f32 0.0, %v4336
        %v4338 = vpop.f32.mrb[0].mxu0
        %4339 = vmatprep.mubr.f32.mxu0 0.0
        %4340 = vmatmul.mubr.f32.gmra.mrb[0].mxu0 %v4136
        %v4341 = vpop.f32.mrb[0].mxu0
        %v4342 = vadd.f32 0.0, %v4341
        %v4343 = vpop.f32.mrb[0].mxu0
        %4344 = vmatprep.mubr.f32.mxu0 0.0
        %4345 = vmatmul.mubr.f32.gmra.mrb[0].mxu0 %v4138
        %v4346 = vpop.f32.mrb[0].mxu0
        %v4347 = vadd.f32 0.0, %v4346
        %v4348 = vpop.f32.mrb[0].mxu0
        %4349 = vmatprep.mubr.f32.mxu0 0.0
        %4350 = vmatmul.mubr.f32.gmra.mrb[0].mxu0 %v4140
        %v4351 = vpop.f32.mrb[0].mxu0
        %v4352 = vadd.f32 0.0, %v4351
        %v4353 = vpop.f32.mrb[0].mxu0
        %4354 = vmatprep.mubr.f32.mxu0 0.0
        %4355 = vmatmul.mubr.f32.gmra.mrb[0].mxu0 %v4142
        %v4356 = vpop.f32.mrb[0].mxu0
        %v4357 = vadd.f32 0.0, %v4356
        %v4358 = vpop.f32.mrb[0].mxu0
        %4359 = vmatprep.mubr.f32.mxu0 0.0
        %4360 = vmatmul.mubr.f32.gmra.mrb[0].mxu0 %v4144
        %v4361 = vpop.f32.mrb[0].mxu0
        %v4362 = vadd.f32 0.0, %v4361
        %v4363 = vpop.f32.mrb[0].mxu0
        %4364 = vmatprep.mubr.f32.mxu0 0.0
        %4365 = vmatmul.mubr.f32.gmra.mrb[0].mxu0 %v4146
        %v4366 = vpop.f32.mrb[0].mxu0
        %v4367 = vadd.f32 0.0, %v4366
        %v4368 = vpop.f32.mrb[0].mxu0
        %4369 = vmatprep.mubr.f32.mxu0 0.0
        %4370 = vmatmul.mubr.f32.gmra.mrb[0].mxu0 %v4148
        %v4371 = vpop.f32.mrb[0].mxu0
        %v4372 = vadd.f32 0.0, %v4371
        %v4373 = vpop.f32.mrb[0].mxu0
        %4374 = vdwg.mxu0
        %v4375 = vadd.f32 %v3853, %v4217
        %v4376 = vadd.f32 %v3858, %v4222
        %v4377 = vadd.f32 %v3863, %v4227
        %v4378 = vadd.f32 %v3868, %v4232
        %v4379 = vadd.f32 %v3873, %v4237
        %v4380 = vadd.f32 %v3878, %v4242
        %v4381 = vadd.f32 %v3883, %v4247
        %v4382 = vadd.f32 %v3888, %v4252
        %v4383 = vadd.f32 %v3893, %v4257
        %v4384 = vadd.f32 %v3898, %v4262
        %v4385 = vadd.f32 %v3903, %v4267
        %v4386 = vadd.f32 %v3908, %v4272
        %v4387 = vadd.f32 %v3913, %v4277
        %v4388 = vadd.f32 %v3918, %v4282
        %v4389 = vadd.f32 %v3923, %v4287
        %v4390 = vadd.f32 %v3928, %v4292
        %v4391 = vadd.f32 %v3933, %v4297
        %v4392 = vadd.f32 %v3938, %v4302
        %v4393 = vadd.f32 %v3943, %v4307
        %v4394 = vadd.f32 %v3948, %v4312
        %v4395 = vadd.f32 %v3953, %v4317
        %v4396 = vadd.f32 %v3958, %v4322
        %v4397 = vadd.f32 %v3963, %v4327
        %v4398 = vadd.f32 %v3968, %v4332
        %v4399 = vadd.f32 %v3973, %v4337
        %v4400 = vadd.f32 %v3978, %v4342
        %v4401 = vadd.f32 %v3983, %v4347
        %v4402 = vadd.f32 %v3988, %v4352
        %v4403 = vadd.f32 %v3993, %v4357
        %v4404 = vadd.f32 %v3998, %v4362
        %v4405 = vadd.f32 %v4003, %v4367
        %v4406 = vadd.f32 %v4008, %v4372
        %v4408 = vsel %vm3432, %v3310, 0
        %v4410 = vsel %vm3432, %v3262, 0
        %4412 = vmatprep.subr.mxu0 0.0
        %4413 = vmatpush1.msra.mxu0 %v235
        %4414 = vmatprep.subr.mxu0 0.0
        %4415 = vmatpush1.msra.mxu0 0.0
        %4416 = vmatprep.subr.mxu0 0.0
        %4417 = vmatpush1.msra.mxu0 0.0
        %4418 = vmatprep.subr.mxu0 0.0
        %4419 = vmatpush1.msra.mxu0 0.0
        %4420 = vmatprep.subr.mxu0 0.0
        %4421 = vmatpush1.msra.mxu0 0.0
        %4422 = vmatprep.subr.mxu0 0.0
        %4423 = vmatpush1.msra.mxu0 0.0
        %4424 = vmatprep.subr.mxu0 0.0
        %4425 = vmatpush1.msra.mxu0 0.0
        %4426 = vmatprep.subr.mxu0 0.0
        %4427 = vmatpush1.msra.mxu0 0.0
        %4428 = vmatprep.subr.mxu0 0.0
        %4429 = vmatpush1.msra.mxu0 0.0
        %4430 = vmatprep.subr.mxu0 0.0
        %4431 = vmatpush1.msra.mxu0 0.0
        %4432 = vmatprep.subr.mxu0 0.0
        %4433 = vmatpush1.msra.mxu0 0.0
        %4434 = vmatprep.subr.mxu0 0.0
        %4435 = vmatpush1.msra.mxu0 0.0
        %4436 = vmatprep.subr.mxu0 0.0
        %4437 = vmatpush1.msra.mxu0 0.0
        %4438 = vmatprep.subr.mxu0 0.0
        %4439 = vmatpush1.msra.mxu0 0.0
        %4440 = vmatprep.subr.mxu0 0.0
        %4441 = vmatpush1.msra.mxu0 0.0
        %4442 = vmatprep.subr.mxu0 0.0
        %4443 = vmatpush1.msra.mxu0 0.0
        %4444 = vmatprep.subr.mxu0 0.0
        %4445 = vmatpush1.msra.mxu0 0.0
        %4446 = vmatprep.subr.mxu0 0.0
        %4447 = vmatpush1.msra.mxu0 0.0
        %4448 = vmatprep.subr.mxu0 0.0
        %4449 = vmatpush1.msra.mxu0 0.0
        %4450 = vmatprep.subr.mxu0 0.0
        %4451 = vmatpush1.msra.mxu0 0.0
        %4452 = vmatprep.subr.mxu0 0.0
        %4453 = vmatpush1.msra.mxu0 0.0
        %4454 = vmatprep.subr.mxu0 0.0
        %4455 = vmatpush1.msra.mxu0 0.0
        %4456 = vmatprep.subr.mxu0 0.0
        %4457 = vmatpush1.msra.mxu0 0.0
        %4458 = vmatprep.subr.mxu0 0.0
        %4459 = vmatpush1.msra.mxu0 0.0
        %4460 = vmatprep.subr.mxu0 0.0
        %4461 = vmatpush1.msra.mxu0 0.0
        %4462 = vmatprep.subr.mxu0 0.0
        %4463 = vmatpush1.msra.mxu0 0.0
        %4464 = vmatprep.subr.mxu0 0.0
        %4465 = vmatpush1.msra.mxu0 0.0
        %4466 = vmatprep.subr.mxu0 0.0
        %4467 = vmatpush1.msra.mxu0 0.0
        %4468 = vmatprep.subr.mxu0 0.0
        %4469 = vmatpush1.msra.mxu0 0.0
        %4470 = vmatprep.subr.mxu0 0.0
        %4471 = vmatpush1.msra.mxu0 0.0
        %4472 = vmatprep.subr.mxu0 0.0
        %4473 = vmatpush1.msra.mxu0 0.0
        %4474 = vmatprep.subr.mxu0 0.0
        %4475 = vmatpush1.msra.mxu0 0.0
        %4476 = vmatprep.mubr.f32.mxu0 0.0
        %4477 = vmatmul.mubr.f32.gmra.mrb[0].mxu0 %v3726
        %v4478 = vpop.f32.mrb[0].mxu0
        %v4479 = vadd.f32 0.0, %v4478
        %v4480 = vpop.f32.mrb[0].mxu0
        %4481 = vmatprep.mubr.f32.mxu0 0.0
        %4482 = vmatmul.mubr.f32.gmra.mrb[0].mxu0 %v3728
        %v4483 = vpop.f32.mrb[0].mxu0
        %v4484 = vadd.f32 0.0, %v4483
        %v4485 = vpop.f32.mrb[0].mxu0
        %4486 = vmatprep.mubr.f32.mxu0 0.0
        %4487 = vmatmul.mubr.f32.gmra.mrb[0].mxu0 %v3730
        %v4488 = vpop.f32.mrb[0].mxu0
        %v4489 = vadd.f32 0.0, %v4488
        %v4490 = vpop.f32.mrb[0].mxu0
        %4491 = vmatprep.mubr.f32.mxu0 0.0
        %4492 = vmatmul.mubr.f32.gmra.mrb[0].mxu0 %v3732
        %v4493 = vpop.f32.mrb[0].mxu0
        %v4494 = vadd.f32 0.0, %v4493
        %v4495 = vpop.f32.mrb[0].mxu0
        %4496 = vmatprep.mubr.f32.mxu0 0.0
        %4497 = vmatmul.mubr.f32.gmra.mrb[0].mxu0 %v3734
        %v4498 = vpop.f32.mrb[0].mxu0
        %v4499 = vadd.f32 0.0, %v4498
        %v4500 = vpop.f32.mrb[0].mxu0
        %4501 = vmatprep.mubr.f32.mxu0 0.0
        %4502 = vmatmul.mubr.f32.gmra.mrb[0].mxu0 %v3736
        %v4503 = vpop.f32.mrb[0].mxu0
        %v4504 = vadd.f32 0.0, %v4503
        %v4505 = vpop.f32.mrb[0].mxu0
        %4506 = vmatprep.mubr.f32.mxu0 0.0
        %4507 = vmatmul.mubr.f32.gmra.mrb[0].mxu0 %v3738
        %v4508 = vpop.f32.mrb[0].mxu0
        %v4509 = vadd.f32 0.0, %v4508
        %v4510 = vpop.f32.mrb[0].mxu0
        %4511 = vmatprep.mubr.f32.mxu0 0.0
        %4512 = vmatmul.mubr.f32.gmra.mrb[0].mxu0 %v3740
        %v4513 = vpop.f32.mrb[0].mxu0
        %v4514 = vadd.f32 0.0, %v4513
        %v4515 = vpop.f32.mrb[0].mxu0
        %4516 = vmatprep.mubr.f32.mxu0 0.0
        %4517 = vmatmul.mubr.f32.gmra.mrb[0].mxu0 %v3742
        %v4518 = vpop.f32.mrb[0].mxu0
        %v4519 = vadd.f32 0.0, %v4518
        %v4520 = vpop.f32.mrb[0].mxu0
        %4521 = vmatprep.mubr.f32.mxu0 0.0
        %4522 = vmatmul.mubr.f32.gmra.mrb[0].mxu0 %v3744
        %v4523 = vpop.f32.mrb[0].mxu0
        %v4524 = vadd.f32 0.0, %v4523
        %v4525 = vpop.f32.mrb[0].mxu0
        %4526 = vmatprep.mubr.f32.mxu0 0.0
        %4527 = vmatmul.mubr.f32.gmra.mrb[0].mxu0 %v3746
        %v4528 = vpop.f32.mrb[0].mxu0
        %v4529 = vadd.f32 0.0, %v4528
        %v4530 = vpop.f32.mrb[0].mxu0
        %4531 = vmatprep.mubr.f32.mxu0 0.0
        %4532 = vmatmul.mubr.f32.gmra.mrb[0].mxu0 %v3748
        %v4533 = vpop.f32.mrb[0].mxu0
        %v4534 = vadd.f32 0.0, %v4533
        %v4535 = vpop.f32.mrb[0].mxu0
        %4536 = vmatprep.mubr.f32.mxu0 0.0
        %4537 = vmatmul.mubr.f32.gmra.mrb[0].mxu0 %v3750
        %v4538 = vpop.f32.mrb[0].mxu0
        %v4539 = vadd.f32 0.0, %v4538
        %v4540 = vpop.f32.mrb[0].mxu0
        %4541 = vmatprep.mubr.f32.mxu0 0.0
        %4542 = vmatmul.mubr.f32.gmra.mrb[0].mxu0 %v3752
        %v4543 = vpop.f32.mrb[0].mxu0
        %v4544 = vadd.f32 0.0, %v4543
        %v4545 = vpop.f32.mrb[0].mxu0
        %4546 = vmatprep.mubr.f32.mxu0 0.0
        %4547 = vmatmul.mubr.f32.gmra.mrb[0].mxu0 %v3754
        %v4548 = vpop.f32.mrb[0].mxu0
        %v4549 = vadd.f32 0.0, %v4548
        %v4550 = vpop.f32.mrb[0].mxu0
        %4551 = vmatprep.mubr.f32.mxu0 0.0
        %4552 = vmatmul.mubr.f32.gmra.mrb[0].mxu0 %v3756
        %v4553 = vpop.f32.mrb[0].mxu0
        %v4554 = vadd.f32 0.0, %v4553
        %v4555 = vpop.f32.mrb[0].mxu0
        %4556 = vmatprep.mubr.f32.mxu0 0.0
        %4557 = vmatmul.mubr.f32.gmra.mrb[0].mxu0 %v3758
        %v4558 = vpop.f32.mrb[0].mxu0
        %v4559 = vadd.f32 0.0, %v4558
        %v4560 = vpop.f32.mrb[0].mxu0
        %4561 = vmatprep.mubr.f32.mxu0 0.0
        %4562 = vmatmul.mubr.f32.gmra.mrb[0].mxu0 %v3760
        %v4563 = vpop.f32.mrb[0].mxu0
        %v4564 = vadd.f32 0.0, %v4563
        %v4565 = vpop.f32.mrb[0].mxu0
        %4566 = vmatprep.mubr.f32.mxu0 0.0
        %4567 = vmatmul.mubr.f32.gmra.mrb[0].mxu0 %v3762
        %v4568 = vpop.f32.mrb[0].mxu0
        %v4569 = vadd.f32 0.0, %v4568
        %v4570 = vpop.f32.mrb[0].mxu0
        %4571 = vmatprep.mubr.f32.mxu0 0.0
        %4572 = vmatmul.mubr.f32.gmra.mrb[0].mxu0 %v3764
        %v4573 = vpop.f32.mrb[0].mxu0
        %v4574 = vadd.f32 0.0, %v4573
        %v4575 = vpop.f32.mrb[0].mxu0
        %4576 = vmatprep.mubr.f32.mxu0 0.0
        %4577 = vmatmul.mubr.f32.gmra.mrb[0].mxu0 %v3766
        %v4578 = vpop.f32.mrb[0].mxu0
        %v4579 = vadd.f32 0.0, %v4578
        %v4580 = vpop.f32.mrb[0].mxu0
        %4581 = vmatprep.mubr.f32.mxu0 0.0
        %4582 = vmatmul.mubr.f32.gmra.mrb[0].mxu0 %v3768
        %v4583 = vpop.f32.mrb[0].mxu0
        %v4584 = vadd.f32 0.0, %v4583
        %v4585 = vpop.f32.mrb[0].mxu0
        %4586 = vmatprep.mubr.f32.mxu0 0.0
        %4587 = vmatmul.mubr.f32.gmra.mrb[0].mxu0 %v3770
        %v4588 = vpop.f32.mrb[0].mxu0
        %v4589 = vadd.f32 0.0, %v4588
        %v4590 = vpop.f32.mrb[0].mxu0
        %4591 = vmatprep.mubr.f32.mxu0 0.0
        %4592 = vmatmul.mubr.f32.gmra.mrb[0].mxu0 %v3772
        %v4593 = vpop.f32.mrb[0].mxu0
        %v4594 = vadd.f32 0.0, %v4593
        %v4595 = vpop.f32.mrb[0].mxu0
        %4596 = vmatprep.mubr.f32.mxu0 0.0
        %4597 = vmatmul.mubr.f32.gmra.mrb[0].mxu0 %v3774
        %v4598 = vpop.f32.mrb[0].mxu0
        %v4599 = vadd.f32 0.0, %v4598
        %v4600 = vpop.f32.mrb[0].mxu0
        %4601 = vmatprep.mubr.f32.mxu0 0.0
        %4602 = vmatmul.mubr.f32.gmra.mrb[0].mxu0 %v3776
        %v4603 = vpop.f32.mrb[0].mxu0
        %v4604 = vadd.f32 0.0, %v4603
        %v4605 = vpop.f32.mrb[0].mxu0
        %4606 = vmatprep.mubr.f32.mxu0 0.0
        %4607 = vmatmul.mubr.f32.gmra.mrb[0].mxu0 %v3778
        %v4608 = vpop.f32.mrb[0].mxu0
        %v4609 = vadd.f32 0.0, %v4608
        %v4610 = vpop.f32.mrb[0].mxu0
        %4611 = vmatprep.mubr.f32.mxu0 0.0
        %4612 = vmatmul.mubr.f32.gmra.mrb[0].mxu0 %v3780
        %v4613 = vpop.f32.mrb[0].mxu0
        %v4614 = vadd.f32 0.0, %v4613
        %v4615 = vpop.f32.mrb[0].mxu0
        %4616 = vmatprep.mubr.f32.mxu0 0.0
        %4617 = vmatmul.mubr.f32.gmra.mrb[0].mxu0 %v3782
        %v4618 = vpop.f32.mrb[0].mxu0
        %v4619 = vadd.f32 0.0, %v4618
        %v4620 = vpop.f32.mrb[0].mxu0
        %4621 = vmatprep.mubr.f32.mxu0 0.0
        %4622 = vmatmul.mubr.f32.gmra.mrb[0].mxu0 %v3784
        %v4623 = vpop.f32.mrb[0].mxu0
        %v4624 = vadd.f32 0.0, %v4623
        %v4625 = vpop.f32.mrb[0].mxu0
        %4626 = vmatprep.mubr.f32.mxu0 0.0
        %4627 = vmatmul.mubr.f32.gmra.mrb[0].mxu0 %v4408
        %v4628 = vpop.f32.mrb[0].mxu0
        %v4629 = vadd.f32 0.0, %v4628
        %v4630 = vpop.f32.mrb[0].mxu0
        %4631 = vmatprep.mubr.f32.mxu0 0.0
        %4632 = vmatmul.mubr.f32.gmra.mrb[0].mxu0 %v4410
        %v4633 = vpop.f32.mrb[0].mxu0
        %v4634 = vadd.f32 0.0, %v4633
        %v4635 = vpop.f32.mrb[0].mxu0
        %4636 = vdwg.mxu0
        %v4637 = vadd.f32 %v4375, %v4479
        %v4638 = vadd.f32 %v4376, %v4484
        %v4639 = vadd.f32 %v4377, %v4489
        %v4640 = vadd.f32 %v4378, %v4494
        %v4641 = vadd.f32 %v4379, %v4499
        %v4642 = vadd.f32 %v4380, %v4504
        %v4643 = vadd.f32 %v4381, %v4509
        %v4644 = vadd.f32 %v4382, %v4514
        %v4645 = vadd.f32 %v4383, %v4519
        %v4646 = vadd.f32 %v4384, %v4524
        %v4647 = vadd.f32 %v4385, %v4529
        %v4648 = vadd.f32 %v4386, %v4534
        %v4649 = vadd.f32 %v4387, %v4539
        %v4650 = vadd.f32 %v4388, %v4544
        %v4651 = vadd.f32 %v4389, %v4549
        %v4652 = vadd.f32 %v4390, %v4554
        %v4653 = vadd.f32 %v4391, %v4559
        %v4654 = vadd.f32 %v4392, %v4564
        %v4655 = vadd.f32 %v4393, %v4569
        %v4656 = vadd.f32 %v4394, %v4574
        %v4657 = vadd.f32 %v4395, %v4579
        %v4658 = vadd.f32 %v4396, %v4584
        %v4659 = vadd.f32 %v4397, %v4589
        %v4660 = vadd.f32 %v4398, %v4594
        %v4661 = vadd.f32 %v4399, %v4599
        %v4662 = vadd.f32 %v4400, %v4604
        %v4663 = vadd.f32 %v4401, %v4609
        %v4664 = vadd.f32 %v4402, %v4614
        %v4665 = vadd.f32 %v4403, %v4619
        %v4666 = vadd.f32 %v4404, %v4624
        %v4667 = vadd.f32 %v4405, %v4629
        %v4668 = vadd.f32 %v4406, %v4634
        %v4670 = vrot.slane %v3310, 1
        %v4671 = vrot.slane %v3262, 1
        %v4672 = vsel %vm456, %v4670, %v4671
        %v4673 = vrot.slane %v3326, 1
        %v4674 = vsel %vm456, %v4671, %v4673
        %v4675 = vsel %vm3432, %v4672, 0
        %v4677 = vsel %vm3432, %v4674, 0
        %4679 = vmatprep.subr.mxu0 0.0
        %4680 = vmatpush1.msra.mxu0 %v236
        %4681 = vmatprep.subr.mxu0 0.0
        %4682 = vmatpush1.msra.mxu0 0.0
        %4683 = vmatprep.subr.mxu0 0.0
        %4684 = vmatpush1.msra.mxu0 0.0
        %4685 = vmatprep.subr.mxu0 0.0
        %4686 = vmatpush1.msra.mxu0 0.0
        %4687 = vmatprep.subr.mxu0 0.0
        %4688 = vmatpush1.msra.mxu0 0.0
        %4689 = vmatprep.subr.mxu0 0.0
        %4690 = vmatpush1.msra.mxu0 0.0
        %4691 = vmatprep.subr.mxu0 0.0
        %4692 = vmatpush1.msra.mxu0 0.0
        %4693 = vmatprep.subr.mxu0 0.0
        %4694 = vmatpush1.msra.mxu0 0.0
        %4695 = vmatprep.subr.mxu0 0.0
        %4696 = vmatpush1.msra.mxu0 0.0
        %4697 = vmatprep.subr.mxu0 0.0
        %4698 = vmatpush1.msra.mxu0 0.0
        %4699 = vmatprep.subr.mxu0 0.0
        %4700 = vmatpush1.msra.mxu0 0.0
        %4701 = vmatprep.subr.mxu0 0.0
        %4702 = vmatpush1.msra.mxu0 0.0
        %4703 = vmatprep.subr.mxu0 0.0
        %4704 = vmatpush1.msra.mxu0 0.0
        %4705 = vmatprep.subr.mxu0 0.0
        %4706 = vmatpush1.msra.mxu0 0.0
        %4707 = vmatprep.subr.mxu0 0.0
        %4708 = vmatpush1.msra.mxu0 0.0
        %4709 = vmatprep.subr.mxu0 0.0
        %4710 = vmatpush1.msra.mxu0 0.0
        %4711 = vmatprep.subr.mxu0 0.0
        %4712 = vmatpush1.msra.mxu0 0.0
        %4713 = vmatprep.subr.mxu0 0.0
        %4714 = vmatpush1.msra.mxu0 0.0
        %4715 = vmatprep.subr.mxu0 0.0
        %4716 = vmatpush1.msra.mxu0 0.0
        %4717 = vmatprep.subr.mxu0 0.0
        %4718 = vmatpush1.msra.mxu0 0.0
        %4719 = vmatprep.subr.mxu0 0.0
        %4720 = vmatpush1.msra.mxu0 0.0
        %4721 = vmatprep.subr.mxu0 0.0
        %4722 = vmatpush1.msra.mxu0 0.0
        %4723 = vmatprep.subr.mxu0 0.0
        %4724 = vmatpush1.msra.mxu0 0.0
        %4725 = vmatprep.subr.mxu0 0.0
        %4726 = vmatpush1.msra.mxu0 0.0
        %4727 = vmatprep.subr.mxu0 0.0
        %4728 = vmatpush1.msra.mxu0 0.0
        %4729 = vmatprep.subr.mxu0 0.0
        %4730 = vmatpush1.msra.mxu0 0.0
        %4731 = vmatprep.subr.mxu0 0.0
        %4732 = vmatpush1.msra.mxu0 0.0
        %4733 = vmatprep.subr.mxu0 0.0
        %4734 = vmatpush1.msra.mxu0 0.0
        %4735 = vmatprep.subr.mxu0 0.0
        %4736 = vmatpush1.msra.mxu0 0.0
        %4737 = vmatprep.subr.mxu0 0.0
        %4738 = vmatpush1.msra.mxu0 0.0
        %4739 = vmatprep.subr.mxu0 0.0
        %4740 = vmatpush1.msra.mxu0 0.0
        %4741 = vmatprep.subr.mxu0 0.0
        %4742 = vmatpush1.msra.mxu0 0.0
        %4743 = vmatprep.mubr.f32.mxu0 0.0
        %4744 = vmatmul.mubr.f32.gmra.mrb[0].mxu0 %v3437
        %v4745 = vpop.f32.mrb[0].mxu0
        %v4746 = vadd.f32 0.0, %v4745
        %v4747 = vpop.f32.mrb[0].mxu0
        %4748 = vmatprep.mubr.f32.mxu0 0.0
        %4749 = vmatmul.mubr.f32.gmra.mrb[0].mxu0 %v3439
        %v4750 = vpop.f32.mrb[0].mxu0
        %v4751 = vadd.f32 0.0, %v4750
        %v4752 = vpop.f32.mrb[0].mxu0
        %4753 = vmatprep.mubr.f32.mxu0 0.0
        %4754 = vmatmul.mubr.f32.gmra.mrb[0].mxu0 %v3441
        %v4755 = vpop.f32.mrb[0].mxu0
        %v4756 = vadd.f32 0.0, %v4755
        %v4757 = vpop.f32.mrb[0].mxu0
        %4758 = vmatprep.mubr.f32.mxu0 0.0
        %4759 = vmatmul.mubr.f32.gmra.mrb[0].mxu0 %v3443
        %v4760 = vpop.f32.mrb[0].mxu0
        %v4761 = vadd.f32 0.0, %v4760
        %v4762 = vpop.f32.mrb[0].mxu0
        %4763 = vmatprep.mubr.f32.mxu0 0.0
        %4764 = vmatmul.mubr.f32.gmra.mrb[0].mxu0 %v3445
        %v4765 = vpop.f32.mrb[0].mxu0
        %v4766 = vadd.f32 0.0, %v4765
        %v4767 = vpop.f32.mrb[0].mxu0
        %4768 = vmatprep.mubr.f32.mxu0 0.0
        %4769 = vmatmul.mubr.f32.gmra.mrb[0].mxu0 %v3447
        %v4770 = vpop.f32.mrb[0].mxu0
        %v4771 = vadd.f32 0.0, %v4770
        %v4772 = vpop.f32.mrb[0].mxu0
        %4773 = vmatprep.mubr.f32.mxu0 0.0
        %4774 = vmatmul.mubr.f32.gmra.mrb[0].mxu0 %v3449
        %v4775 = vpop.f32.mrb[0].mxu0
        %v4776 = vadd.f32 0.0, %v4775
        %v4777 = vpop.f32.mrb[0].mxu0
        %4778 = vmatprep.mubr.f32.mxu0 0.0
        %4779 = vmatmul.mubr.f32.gmra.mrb[0].mxu0 %v3451
        %v4780 = vpop.f32.mrb[0].mxu0
        %v4781 = vadd.f32 0.0, %v4780
        %v4782 = vpop.f32.mrb[0].mxu0
        %4783 = vmatprep.mubr.f32.mxu0 0.0
        %4784 = vmatmul.mubr.f32.gmra.mrb[0].mxu0 %v3453
        %v4785 = vpop.f32.mrb[0].mxu0
        %v4786 = vadd.f32 0.0, %v4785
        %v4787 = vpop.f32.mrb[0].mxu0
        %4788 = vmatprep.mubr.f32.mxu0 0.0
        %4789 = vmatmul.mubr.f32.gmra.mrb[0].mxu0 %v3455
        %v4790 = vpop.f32.mrb[0].mxu0
        %v4791 = vadd.f32 0.0, %v4790
        %v4792 = vpop.f32.mrb[0].mxu0
        %4793 = vmatprep.mubr.f32.mxu0 0.0
        %4794 = vmatmul.mubr.f32.gmra.mrb[0].mxu0 %v3457
        %v4795 = vpop.f32.mrb[0].mxu0
        %v4796 = vadd.f32 0.0, %v4795
        %v4797 = vpop.f32.mrb[0].mxu0
        %4798 = vmatprep.mubr.f32.mxu0 0.0
        %4799 = vmatmul.mubr.f32.gmra.mrb[0].mxu0 %v3459
        %v4800 = vpop.f32.mrb[0].mxu0
        %v4801 = vadd.f32 0.0, %v4800
        %v4802 = vpop.f32.mrb[0].mxu0
        %4803 = vmatprep.mubr.f32.mxu0 0.0
        %4804 = vmatmul.mubr.f32.gmra.mrb[0].mxu0 %v3461
        %v4805 = vpop.f32.mrb[0].mxu0
        %v4806 = vadd.f32 0.0, %v4805
        %v4807 = vpop.f32.mrb[0].mxu0
        %4808 = vmatprep.mubr.f32.mxu0 0.0
        %4809 = vmatmul.mubr.f32.gmra.mrb[0].mxu0 %v3463
        %v4810 = vpop.f32.mrb[0].mxu0
        %v4811 = vadd.f32 0.0, %v4810
        %v4812 = vpop.f32.mrb[0].mxu0
        %4813 = vmatprep.mubr.f32.mxu0 0.0
        %4814 = vmatmul.mubr.f32.gmra.mrb[0].mxu0 %v3465
        %v4815 = vpop.f32.mrb[0].mxu0
        %v4816 = vadd.f32 0.0, %v4815
        %v4817 = vpop.f32.mrb[0].mxu0
        %4818 = vmatprep.mubr.f32.mxu0 0.0
        %4819 = vmatmul.mubr.f32.gmra.mrb[0].mxu0 %v3467
        %v4820 = vpop.f32.mrb[0].mxu0
        %v4821 = vadd.f32 0.0, %v4820
        %v4822 = vpop.f32.mrb[0].mxu0
        %4823 = vmatprep.mubr.f32.mxu0 0.0
        %4824 = vmatmul.mubr.f32.gmra.mrb[0].mxu0 %v3469
        %v4825 = vpop.f32.mrb[0].mxu0
        %v4826 = vadd.f32 0.0, %v4825
        %v4827 = vpop.f32.mrb[0].mxu0
        %4828 = vmatprep.mubr.f32.mxu0 0.0
        %4829 = vmatmul.mubr.f32.gmra.mrb[0].mxu0 %v3471
        %v4830 = vpop.f32.mrb[0].mxu0
        %v4831 = vadd.f32 0.0, %v4830
        %v4832 = vpop.f32.mrb[0].mxu0
        %4833 = vmatprep.mubr.f32.mxu0 0.0
        %4834 = vmatmul.mubr.f32.gmra.mrb[0].mxu0 %v3473
        %v4835 = vpop.f32.mrb[0].mxu0
        %v4836 = vadd.f32 0.0, %v4835
        %v4837 = vpop.f32.mrb[0].mxu0
        %4838 = vmatprep.mubr.f32.mxu0 0.0
        %4839 = vmatmul.mubr.f32.gmra.mrb[0].mxu0 %v3475
        %v4840 = vpop.f32.mrb[0].mxu0
        %v4841 = vadd.f32 0.0, %v4840
        %v4842 = vpop.f32.mrb[0].mxu0
        %4843 = vmatprep.mubr.f32.mxu0 0.0
        %4844 = vmatmul.mubr.f32.gmra.mrb[0].mxu0 %v3477
        %v4845 = vpop.f32.mrb[0].mxu0
        %v4846 = vadd.f32 0.0, %v4845
        %v4847 = vpop.f32.mrb[0].mxu0
        %4848 = vmatprep.mubr.f32.mxu0 0.0
        %4849 = vmatmul.mubr.f32.gmra.mrb[0].mxu0 %v3479
        %v4850 = vpop.f32.mrb[0].mxu0
        %v4851 = vadd.f32 0.0, %v4850
        %v4852 = vpop.f32.mrb[0].mxu0
        %4853 = vmatprep.mubr.f32.mxu0 0.0
        %4854 = vmatmul.mubr.f32.gmra.mrb[0].mxu0 %v3481
        %v4855 = vpop.f32.mrb[0].mxu0
        %v4856 = vadd.f32 0.0, %v4855
        %v4857 = vpop.f32.mrb[0].mxu0
        %4858 = vmatprep.mubr.f32.mxu0 0.0
        %4859 = vmatmul.mubr.f32.gmra.mrb[0].mxu0 %v3483
        %v4860 = vpop.f32.mrb[0].mxu0
        %v4861 = vadd.f32 0.0, %v4860
        %v4862 = vpop.f32.mrb[0].mxu0
        %4863 = vmatprep.mubr.f32.mxu0 0.0
        %4864 = vmatmul.mubr.f32.gmra.mrb[0].mxu0 %v3485
        %v4865 = vpop.f32.mrb[0].mxu0
        %v4866 = vadd.f32 0.0, %v4865
        %v4867 = vpop.f32.mrb[0].mxu0
        %4868 = vmatprep.mubr.f32.mxu0 0.0
        %4869 = vmatmul.mubr.f32.gmra.mrb[0].mxu0 %v3487
        %v4870 = vpop.f32.mrb[0].mxu0
        %v4871 = vadd.f32 0.0, %v4870
        %v4872 = vpop.f32.mrb[0].mxu0
        %4873 = vmatprep.mubr.f32.mxu0 0.0
        %4874 = vmatmul.mubr.f32.gmra.mrb[0].mxu0 %v3489
        %v4875 = vpop.f32.mrb[0].mxu0
        %v4876 = vadd.f32 0.0, %v4875
        %v4877 = vpop.f32.mrb[0].mxu0
        %4878 = vmatprep.mubr.f32.mxu0 0.0
        %4879 = vmatmul.mubr.f32.gmra.mrb[0].mxu0 %v3491
        %v4880 = vpop.f32.mrb[0].mxu0
        %v4881 = vadd.f32 0.0, %v4880
        %v4882 = vpop.f32.mrb[0].mxu0
        %4883 = vmatprep.mubr.f32.mxu0 0.0
        %4884 = vmatmul.mubr.f32.gmra.mrb[0].mxu0 %v3493
        %v4885 = vpop.f32.mrb[0].mxu0
        %v4886 = vadd.f32 0.0, %v4885
        %v4887 = vpop.f32.mrb[0].mxu0
        %4888 = vmatprep.mubr.f32.mxu0 0.0
        %4889 = vmatmul.mubr.f32.gmra.mrb[0].mxu0 %v3495
        %v4890 = vpop.f32.mrb[0].mxu0
        %v4891 = vadd.f32 0.0, %v4890
        %v4892 = vpop.f32.mrb[0].mxu0
        %4893 = vmatprep.mubr.f32.mxu0 0.0
        %4894 = vmatmul.mubr.f32.gmra.mrb[0].mxu0 %v4675
        %v4895 = vpop.f32.mrb[0].mxu0
        %v4896 = vadd.f32 0.0, %v4895
        %v4897 = vpop.f32.mrb[0].mxu0
        %4898 = vmatprep.mubr.f32.mxu0 0.0
        %4899 = vmatmul.mubr.f32.gmra.mrb[0].mxu0 %v4677
        %v4900 = vpop.f32.mrb[0].mxu0
        %v4901 = vadd.f32 0.0, %v4900
        %v4902 = vpop.f32.mrb[0].mxu0
        %4903 = vdwg.mxu0
        %v4904 = vadd.f32 %v4637, %v4746
        %v4905 = vadd.f32 %v4638, %v4751
        %v4906 = vadd.f32 %v4639, %v4756
        %v4907 = vadd.f32 %v4640, %v4761
        %v4908 = vadd.f32 %v4641, %v4766
        %v4909 = vadd.f32 %v4642, %v4771
        %v4910 = vadd.f32 %v4643, %v4776
        %v4911 = vadd.f32 %v4644, %v4781
        %v4912 = vadd.f32 %v4645, %v4786
        %v4913 = vadd.f32 %v4646, %v4791
        %v4914 = vadd.f32 %v4647, %v4796
        %v4915 = vadd.f32 %v4648, %v4801
        %v4916 = vadd.f32 %v4649, %v4806
        %v4917 = vadd.f32 %v4650, %v4811
        %v4918 = vadd.f32 %v4651, %v4816
        %v4919 = vadd.f32 %v4652, %v4821
        %v4920 = vadd.f32 %v4653, %v4826
        %v4921 = vadd.f32 %v4654, %v4831
        %v4922 = vadd.f32 %v4655, %v4836
        %v4923 = vadd.f32 %v4656, %v4841
        %v4924 = vadd.f32 %v4657, %v4846
        %v4925 = vadd.f32 %v4658, %v4851
        %v4926 = vadd.f32 %v4659, %v4856
        %v4927 = vadd.f32 %v4660, %v4861
        %v4928 = vadd.f32 %v4661, %v4866
        %v4929 = vadd.f32 %v4662, %v4871
        %v4930 = vadd.f32 %v4663, %v4876
        %v4931 = vadd.f32 %v4664, %v4881
        %v4932 = vadd.f32 %v4665, %v4886
        %v4933 = vadd.f32 %v4666, %v4891
        %v4934 = vadd.f32 %v4667, %v4896
        %v4935 = vadd.f32 %v4668, %v4901
        %v4936 = vrot.slane %v3310, 2
        %v4937 = vrot.slane %v3262, 2
        %v4938 = vsel %vm1123, %v4936, %v4937
        %v4939 = vrot.slane %v3326, 2
        %v4940 = vsel %vm1123, %v4937, %v4939
        %v4941 = vsel %vm3432, %v4938, 0
        %v4943 = vsel %vm3432, %v4940, 0
        %4945 = vmatprep.subr.mxu0 0.0
        %4946 = vmatpush1.msra.mxu0 %v237
        %4947 = vmatprep.subr.mxu0 0.0
        %4948 = vmatpush1.msra.mxu0 0.0
        %4949 = vmatprep.subr.mxu0 0.0
        %4950 = vmatpush1.msra.mxu0 0.0
        %4951 = vmatprep.subr.mxu0 0.0
        %4952 = vmatpush1.msra.mxu0 0.0
        %4953 = vmatprep.subr.mxu0 0.0
        %4954 = vmatpush1.msra.mxu0 0.0
        %4955 = vmatprep.subr.mxu0 0.0
        %4956 = vmatpush1.msra.mxu0 0.0
        %4957 = vmatprep.subr.mxu0 0.0
        %4958 = vmatpush1.msra.mxu0 0.0
        %4959 = vmatprep.subr.mxu0 0.0
        %4960 = vmatpush1.msra.mxu0 0.0
        %4961 = vmatprep.subr.mxu0 0.0
        %4962 = vmatpush1.msra.mxu0 0.0
        %4963 = vmatprep.subr.mxu0 0.0
        %4964 = vmatpush1.msra.mxu0 0.0
        %4965 = vmatprep.subr.mxu0 0.0
        %4966 = vmatpush1.msra.mxu0 0.0
        %4967 = vmatprep.subr.mxu0 0.0
        %4968 = vmatpush1.msra.mxu0 0.0
        %4969 = vmatprep.subr.mxu0 0.0
        %4970 = vmatpush1.msra.mxu0 0.0
        %4971 = vmatprep.subr.mxu0 0.0
        %4972 = vmatpush1.msra.mxu0 0.0
        %4973 = vmatprep.subr.mxu0 0.0
        %4974 = vmatpush1.msra.mxu0 0.0
        %4975 = vmatprep.subr.mxu0 0.0
        %4976 = vmatpush1.msra.mxu0 0.0
        %4977 = vmatprep.subr.mxu0 0.0
        %4978 = vmatpush1.msra.mxu0 0.0
        %4979 = vmatprep.subr.mxu0 0.0
        %4980 = vmatpush1.msra.mxu0 0.0
        %4981 = vmatprep.subr.mxu0 0.0
        %4982 = vmatpush1.msra.mxu0 0.0
        %4983 = vmatprep.subr.mxu0 0.0
        %4984 = vmatpush1.msra.mxu0 0.0
        %4985 = vmatprep.subr.mxu0 0.0
        %4986 = vmatpush1.msra.mxu0 0.0
        %4987 = vmatprep.subr.mxu0 0.0
        %4988 = vmatpush1.msra.mxu0 0.0
        %4989 = vmatprep.subr.mxu0 0.0
        %4990 = vmatpush1.msra.mxu0 0.0
        %4991 = vmatprep.subr.mxu0 0.0
        %4992 = vmatpush1.msra.mxu0 0.0
        %4993 = vmatprep.subr.mxu0 0.0
        %4994 = vmatpush1.msra.mxu0 0.0
        %4995 = vmatprep.subr.mxu0 0.0
        %4996 = vmatpush1.msra.mxu0 0.0
        %4997 = vmatprep.subr.mxu0 0.0
        %4998 = vmatpush1.msra.mxu0 0.0
        %4999 = vmatprep.subr.mxu0 0.0
        %5000 = vmatpush1.msra.mxu0 0.0
        %5001 = vmatprep.subr.mxu0 0.0
        %5002 = vmatpush1.msra.mxu0 0.0
        %5003 = vmatprep.subr.mxu0 0.0
        %5004 = vmatpush1.msra.mxu0 0.0
        %5005 = vmatprep.subr.mxu0 0.0
        %5006 = vmatpush1.msra.mxu0 0.0
        %5007 = vmatprep.subr.mxu0 0.0
        %5008 = vmatpush1.msra.mxu0 0.0
        %5009 = vmatprep.mubr.f32.mxu0 0.0
        %5010 = vmatmul.mubr.f32.gmra.mrb[0].mxu0 %v4090
        %v5011 = vpop.f32.mrb[0].mxu0
        %v5012 = vadd.f32 0.0, %v5011
        %v5013 = vpop.f32.mrb[0].mxu0
        %5014 = vmatprep.mubr.f32.mxu0 0.0
        %5015 = vmatmul.mubr.f32.gmra.mrb[0].mxu0 %v4092
        %v5016 = vpop.f32.mrb[0].mxu0
        %v5017 = vadd.f32 0.0, %v5016
        %v5018 = vpop.f32.mrb[0].mxu0
        %5019 = vmatprep.mubr.f32.mxu0 0.0
        %5020 = vmatmul.mubr.f32.gmra.mrb[0].mxu0 %v4094
        %v5021 = vpop.f32.mrb[0].mxu0
        %v5022 = vadd.f32 0.0, %v5021
        %v5023 = vpop.f32.mrb[0].mxu0
        %5024 = vmatprep.mubr.f32.mxu0 0.0
        %5025 = vmatmul.mubr.f32.gmra.mrb[0].mxu0 %v4096
        %v5026 = vpop.f32.mrb[0].mxu0
        %v5027 = vadd.f32 0.0, %v5026
        %v5028 = vpop.f32.mrb[0].mxu0
        %5029 = vmatprep.mubr.f32.mxu0 0.0
        %5030 = vmatmul.mubr.f32.gmra.mrb[0].mxu0 %v4098
        %v5031 = vpop.f32.mrb[0].mxu0
        %v5032 = vadd.f32 0.0, %v5031
        %v5033 = vpop.f32.mrb[0].mxu0
        %5034 = vmatprep.mubr.f32.mxu0 0.0
        %5035 = vmatmul.mubr.f32.gmra.mrb[0].mxu0 %v4100
        %v5036 = vpop.f32.mrb[0].mxu0
        %v5037 = vadd.f32 0.0, %v5036
        %v5038 = vpop.f32.mrb[0].mxu0
        %5039 = vmatprep.mubr.f32.mxu0 0.0
        %5040 = vmatmul.mubr.f32.gmra.mrb[0].mxu0 %v4102
        %v5041 = vpop.f32.mrb[0].mxu0
        %v5042 = vadd.f32 0.0, %v5041
        %v5043 = vpop.f32.mrb[0].mxu0
        %5044 = vmatprep.mubr.f32.mxu0 0.0
        %5045 = vmatmul.mubr.f32.gmra.mrb[0].mxu0 %v4104
        %v5046 = vpop.f32.mrb[0].mxu0
        %v5047 = vadd.f32 0.0, %v5046
        %v5048 = vpop.f32.mrb[0].mxu0
        %5049 = vmatprep.mubr.f32.mxu0 0.0
        %5050 = vmatmul.mubr.f32.gmra.mrb[0].mxu0 %v4106
        %v5051 = vpop.f32.mrb[0].mxu0
        %v5052 = vadd.f32 0.0, %v5051
        %v5053 = vpop.f32.mrb[0].mxu0
        %5054 = vmatprep.mubr.f32.mxu0 0.0
        %5055 = vmatmul.mubr.f32.gmra.mrb[0].mxu0 %v4108
        %v5056 = vpop.f32.mrb[0].mxu0
        %v5057 = vadd.f32 0.0, %v5056
        %v5058 = vpop.f32.mrb[0].mxu0
        %5059 = vmatprep.mubr.f32.mxu0 0.0
        %5060 = vmatmul.mubr.f32.gmra.mrb[0].mxu0 %v4110
        %v5061 = vpop.f32.mrb[0].mxu0
        %v5062 = vadd.f32 0.0, %v5061
        %v5063 = vpop.f32.mrb[0].mxu0
        %5064 = vmatprep.mubr.f32.mxu0 0.0
        %5065 = vmatmul.mubr.f32.gmra.mrb[0].mxu0 %v4112
        %v5066 = vpop.f32.mrb[0].mxu0
        %v5067 = vadd.f32 0.0, %v5066
        %v5068 = vpop.f32.mrb[0].mxu0
        %5069 = vmatprep.mubr.f32.mxu0 0.0
        %5070 = vmatmul.mubr.f32.gmra.mrb[0].mxu0 %v4114
        %v5071 = vpop.f32.mrb[0].mxu0
        %v5072 = vadd.f32 0.0, %v5071
        %v5073 = vpop.f32.mrb[0].mxu0
        %5074 = vmatprep.mubr.f32.mxu0 0.0
        %5075 = vmatmul.mubr.f32.gmra.mrb[0].mxu0 %v4116
        %v5076 = vpop.f32.mrb[0].mxu0
        %v5077 = vadd.f32 0.0, %v5076
        %v5078 = vpop.f32.mrb[0].mxu0
        %5079 = vmatprep.mubr.f32.mxu0 0.0
        %5080 = vmatmul.mubr.f32.gmra.mrb[0].mxu0 %v4118
        %v5081 = vpop.f32.mrb[0].mxu0
        %v5082 = vadd.f32 0.0, %v5081
        %v5083 = vpop.f32.mrb[0].mxu0
        %5084 = vmatprep.mubr.f32.mxu0 0.0
        %5085 = vmatmul.mubr.f32.gmra.mrb[0].mxu0 %v4120
        %v5086 = vpop.f32.mrb[0].mxu0
        %v5087 = vadd.f32 0.0, %v5086
        %v5088 = vpop.f32.mrb[0].mxu0
        %5089 = vmatprep.mubr.f32.mxu0 0.0
        %5090 = vmatmul.mubr.f32.gmra.mrb[0].mxu0 %v4122
        %v5091 = vpop.f32.mrb[0].mxu0
        %v5092 = vadd.f32 0.0, %v5091
        %v5093 = vpop.f32.mrb[0].mxu0
        %5094 = vmatprep.mubr.f32.mxu0 0.0
        %5095 = vmatmul.mubr.f32.gmra.mrb[0].mxu0 %v4124
        %v5096 = vpop.f32.mrb[0].mxu0
        %v5097 = vadd.f32 0.0, %v5096
        %v5098 = vpop.f32.mrb[0].mxu0
        %5099 = vmatprep.mubr.f32.mxu0 0.0
        %5100 = vmatmul.mubr.f32.gmra.mrb[0].mxu0 %v4126
        %v5101 = vpop.f32.mrb[0].mxu0
        %v5102 = vadd.f32 0.0, %v5101
        %v5103 = vpop.f32.mrb[0].mxu0
        %5104 = vmatprep.mubr.f32.mxu0 0.0
        %5105 = vmatmul.mubr.f32.gmra.mrb[0].mxu0 %v4128
        %v5106 = vpop.f32.mrb[0].mxu0
        %v5107 = vadd.f32 0.0, %v5106
        %v5108 = vpop.f32.mrb[0].mxu0
        %5109 = vmatprep.mubr.f32.mxu0 0.0
        %5110 = vmatmul.mubr.f32.gmra.mrb[0].mxu0 %v4130
        %v5111 = vpop.f32.mrb[0].mxu0
        %v5112 = vadd.f32 0.0, %v5111
        %v5113 = vpop.f32.mrb[0].mxu0
        %5114 = vmatprep.mubr.f32.mxu0 0.0
        %5115 = vmatmul.mubr.f32.gmra.mrb[0].mxu0 %v4132
        %v5116 = vpop.f32.mrb[0].mxu0
        %v5117 = vadd.f32 0.0, %v5116
        %v5118 = vpop.f32.mrb[0].mxu0
        %5119 = vmatprep.mubr.f32.mxu0 0.0
        %5120 = vmatmul.mubr.f32.gmra.mrb[0].mxu0 %v4134
        %v5121 = vpop.f32.mrb[0].mxu0
        %v5122 = vadd.f32 0.0, %v5121
        %v5123 = vpop.f32.mrb[0].mxu0
        %5124 = vmatprep.mubr.f32.mxu0 0.0
        %5125 = vmatmul.mubr.f32.gmra.mrb[0].mxu0 %v4136
        %v5126 = vpop.f32.mrb[0].mxu0
        %v5127 = vadd.f32 0.0, %v5126
        %v5128 = vpop.f32.mrb[0].mxu0
        %5129 = vmatprep.mubr.f32.mxu0 0.0
        %5130 = vmatmul.mubr.f32.gmra.mrb[0].mxu0 %v4138
        %v5131 = vpop.f32.mrb[0].mxu0
        %v5132 = vadd.f32 0.0, %v5131
        %v5133 = vpop.f32.mrb[0].mxu0
        %5134 = vmatprep.mubr.f32.mxu0 0.0
        %5135 = vmatmul.mubr.f32.gmra.mrb[0].mxu0 %v4140
        %v5136 = vpop.f32.mrb[0].mxu0
        %v5137 = vadd.f32 0.0, %v5136
        %v5138 = vpop.f32.mrb[0].mxu0
        %5139 = vmatprep.mubr.f32.mxu0 0.0
        %5140 = vmatmul.mubr.f32.gmra.mrb[0].mxu0 %v4142
        %v5141 = vpop.f32.mrb[0].mxu0
        %v5142 = vadd.f32 0.0, %v5141
        %v5143 = vpop.f32.mrb[0].mxu0
        %5144 = vmatprep.mubr.f32.mxu0 0.0
        %5145 = vmatmul.mubr.f32.gmra.mrb[0].mxu0 %v4144
        %v5146 = vpop.f32.mrb[0].mxu0
        %v5147 = vadd.f32 0.0, %v5146
        %v5148 = vpop.f32.mrb[0].mxu0
        %5149 = vmatprep.mubr.f32.mxu0 0.0
        %5150 = vmatmul.mubr.f32.gmra.mrb[0].mxu0 %v4146
        %v5151 = vpop.f32.mrb[0].mxu0
        %v5152 = vadd.f32 0.0, %v5151
        %v5153 = vpop.f32.mrb[0].mxu0
        %5154 = vmatprep.mubr.f32.mxu0 0.0
        %5155 = vmatmul.mubr.f32.gmra.mrb[0].mxu0 %v4148
        %v5156 = vpop.f32.mrb[0].mxu0
        %v5157 = vadd.f32 0.0, %v5156
        %v5158 = vpop.f32.mrb[0].mxu0
        %5159 = vmatprep.mubr.f32.mxu0 0.0
        %5160 = vmatmul.mubr.f32.gmra.mrb[0].mxu0 %v4941
        %v5161 = vpop.f32.mrb[0].mxu0
        %v5162 = vadd.f32 0.0, %v5161
        %v5163 = vpop.f32.mrb[0].mxu0
        %5164 = vmatprep.mubr.f32.mxu0 0.0
        %5165 = vmatmul.mubr.f32.gmra.mrb[0].mxu0 %v4943
        %v5166 = vpop.f32.mrb[0].mxu0
        %v5167 = vadd.f32 0.0, %v5166
        %v5168 = vpop.f32.mrb[0].mxu0
        %5169 = vdwg.mxu0
        %v5170 = vadd.f32 %v4904, %v5012
        %v5171 = vadd.f32 %v4905, %v5017
        %v5172 = vadd.f32 %v4906, %v5022
        %v5173 = vadd.f32 %v4907, %v5027
        %v5174 = vadd.f32 %v4908, %v5032
        %v5175 = vadd.f32 %v4909, %v5037
        %v5176 = vadd.f32 %v4910, %v5042
        %v5177 = vadd.f32 %v4911, %v5047
        %v5178 = vadd.f32 %v4912, %v5052
        %v5179 = vadd.f32 %v4913, %v5057
        %v5180 = vadd.f32 %v4914, %v5062
        %v5181 = vadd.f32 %v4915, %v5067
        %v5182 = vadd.f32 %v4916, %v5072
        %v5183 = vadd.f32 %v4917, %v5077
        %v5184 = vadd.f32 %v4918, %v5082
        %v5185 = vadd.f32 %v4919, %v5087
        %v5186 = vadd.f32 %v4920, %v5092
        %v5187 = vadd.f32 %v4921, %v5097
        %v5188 = vadd.f32 %v4922, %v5102
        %v5189 = vadd.f32 %v4923, %v5107
        %v5190 = vadd.f32 %v4924, %v5112
        %v5191 = vadd.f32 %v4925, %v5117
        %v5192 = vadd.f32 %v4926, %v5122
        %v5193 = vadd.f32 %v4927, %v5127
        %v5194 = vadd.f32 %v4928, %v5132
        %v5195 = vadd.f32 %v4929, %v5137
        %v5196 = vadd.f32 %v4930, %v5142
        %v5197 = vadd.f32 %v4931, %v5147
        %v5198 = vadd.f32 %v4932, %v5152
        %v5199 = vadd.f32 %v4933, %v5157
        %v5200 = vadd.f32 %v4934, %v5162
        %v5201 = vadd.f32 %v4935, %v5167
        %5202 = vmatprep.subr.mxu0 0.0
        %5203 = vmatpush1.msra.mxu0 %v238
        %5204 = vmatprep.subr.mxu0 0.0
        %5205 = vmatpush1.msra.mxu0 0.0
        %5206 = vmatprep.subr.mxu0 0.0
        %5207 = vmatpush1.msra.mxu0 0.0
        %5208 = vmatprep.subr.mxu0 0.0
        %5209 = vmatpush1.msra.mxu0 0.0
        %5210 = vmatprep.subr.mxu0 0.0
        %5211 = vmatpush1.msra.mxu0 0.0
        %5212 = vmatprep.subr.mxu0 0.0
        %5213 = vmatpush1.msra.mxu0 0.0
        %5214 = vmatprep.subr.mxu0 0.0
        %5215 = vmatpush1.msra.mxu0 0.0
        %5216 = vmatprep.subr.mxu0 0.0
        %5217 = vmatpush1.msra.mxu0 0.0
        %5218 = vmatprep.subr.mxu0 0.0
        %5219 = vmatpush1.msra.mxu0 0.0
        %5220 = vmatprep.subr.mxu0 0.0
        %5221 = vmatpush1.msra.mxu0 0.0
        %5222 = vmatprep.subr.mxu0 0.0
        %5223 = vmatpush1.msra.mxu0 0.0
        %5224 = vmatprep.subr.mxu0 0.0
        %5225 = vmatpush1.msra.mxu0 0.0
        %5226 = vmatprep.subr.mxu0 0.0
        %5227 = vmatpush1.msra.mxu0 0.0
        %5228 = vmatprep.subr.mxu0 0.0
        %5229 = vmatpush1.msra.mxu0 0.0
        %5230 = vmatprep.subr.mxu0 0.0
        %5231 = vmatpush1.msra.mxu0 0.0
        %5232 = vmatprep.subr.mxu0 0.0
        %5233 = vmatpush1.msra.mxu0 0.0
        %5234 = vmatprep.subr.mxu0 0.0
        %5235 = vmatpush1.msra.mxu0 0.0
        %5236 = vmatprep.subr.mxu0 0.0
        %5237 = vmatpush1.msra.mxu0 0.0
        %5238 = vmatprep.subr.mxu0 0.0
        %5239 = vmatpush1.msra.mxu0 0.0
        %5240 = vmatprep.subr.mxu0 0.0
        %5241 = vmatpush1.msra.mxu0 0.0
        %5242 = vmatprep.subr.mxu0 0.0
        %5243 = vmatpush1.msra.mxu0 0.0
        %5244 = vmatprep.subr.mxu0 0.0
        %5245 = vmatpush1.msra.mxu0 0.0
        %5246 = vmatprep.subr.mxu0 0.0
        %5247 = vmatpush1.msra.mxu0 0.0
        %5248 = vmatprep.subr.mxu0 0.0
        %5249 = vmatpush1.msra.mxu0 0.0
        %5250 = vmatprep.subr.mxu0 0.0
        %5251 = vmatpush1.msra.mxu0 0.0
        %5252 = vmatprep.subr.mxu0 0.0
        %5253 = vmatpush1.msra.mxu0 0.0
        %5254 = vmatprep.subr.mxu0 0.0
        %5255 = vmatpush1.msra.mxu0 0.0
        %5256 = vmatprep.subr.mxu0 0.0
        %5257 = vmatpush1.msra.mxu0 0.0
        %5258 = vmatprep.subr.mxu0 0.0
        %5259 = vmatpush1.msra.mxu0 0.0
        %5260 = vmatprep.subr.mxu0 0.0
        %5261 = vmatpush1.msra.mxu0 0.0
        %5262 = vmatprep.subr.mxu0 0.0
        %5263 = vmatpush1.msra.mxu0 0.0
        %5264 = vmatprep.subr.mxu0 0.0
        %5265 = vmatpush1.msra.mxu0 0.0
        %5266 = vmatprep.mubr.f32.mxu0 0.0
        %5267 = vmatmul.mubr.f32.gmra.mrb[0].mxu0 %v3730
        %v5268 = vpop.f32.mrb[0].mxu0
        %v5269 = vadd.f32 0.0, %v5268
        %v5270 = vpop.f32.mrb[0].mxu0
        %5271 = vmatprep.mubr.f32.mxu0 0.0
        %5272 = vmatmul.mubr.f32.gmra.mrb[0].mxu0 %v3732
        %v5273 = vpop.f32.mrb[0].mxu0
        %v5274 = vadd.f32 0.0, %v5273
        %v5275 = vpop.f32.mrb[0].mxu0
        %5276 = vmatprep.mubr.f32.mxu0 0.0
        %5277 = vmatmul.mubr.f32.gmra.mrb[0].mxu0 %v3734
        %v5278 = vpop.f32.mrb[0].mxu0
        %v5279 = vadd.f32 0.0, %v5278
        %v5280 = vpop.f32.mrb[0].mxu0
        %5281 = vmatprep.mubr.f32.mxu0 0.0
        %5282 = vmatmul.mubr.f32.gmra.mrb[0].mxu0 %v3736
        %v5283 = vpop.f32.mrb[0].mxu0
        %v5284 = vadd.f32 0.0, %v5283
        %v5285 = vpop.f32.mrb[0].mxu0
        %5286 = vmatprep.mubr.f32.mxu0 0.0
        %5287 = vmatmul.mubr.f32.gmra.mrb[0].mxu0 %v3738
        %v5288 = vpop.f32.mrb[0].mxu0
        %v5289 = vadd.f32 0.0, %v5288
        %v5290 = vpop.f32.mrb[0].mxu0
        %5291 = vmatprep.mubr.f32.mxu0 0.0
        %5292 = vmatmul.mubr.f32.gmra.mrb[0].mxu0 %v3740
        %v5293 = vpop.f32.mrb[0].mxu0
        %v5294 = vadd.f32 0.0, %v5293
        %v5295 = vpop.f32.mrb[0].mxu0
        %5296 = vmatprep.mubr.f32.mxu0 0.0
        %5297 = vmatmul.mubr.f32.gmra.mrb[0].mxu0 %v3742
        %v5298 = vpop.f32.mrb[0].mxu0
        %v5299 = vadd.f32 0.0, %v5298
        %v5300 = vpop.f32.mrb[0].mxu0
        %5301 = vmatprep.mubr.f32.mxu0 0.0
        %5302 = vmatmul.mubr.f32.gmra.mrb[0].mxu0 %v3744
        %v5303 = vpop.f32.mrb[0].mxu0
        %v5304 = vadd.f32 0.0, %v5303
        %v5305 = vpop.f32.mrb[0].mxu0
        %5306 = vmatprep.mubr.f32.mxu0 0.0
        %5307 = vmatmul.mubr.f32.gmra.mrb[0].mxu0 %v3746
        %v5308 = vpop.f32.mrb[0].mxu0
        %v5309 = vadd.f32 0.0, %v5308
        %v5310 = vpop.f32.mrb[0].mxu0
        %5311 = vmatprep.mubr.f32.mxu0 0.0
        %5312 = vmatmul.mubr.f32.gmra.mrb[0].mxu0 %v3748
        %v5313 = vpop.f32.mrb[0].mxu0
        %v5314 = vadd.f32 0.0, %v5313
        %v5315 = vpop.f32.mrb[0].mxu0
        %5316 = vmatprep.mubr.f32.mxu0 0.0
        %5317 = vmatmul.mubr.f32.gmra.mrb[0].mxu0 %v3750
        %v5318 = vpop.f32.mrb[0].mxu0
        %v5319 = vadd.f32 0.0, %v5318
        %v5320 = vpop.f32.mrb[0].mxu0
        %5321 = vmatprep.mubr.f32.mxu0 0.0
        %5322 = vmatmul.mubr.f32.gmra.mrb[0].mxu0 %v3752
        %v5323 = vpop.f32.mrb[0].mxu0
        %v5324 = vadd.f32 0.0, %v5323
        %v5325 = vpop.f32.mrb[0].mxu0
        %5326 = vmatprep.mubr.f32.mxu0 0.0
        %5327 = vmatmul.mubr.f32.gmra.mrb[0].mxu0 %v3754
        %v5328 = vpop.f32.mrb[0].mxu0
        %v5329 = vadd.f32 0.0, %v5328
        %v5330 = vpop.f32.mrb[0].mxu0
        %5331 = vmatprep.mubr.f32.mxu0 0.0
        %5332 = vmatmul.mubr.f32.gmra.mrb[0].mxu0 %v3756
        %v5333 = vpop.f32.mrb[0].mxu0
        %v5334 = vadd.f32 0.0, %v5333
        %v5335 = vpop.f32.mrb[0].mxu0
        %5336 = vmatprep.mubr.f32.mxu0 0.0
        %5337 = vmatmul.mubr.f32.gmra.mrb[0].mxu0 %v3758
        %v5338 = vpop.f32.mrb[0].mxu0
        %v5339 = vadd.f32 0.0, %v5338
        %v5340 = vpop.f32.mrb[0].mxu0
        %5341 = vmatprep.mubr.f32.mxu0 0.0
        %5342 = vmatmul.mubr.f32.gmra.mrb[0].mxu0 %v3760
        %v5343 = vpop.f32.mrb[0].mxu0
        %v5344 = vadd.f32 0.0, %v5343
        %v5345 = vpop.f32.mrb[0].mxu0
        %5346 = vmatprep.mubr.f32.mxu0 0.0
        %5347 = vmatmul.mubr.f32.gmra.mrb[0].mxu0 %v3762
        %v5348 = vpop.f32.mrb[0].mxu0
        %v5349 = vadd.f32 0.0, %v5348
        %v5350 = vpop.f32.mrb[0].mxu0
        %5351 = vmatprep.mubr.f32.mxu0 0.0
        %5352 = vmatmul.mubr.f32.gmra.mrb[0].mxu0 %v3764
        %v5353 = vpop.f32.mrb[0].mxu0
        %v5354 = vadd.f32 0.0, %v5353
        %v5355 = vpop.f32.mrb[0].mxu0
        %5356 = vmatprep.mubr.f32.mxu0 0.0
        %5357 = vmatmul.mubr.f32.gmra.mrb[0].mxu0 %v3766
        %v5358 = vpop.f32.mrb[0].mxu0
        %v5359 = vadd.f32 0.0, %v5358
        %v5360 = vpop.f32.mrb[0].mxu0
        %5361 = vmatprep.mubr.f32.mxu0 0.0
        %5362 = vmatmul.mubr.f32.gmra.mrb[0].mxu0 %v3768
        %v5363 = vpop.f32.mrb[0].mxu0
        %v5364 = vadd.f32 0.0, %v5363
        %v5365 = vpop.f32.mrb[0].mxu0
        %5366 = vmatprep.mubr.f32.mxu0 0.0
        %5367 = vmatmul.mubr.f32.gmra.mrb[0].mxu0 %v3770
        %v5368 = vpop.f32.mrb[0].mxu0
        %v5369 = vadd.f32 0.0, %v5368
        %v5370 = vpop.f32.mrb[0].mxu0
        %5371 = vmatprep.mubr.f32.mxu0 0.0
        %5372 = vmatmul.mubr.f32.gmra.mrb[0].mxu0 %v3772
        %v5373 = vpop.f32.mrb[0].mxu0
        %v5374 = vadd.f32 0.0, %v5373
        %v5375 = vpop.f32.mrb[0].mxu0
        %5376 = vmatprep.mubr.f32.mxu0 0.0
        %5377 = vmatmul.mubr.f32.gmra.mrb[0].mxu0 %v3774
        %v5378 = vpop.f32.mrb[0].mxu0
        %v5379 = vadd.f32 0.0, %v5378
        %v5380 = vpop.f32.mrb[0].mxu0
        %5381 = vmatprep.mubr.f32.mxu0 0.0
        %5382 = vmatmul.mubr.f32.gmra.mrb[0].mxu0 %v3776
        %v5383 = vpop.f32.mrb[0].mxu0
        %v5384 = vadd.f32 0.0, %v5383
        %v5385 = vpop.f32.mrb[0].mxu0
        %5386 = vmatprep.mubr.f32.mxu0 0.0
        %5387 = vmatmul.mubr.f32.gmra.mrb[0].mxu0 %v3778
        %v5388 = vpop.f32.mrb[0].mxu0
        %v5389 = vadd.f32 0.0, %v5388
        %v5390 = vpop.f32.mrb[0].mxu0
        %5391 = vmatprep.mubr.f32.mxu0 0.0
        %5392 = vmatmul.mubr.f32.gmra.mrb[0].mxu0 %v3780
        %v5393 = vpop.f32.mrb[0].mxu0
        %v5394 = vadd.f32 0.0, %v5393
        %v5395 = vpop.f32.mrb[0].mxu0
        %5396 = vmatprep.mubr.f32.mxu0 0.0
        %5397 = vmatmul.mubr.f32.gmra.mrb[0].mxu0 %v3782
        %v5398 = vpop.f32.mrb[0].mxu0
        %v5399 = vadd.f32 0.0, %v5398
        %v5400 = vpop.f32.mrb[0].mxu0
        %5401 = vmatprep.mubr.f32.mxu0 0.0
        %5402 = vmatmul.mubr.f32.gmra.mrb[0].mxu0 %v3784
        %v5403 = vpop.f32.mrb[0].mxu0
        %v5404 = vadd.f32 0.0, %v5403
        %v5405 = vpop.f32.mrb[0].mxu0
        %5406 = vmatprep.mubr.f32.mxu0 0.0
        %5407 = vmatmul.mubr.f32.gmra.mrb[0].mxu0 %v4408
        %v5408 = vpop.f32.mrb[0].mxu0
        %v5409 = vadd.f32 0.0, %v5408
        %v5410 = vpop.f32.mrb[0].mxu0
        %5411 = vmatprep.mubr.f32.mxu0 0.0
        %5412 = vmatmul.mubr.f32.gmra.mrb[0].mxu0 %v4410
        %v5413 = vpop.f32.mrb[0].mxu0
        %v5414 = vadd.f32 0.0, %v5413
        %v5415 = vpop.f32.mrb[0].mxu0
        %5416 = vmatprep.mubr.f32.mxu0 0.0
        %5417 = vmatmul.mubr.f32.gmra.mrb[0].mxu0 %v3722
        %v5418 = vpop.f32.mrb[0].mxu0
        %v5419 = vadd.f32 0.0, %v5418
        %v5420 = vpop.f32.mrb[0].mxu0
        %5421 = vmatprep.mubr.f32.mxu0 0.0
        %5422 = vmatmul.mubr.f32.gmra.mrb[0].mxu0 %v3724
        %v5423 = vpop.f32.mrb[0].mxu0
        %v5424 = vadd.f32 0.0, %v5423
        %v5425 = vpop.f32.mrb[0].mxu0
        %5426 = vdwg.mxu0
        %v5427 = vadd.f32 %v5170, %v5269
        %v5428 = vadd.f32 %v5171, %v5274
        %v5429 = vadd.f32 %v5172, %v5279
        %v5430 = vadd.f32 %v5173, %v5284
        %v5431 = vadd.f32 %v5174, %v5289
        %v5432 = vadd.f32 %v5175, %v5294
        %v5433 = vadd.f32 %v5176, %v5299
        %v5434 = vadd.f32 %v5177, %v5304
        %v5435 = vadd.f32 %v5178, %v5309
        %v5436 = vadd.f32 %v5179, %v5314
        %v5437 = vadd.f32 %v5180, %v5319
        %v5438 = vadd.f32 %v5181, %v5324
        %v5439 = vadd.f32 %v5182, %v5329
        %v5440 = vadd.f32 %v5183, %v5334
        %v5441 = vadd.f32 %v5184, %v5339
        %v5442 = vadd.f32 %v5185, %v5344
        %v5443 = vadd.f32 %v5186, %v5349
        %v5444 = vadd.f32 %v5187, %v5354
        %v5445 = vadd.f32 %v5188, %v5359
        %v5446 = vadd.f32 %v5189, %v5364
        %v5447 = vadd.f32 %v5190, %v5369
        %v5448 = vadd.f32 %v5191, %v5374
        %v5449 = vadd.f32 %v5192, %v5379
        %v5450 = vadd.f32 %v5193, %v5384
        %v5451 = vadd.f32 %v5194, %v5389
        %v5452 = vadd.f32 %v5195, %v5394
        %v5453 = vadd.f32 %v5196, %v5399
        %v5454 = vadd.f32 %v5197, %v5404
        %v5455 = vadd.f32 %v5198, %v5409
        %v5456 = vadd.f32 %v5199, %v5414
        %v5457 = vadd.f32 %v5200, %v5419
        %v5458 = vadd.f32 %v5201, %v5424
        %5459 = vmatprep.subr.mxu0 0.0
        %5460 = vmatpush1.msra.mxu0 %v239
        %5461 = vmatprep.subr.mxu0 0.0
        %5462 = vmatpush1.msra.mxu0 0.0
        %5463 = vmatprep.subr.mxu0 0.0
        %5464 = vmatpush1.msra.mxu0 0.0
        %5465 = vmatprep.subr.mxu0 0.0
        %5466 = vmatpush1.msra.mxu0 0.0
        %5467 = vmatprep.subr.mxu0 0.0
        %5468 = vmatpush1.msra.mxu0 0.0
        %5469 = vmatprep.subr.mxu0 0.0
        %5470 = vmatpush1.msra.mxu0 0.0
        %5471 = vmatprep.subr.mxu0 0.0
        %5472 = vmatpush1.msra.mxu0 0.0
        %5473 = vmatprep.subr.mxu0 0.0
        %5474 = vmatpush1.msra.mxu0 0.0
        %5475 = vmatprep.subr.mxu0 0.0
        %5476 = vmatpush1.msra.mxu0 0.0
        %5477 = vmatprep.subr.mxu0 0.0
        %5478 = vmatpush1.msra.mxu0 0.0
        %5479 = vmatprep.subr.mxu0 0.0
        %5480 = vmatpush1.msra.mxu0 0.0
        %5481 = vmatprep.subr.mxu0 0.0
        %5482 = vmatpush1.msra.mxu0 0.0
        %5483 = vmatprep.subr.mxu0 0.0
        %5484 = vmatpush1.msra.mxu0 0.0
        %5485 = vmatprep.subr.mxu0 0.0
        %5486 = vmatpush1.msra.mxu0 0.0
        %5487 = vmatprep.subr.mxu0 0.0
        %5488 = vmatpush1.msra.mxu0 0.0
        %5489 = vmatprep.subr.mxu0 0.0
        %5490 = vmatpush1.msra.mxu0 0.0
        %5491 = vmatprep.subr.mxu0 0.0
        %5492 = vmatpush1.msra.mxu0 0.0
        %5493 = vmatprep.subr.mxu0 0.0
        %5494 = vmatpush1.msra.mxu0 0.0
        %5495 = vmatprep.subr.mxu0 0.0
        %5496 = vmatpush1.msra.mxu0 0.0
        %5497 = vmatprep.subr.mxu0 0.0
        %5498 = vmatpush1.msra.mxu0 0.0
        %5499 = vmatprep.subr.mxu0 0.0
        %5500 = vmatpush1.msra.mxu0 0.0
        %5501 = vmatprep.subr.mxu0 0.0
        %5502 = vmatpush1.msra.mxu0 0.0
        %5503 = vmatprep.subr.mxu0 0.0
        %5504 = vmatpush1.msra.mxu0 0.0
        %5505 = vmatprep.subr.mxu0 0.0
        %5506 = vmatpush1.msra.mxu0 0.0
        %5507 = vmatprep.subr.mxu0 0.0
        %5508 = vmatpush1.msra.mxu0 0.0
        %5509 = vmatprep.subr.mxu0 0.0
        %5510 = vmatpush1.msra.mxu0 0.0
        %5511 = vmatprep.subr.mxu0 0.0
        %5512 = vmatpush1.msra.mxu0 0.0
        %5513 = vmatprep.subr.mxu0 0.0
        %5514 = vmatpush1.msra.mxu0 0.0
        %5515 = vmatprep.subr.mxu0 0.0
        %5516 = vmatpush1.msra.mxu0 0.0
        %5517 = vmatprep.subr.mxu0 0.0
        %5518 = vmatpush1.msra.mxu0 0.0
        %5519 = vmatprep.subr.mxu0 0.0
        %5520 = vmatpush1.msra.mxu0 0.0
        %5521 = vmatprep.subr.mxu0 0.0
        %5522 = vmatpush1.msra.mxu0 0.0
        %5523 = vmatprep.mubr.f32.mxu0 0.0
        %5524 = vmatmul.mubr.f32.gmra.mrb[0].mxu0 %v3441
        %v5525 = vpop.f32.mrb[0].mxu0
        %v5526 = vadd.f32 0.0, %v5525
        %v5527 = vpop.f32.mrb[0].mxu0
        %5528 = vmatprep.mubr.f32.mxu0 0.0
        %5529 = vmatmul.mubr.f32.gmra.mrb[0].mxu0 %v3443
        %v5530 = vpop.f32.mrb[0].mxu0
        %v5531 = vadd.f32 0.0, %v5530
        %v5532 = vpop.f32.mrb[0].mxu0
        %5533 = vmatprep.mubr.f32.mxu0 0.0
        %5534 = vmatmul.mubr.f32.gmra.mrb[0].mxu0 %v3445
        %v5535 = vpop.f32.mrb[0].mxu0
        %v5536 = vadd.f32 0.0, %v5535
        %v5537 = vpop.f32.mrb[0].mxu0
        %5538 = vmatprep.mubr.f32.mxu0 0.0
        %5539 = vmatmul.mubr.f32.gmra.mrb[0].mxu0 %v3447
        %v5540 = vpop.f32.mrb[0].mxu0
        %v5541 = vadd.f32 0.0, %v5540
        %v5542 = vpop.f32.mrb[0].mxu0
        %5543 = vmatprep.mubr.f32.mxu0 0.0
        %5544 = vmatmul.mubr.f32.gmra.mrb[0].mxu0 %v3449
        %v5545 = vpop.f32.mrb[0].mxu0
        %v5546 = vadd.f32 0.0, %v5545
        %v5547 = vpop.f32.mrb[0].mxu0
        %5548 = vmatprep.mubr.f32.mxu0 0.0
        %5549 = vmatmul.mubr.f32.gmra.mrb[0].mxu0 %v3451
        %v5550 = vpop.f32.mrb[0].mxu0
        %v5551 = vadd.f32 0.0, %v5550
        %v5552 = vpop.f32.mrb[0].mxu0
        %5553 = vmatprep.mubr.f32.mxu0 0.0
        %5554 = vmatmul.mubr.f32.gmra.mrb[0].mxu0 %v3453
        %v5555 = vpop.f32.mrb[0].mxu0
        %v5556 = vadd.f32 0.0, %v5555
        %v5557 = vpop.f32.mrb[0].mxu0
        %5558 = vmatprep.mubr.f32.mxu0 0.0
        %5559 = vmatmul.mubr.f32.gmra.mrb[0].mxu0 %v3455
        %v5560 = vpop.f32.mrb[0].mxu0
        %v5561 = vadd.f32 0.0, %v5560
        %v5562 = vpop.f32.mrb[0].mxu0
        %5563 = vmatprep.mubr.f32.mxu0 0.0
        %5564 = vmatmul.mubr.f32.gmra.mrb[0].mxu0 %v3457
        %v5565 = vpop.f32.mrb[0].mxu0
        %v5566 = vadd.f32 0.0, %v5565
        %v5567 = vpop.f32.mrb[0].mxu0
        %5568 = vmatprep.mubr.f32.mxu0 0.0
        %5569 = vmatmul.mubr.f32.gmra.mrb[0].mxu0 %v3459
        %v5570 = vpop.f32.mrb[0].mxu0
        %v5571 = vadd.f32 0.0, %v5570
        %v5572 = vpop.f32.mrb[0].mxu0
        %5573 = vmatprep.mubr.f32.mxu0 0.0
        %5574 = vmatmul.mubr.f32.gmra.mrb[0].mxu0 %v3461
        %v5575 = vpop.f32.mrb[0].mxu0
        %v5576 = vadd.f32 0.0, %v5575
        %v5577 = vpop.f32.mrb[0].mxu0
        %5578 = vmatprep.mubr.f32.mxu0 0.0
        %5579 = vmatmul.mubr.f32.gmra.mrb[0].mxu0 %v3463
        %v5580 = vpop.f32.mrb[0].mxu0
        %v5581 = vadd.f32 0.0, %v5580
        %v5582 = vpop.f32.mrb[0].mxu0
        %5583 = vmatprep.mubr.f32.mxu0 0.0
        %5584 = vmatmul.mubr.f32.gmra.mrb[0].mxu0 %v3465
        %v5585 = vpop.f32.mrb[0].mxu0
        %v5586 = vadd.f32 0.0, %v5585
        %v5587 = vpop.f32.mrb[0].mxu0
        %5588 = vmatprep.mubr.f32.mxu0 0.0
        %5589 = vmatmul.mubr.f32.gmra.mrb[0].mxu0 %v3467
        %v5590 = vpop.f32.mrb[0].mxu0
        %v5591 = vadd.f32 0.0, %v5590
        %v5592 = vpop.f32.mrb[0].mxu0
        %5593 = vmatprep.mubr.f32.mxu0 0.0
        %5594 = vmatmul.mubr.f32.gmra.mrb[0].mxu0 %v3469
        %v5595 = vpop.f32.mrb[0].mxu0
        %v5596 = vadd.f32 0.0, %v5595
        %v5597 = vpop.f32.mrb[0].mxu0
        %5598 = vmatprep.mubr.f32.mxu0 0.0
        %5599 = vmatmul.mubr.f32.gmra.mrb[0].mxu0 %v3471
        %v5600 = vpop.f32.mrb[0].mxu0
        %v5601 = vadd.f32 0.0, %v5600
        %v5602 = vpop.f32.mrb[0].mxu0
        %5603 = vmatprep.mubr.f32.mxu0 0.0
        %5604 = vmatmul.mubr.f32.gmra.mrb[0].mxu0 %v3473
        %v5605 = vpop.f32.mrb[0].mxu0
        %v5606 = vadd.f32 0.0, %v5605
        %v5607 = vpop.f32.mrb[0].mxu0
        %5608 = vmatprep.mubr.f32.mxu0 0.0
        %5609 = vmatmul.mubr.f32.gmra.mrb[0].mxu0 %v3475
        %v5610 = vpop.f32.mrb[0].mxu0
        %v5611 = vadd.f32 0.0, %v5610
        %v5612 = vpop.f32.mrb[0].mxu0
        %5613 = vmatprep.mubr.f32.mxu0 0.0
        %5614 = vmatmul.mubr.f32.gmra.mrb[0].mxu0 %v3477
        %v5615 = vpop.f32.mrb[0].mxu0
        %v5616 = vadd.f32 0.0, %v5615
        %v5617 = vpop.f32.mrb[0].mxu0
        %5618 = vmatprep.mubr.f32.mxu0 0.0
        %5619 = vmatmul.mubr.f32.gmra.mrb[0].mxu0 %v3479
        %v5620 = vpop.f32.mrb[0].mxu0
        %v5621 = vadd.f32 0.0, %v5620
        %v5622 = vpop.f32.mrb[0].mxu0
        %5623 = vmatprep.mubr.f32.mxu0 0.0
        %5624 = vmatmul.mubr.f32.gmra.mrb[0].mxu0 %v3481
        %v5625 = vpop.f32.mrb[0].mxu0
        %v5626 = vadd.f32 0.0, %v5625
        %v5627 = vpop.f32.mrb[0].mxu0
        %5628 = vmatprep.mubr.f32.mxu0 0.0
        %5629 = vmatmul.mubr.f32.gmra.mrb[0].mxu0 %v3483
        %v5630 = vpop.f32.mrb[0].mxu0
        %v5631 = vadd.f32 0.0, %v5630
        %v5632 = vpop.f32.mrb[0].mxu0
        %5633 = vmatprep.mubr.f32.mxu0 0.0
        %5634 = vmatmul.mubr.f32.gmra.mrb[0].mxu0 %v3485
        %v5635 = vpop.f32.mrb[0].mxu0
        %v5636 = vadd.f32 0.0, %v5635
        %v5637 = vpop.f32.mrb[0].mxu0
        %5638 = vmatprep.mubr.f32.mxu0 0.0
        %5639 = vmatmul.mubr.f32.gmra.mrb[0].mxu0 %v3487
        %v5640 = vpop.f32.mrb[0].mxu0
        %v5641 = vadd.f32 0.0, %v5640
        %v5642 = vpop.f32.mrb[0].mxu0
        %5643 = vmatprep.mubr.f32.mxu0 0.0
        %5644 = vmatmul.mubr.f32.gmra.mrb[0].mxu0 %v3489
        %v5645 = vpop.f32.mrb[0].mxu0
        %v5646 = vadd.f32 0.0, %v5645
        %v5647 = vpop.f32.mrb[0].mxu0
        %5648 = vmatprep.mubr.f32.mxu0 0.0
        %5649 = vmatmul.mubr.f32.gmra.mrb[0].mxu0 %v3491
        %v5650 = vpop.f32.mrb[0].mxu0
        %v5651 = vadd.f32 0.0, %v5650
        %v5652 = vpop.f32.mrb[0].mxu0
        %5653 = vmatprep.mubr.f32.mxu0 0.0
        %5654 = vmatmul.mubr.f32.gmra.mrb[0].mxu0 %v3493
        %v5655 = vpop.f32.mrb[0].mxu0
        %v5656 = vadd.f32 0.0, %v5655
        %v5657 = vpop.f32.mrb[0].mxu0
        %5658 = vmatprep.mubr.f32.mxu0 0.0
        %5659 = vmatmul.mubr.f32.gmra.mrb[0].mxu0 %v3495
        %v5660 = vpop.f32.mrb[0].mxu0
        %v5661 = vadd.f32 0.0, %v5660
        %v5662 = vpop.f32.mrb[0].mxu0
        %5663 = vmatprep.mubr.f32.mxu0 0.0
        %5664 = vmatmul.mubr.f32.gmra.mrb[0].mxu0 %v4675
        %v5665 = vpop.f32.mrb[0].mxu0
        %v5666 = vadd.f32 0.0, %v5665
        %v5667 = vpop.f32.mrb[0].mxu0
        %5668 = vmatprep.mubr.f32.mxu0 0.0
        %5669 = vmatmul.mubr.f32.gmra.mrb[0].mxu0 %v4677
        %v5670 = vpop.f32.mrb[0].mxu0
        %v5671 = vadd.f32 0.0, %v5670
        %v5672 = vpop.f32.mrb[0].mxu0
        %5673 = vmatprep.mubr.f32.mxu0 0.0
        %5674 = vmatmul.mubr.f32.gmra.mrb[0].mxu0 %v3433
        %v5675 = vpop.f32.mrb[0].mxu0
        %v5676 = vadd.f32 0.0, %v5675
        %v5677 = vpop.f32.mrb[0].mxu0
        %5678 = vmatprep.mubr.f32.mxu0 0.0
        %5679 = vmatmul.mubr.f32.gmra.mrb[0].mxu0 %v3435
        %v5680 = vpop.f32.mrb[0].mxu0
        %v5681 = vadd.f32 0.0, %v5680
        %v5682 = vpop.f32.mrb[0].mxu0
        %5683 = vdwg.mxu0
        %v5684 = vadd.f32 %v5427, %v5526
        %v5685 = vadd.f32 %v5428, %v5531
        %v5686 = vadd.f32 %v5429, %v5536
        %v5687 = vadd.f32 %v5430, %v5541
        %v5688 = vadd.f32 %v5431, %v5546
        %v5689 = vadd.f32 %v5432, %v5551
        %v5690 = vadd.f32 %v5433, %v5556
        %v5691 = vadd.f32 %v5434, %v5561
        %v5692 = vadd.f32 %v5435, %v5566
        %v5693 = vadd.f32 %v5436, %v5571
        %v5694 = vadd.f32 %v5437, %v5576
        %v5695 = vadd.f32 %v5438, %v5581
        %v5696 = vadd.f32 %v5439, %v5586
        %v5697 = vadd.f32 %v5440, %v5591
        %v5698 = vadd.f32 %v5441, %v5596
        %v5699 = vadd.f32 %v5442, %v5601
        %v5700 = vadd.f32 %v5443, %v5606
        %v5701 = vadd.f32 %v5444, %v5611
        %v5702 = vadd.f32 %v5445, %v5616
        %v5703 = vadd.f32 %v5446, %v5621
        %v5704 = vadd.f32 %v5447, %v5626
        %v5705 = vadd.f32 %v5448, %v5631
        %v5706 = vadd.f32 %v5449, %v5636
        %v5707 = vadd.f32 %v5450, %v5641
        %v5708 = vadd.f32 %v5451, %v5646
        %v5709 = vadd.f32 %v5452, %v5651
        %v5710 = vadd.f32 %v5453, %v5656
        %v5711 = vadd.f32 %v5454, %v5661
        %v5712 = vadd.f32 %v5455, %v5666
        %v5713 = vadd.f32 %v5456, %v5671
        %v5714 = vadd.f32 %v5457, %v5676
        %v5715 = vadd.f32 %v5458, %v5681
        %5716 = vmatprep.subr.mxu0 0.0
        %5717 = vmatpush1.msra.mxu0 %v240
        %5718 = vmatprep.subr.mxu0 0.0
        %5719 = vmatpush1.msra.mxu0 0.0
        %5720 = vmatprep.subr.mxu0 0.0
        %5721 = vmatpush1.msra.mxu0 0.0
        %5722 = vmatprep.subr.mxu0 0.0
        %5723 = vmatpush1.msra.mxu0 0.0
        %5724 = vmatprep.subr.mxu0 0.0
        %5725 = vmatpush1.msra.mxu0 0.0
        %5726 = vmatprep.subr.mxu0 0.0
        %5727 = vmatpush1.msra.mxu0 0.0
        %5728 = vmatprep.subr.mxu0 0.0
        %5729 = vmatpush1.msra.mxu0 0.0
        %5730 = vmatprep.subr.mxu0 0.0
        %5731 = vmatpush1.msra.mxu0 0.0
        %5732 = vmatprep.subr.mxu0 0.0
        %5733 = vmatpush1.msra.mxu0 0.0
        %5734 = vmatprep.subr.mxu0 0.0
        %5735 = vmatpush1.msra.mxu0 0.0
        %5736 = vmatprep.subr.mxu0 0.0
        %5737 = vmatpush1.msra.mxu0 0.0
        %5738 = vmatprep.subr.mxu0 0.0
        %5739 = vmatpush1.msra.mxu0 0.0
        %5740 = vmatprep.subr.mxu0 0.0
        %5741 = vmatpush1.msra.mxu0 0.0
        %5742 = vmatprep.subr.mxu0 0.0
        %5743 = vmatpush1.msra.mxu0 0.0
        %5744 = vmatprep.subr.mxu0 0.0
        %5745 = vmatpush1.msra.mxu0 0.0
        %5746 = vmatprep.subr.mxu0 0.0
        %5747 = vmatpush1.msra.mxu0 0.0
        %5748 = vmatprep.subr.mxu0 0.0
        %5749 = vmatpush1.msra.mxu0 0.0
        %5750 = vmatprep.subr.mxu0 0.0
        %5751 = vmatpush1.msra.mxu0 0.0
        %5752 = vmatprep.subr.mxu0 0.0
        %5753 = vmatpush1.msra.mxu0 0.0
        %5754 = vmatprep.subr.mxu0 0.0
        %5755 = vmatpush1.msra.mxu0 0.0
        %5756 = vmatprep.subr.mxu0 0.0
        %5757 = vmatpush1.msra.mxu0 0.0
        %5758 = vmatprep.subr.mxu0 0.0
        %5759 = vmatpush1.msra.mxu0 0.0
        %5760 = vmatprep.subr.mxu0 0.0
        %5761 = vmatpush1.msra.mxu0 0.0
        %5762 = vmatprep.subr.mxu0 0.0
        %5763 = vmatpush1.msra.mxu0 0.0
        %5764 = vmatprep.subr.mxu0 0.0
        %5765 = vmatpush1.msra.mxu0 0.0
        %5766 = vmatprep.subr.mxu0 0.0
        %5767 = vmatpush1.msra.mxu0 0.0
        %5768 = vmatprep.subr.mxu0 0.0
        %5769 = vmatpush1.msra.mxu0 0.0
        %5770 = vmatprep.subr.mxu0 0.0
        %5771 = vmatpush1.msra.mxu0 0.0
        %5772 = vmatprep.subr.mxu0 0.0
        %5773 = vmatpush1.msra.mxu0 0.0
        %5774 = vmatprep.subr.mxu0 0.0
        %5775 = vmatpush1.msra.mxu0 0.0
        %5776 = vmatprep.subr.mxu0 0.0
        %5777 = vmatpush1.msra.mxu0 0.0
        %5778 = vmatprep.subr.mxu0 0.0
        %5779 = vmatpush1.msra.mxu0 0.0
        %5780 = vmatprep.mubr.f32.mxu0 0.0
        %5781 = vmatmul.mubr.f32.gmra.mrb[0].mxu0 %v4094
        %v5782 = vpop.f32.mrb[0].mxu0
        %v5783 = vadd.f32 0.0, %v5782
        %v5784 = vpop.f32.mrb[0].mxu0
        %5785 = vmatprep.mubr.f32.mxu0 0.0
        %5786 = vmatmul.mubr.f32.gmra.mrb[0].mxu0 %v4096
        %v5787 = vpop.f32.mrb[0].mxu0
        %v5788 = vadd.f32 0.0, %v5787
        %v5789 = vpop.f32.mrb[0].mxu0
        %5790 = vmatprep.mubr.f32.mxu0 0.0
        %5791 = vmatmul.mubr.f32.gmra.mrb[0].mxu0 %v4098
        %v5792 = vpop.f32.mrb[0].mxu0
        %v5793 = vadd.f32 0.0, %v5792
        %v5794 = vpop.f32.mrb[0].mxu0
        %5795 = vmatprep.mubr.f32.mxu0 0.0
        %5796 = vmatmul.mubr.f32.gmra.mrb[0].mxu0 %v4100
        %v5797 = vpop.f32.mrb[0].mxu0
        %v5798 = vadd.f32 0.0, %v5797
        %v5799 = vpop.f32.mrb[0].mxu0
        %5800 = vmatprep.mubr.f32.mxu0 0.0
        %5801 = vmatmul.mubr.f32.gmra.mrb[0].mxu0 %v4102
        %v5802 = vpop.f32.mrb[0].mxu0
        %v5803 = vadd.f32 0.0, %v5802
        %v5804 = vpop.f32.mrb[0].mxu0
        %5805 = vmatprep.mubr.f32.mxu0 0.0
        %5806 = vmatmul.mubr.f32.gmra.mrb[0].mxu0 %v4104
        %v5807 = vpop.f32.mrb[0].mxu0
        %v5808 = vadd.f32 0.0, %v5807
        %v5809 = vpop.f32.mrb[0].mxu0
        %5810 = vmatprep.mubr.f32.mxu0 0.0
        %5811 = vmatmul.mubr.f32.gmra.mrb[0].mxu0 %v4106
        %v5812 = vpop.f32.mrb[0].mxu0
        %v5813 = vadd.f32 0.0, %v5812
        %v5814 = vpop.f32.mrb[0].mxu0
        %5815 = vmatprep.mubr.f32.mxu0 0.0
        %5816 = vmatmul.mubr.f32.gmra.mrb[0].mxu0 %v4108
        %v5817 = vpop.f32.mrb[0].mxu0
        %v5818 = vadd.f32 0.0, %v5817
        %v5819 = vpop.f32.mrb[0].mxu0
        %5820 = vmatprep.mubr.f32.mxu0 0.0
        %5821 = vmatmul.mubr.f32.gmra.mrb[0].mxu0 %v4110
        %v5822 = vpop.f32.mrb[0].mxu0
        %v5823 = vadd.f32 0.0, %v5822
        %v5824 = vpop.f32.mrb[0].mxu0
        %5825 = vmatprep.mubr.f32.mxu0 0.0
        %5826 = vmatmul.mubr.f32.gmra.mrb[0].mxu0 %v4112
        %v5827 = vpop.f32.mrb[0].mxu0
        %v5828 = vadd.f32 0.0, %v5827
        %v5829 = vpop.f32.mrb[0].mxu0
        %5830 = vmatprep.mubr.f32.mxu0 0.0
        %5831 = vmatmul.mubr.f32.gmra.mrb[0].mxu0 %v4114
        %v5832 = vpop.f32.mrb[0].mxu0
        %v5833 = vadd.f32 0.0, %v5832
        %v5834 = vpop.f32.mrb[0].mxu0
        %5835 = vmatprep.mubr.f32.mxu0 0.0
        %5836 = vmatmul.mubr.f32.gmra.mrb[0].mxu0 %v4116
        %v5837 = vpop.f32.mrb[0].mxu0
        %v5838 = vadd.f32 0.0, %v5837
        %v5839 = vpop.f32.mrb[0].mxu0
        %5840 = vmatprep.mubr.f32.mxu0 0.0
        %5841 = vmatmul.mubr.f32.gmra.mrb[0].mxu0 %v4118
        %v5842 = vpop.f32.mrb[0].mxu0
        %v5843 = vadd.f32 0.0, %v5842
        %v5844 = vpop.f32.mrb[0].mxu0
        %5845 = vmatprep.mubr.f32.mxu0 0.0
        %5846 = vmatmul.mubr.f32.gmra.mrb[0].mxu0 %v4120
        %v5847 = vpop.f32.mrb[0].mxu0
        %v5848 = vadd.f32 0.0, %v5847
        %v5849 = vpop.f32.mrb[0].mxu0
        %5850 = vmatprep.mubr.f32.mxu0 0.0
        %5851 = vmatmul.mubr.f32.gmra.mrb[0].mxu0 %v4122
        %v5852 = vpop.f32.mrb[0].mxu0
        %v5853 = vadd.f32 0.0, %v5852
        %v5854 = vpop.f32.mrb[0].mxu0
        %5855 = vmatprep.mubr.f32.mxu0 0.0
        %5856 = vmatmul.mubr.f32.gmra.mrb[0].mxu0 %v4124
        %v5857 = vpop.f32.mrb[0].mxu0
        %v5858 = vadd.f32 0.0, %v5857
        %v5859 = vpop.f32.mrb[0].mxu0
        %5860 = vmatprep.mubr.f32.mxu0 0.0
        %5861 = vmatmul.mubr.f32.gmra.mrb[0].mxu0 %v4126
        %v5862 = vpop.f32.mrb[0].mxu0
        %v5863 = vadd.f32 0.0, %v5862
        %v5864 = vpop.f32.mrb[0].mxu0
        %5865 = vmatprep.mubr.f32.mxu0 0.0
        %5866 = vmatmul.mubr.f32.gmra.mrb[0].mxu0 %v4128
        %v5867 = vpop.f32.mrb[0].mxu0
        %v5868 = vadd.f32 0.0, %v5867
        %v5869 = vpop.f32.mrb[0].mxu0
        %5870 = vmatprep.mubr.f32.mxu0 0.0
        %5871 = vmatmul.mubr.f32.gmra.mrb[0].mxu0 %v4130
        %v5872 = vpop.f32.mrb[0].mxu0
        %v5873 = vadd.f32 0.0, %v5872
        %v5874 = vpop.f32.mrb[0].mxu0
        %5875 = vmatprep.mubr.f32.mxu0 0.0
        %5876 = vmatmul.mubr.f32.gmra.mrb[0].mxu0 %v4132
        %v5877 = vpop.f32.mrb[0].mxu0
        %v5878 = vadd.f32 0.0, %v5877
        %v5879 = vpop.f32.mrb[0].mxu0
        %5880 = vmatprep.mubr.f32.mxu0 0.0
        %5881 = vmatmul.mubr.f32.gmra.mrb[0].mxu0 %v4134
        %v5882 = vpop.f32.mrb[0].mxu0
        %v5883 = vadd.f32 0.0, %v5882
        %v5884 = vpop.f32.mrb[0].mxu0
        %5885 = vmatprep.mubr.f32.mxu0 0.0
        %5886 = vmatmul.mubr.f32.gmra.mrb[0].mxu0 %v4136
        %v5887 = vpop.f32.mrb[0].mxu0
        %v5888 = vadd.f32 0.0, %v5887
        %v5889 = vpop.f32.mrb[0].mxu0
        %5890 = vmatprep.mubr.f32.mxu0 0.0
        %5891 = vmatmul.mubr.f32.gmra.mrb[0].mxu0 %v4138
        %v5892 = vpop.f32.mrb[0].mxu0
        %v5893 = vadd.f32 0.0, %v5892
        %v5894 = vpop.f32.mrb[0].mxu0
        %5895 = vmatprep.mubr.f32.mxu0 0.0
        %5896 = vmatmul.mubr.f32.gmra.mrb[0].mxu0 %v4140
        %v5897 = vpop.f32.mrb[0].mxu0
        %v5898 = vadd.f32 0.0, %v5897
        %v5899 = vpop.f32.mrb[0].mxu0
        %5900 = vmatprep.mubr.f32.mxu0 0.0
        %5901 = vmatmul.mubr.f32.gmra.mrb[0].mxu0 %v4142
        %v5902 = vpop.f32.mrb[0].mxu0
        %v5903 = vadd.f32 0.0, %v5902
        %v5904 = vpop.f32.mrb[0].mxu0
        %5905 = vmatprep.mubr.f32.mxu0 0.0
        %5906 = vmatmul.mubr.f32.gmra.mrb[0].mxu0 %v4144
        %v5907 = vpop.f32.mrb[0].mxu0
        %v5908 = vadd.f32 0.0, %v5907
        %v5909 = vpop.f32.mrb[0].mxu0
        %5910 = vmatprep.mubr.f32.mxu0 0.0
        %5911 = vmatmul.mubr.f32.gmra.mrb[0].mxu0 %v4146
        %v5912 = vpop.f32.mrb[0].mxu0
        %v5913 = vadd.f32 0.0, %v5912
        %v5914 = vpop.f32.mrb[0].mxu0
        %5915 = vmatprep.mubr.f32.mxu0 0.0
        %5916 = vmatmul.mubr.f32.gmra.mrb[0].mxu0 %v4148
        %v5917 = vpop.f32.mrb[0].mxu0
        %v5918 = vadd.f32 0.0, %v5917
        %v5919 = vpop.f32.mrb[0].mxu0
        %5920 = vmatprep.mubr.f32.mxu0 0.0
        %5921 = vmatmul.mubr.f32.gmra.mrb[0].mxu0 %v4941
        %v5922 = vpop.f32.mrb[0].mxu0
        %v5923 = vadd.f32 0.0, %v5922
        %v5924 = vpop.f32.mrb[0].mxu0
        %5925 = vmatprep.mubr.f32.mxu0 0.0
        %5926 = vmatmul.mubr.f32.gmra.mrb[0].mxu0 %v4943
        %v5927 = vpop.f32.mrb[0].mxu0
        %v5928 = vadd.f32 0.0, %v5927
        %v5929 = vpop.f32.mrb[0].mxu0
        %5930 = vmatprep.mubr.f32.mxu0 0.0
        %5931 = vmatmul.mubr.f32.gmra.mrb[0].mxu0 %v4086
        %v5932 = vpop.f32.mrb[0].mxu0
        %v5933 = vadd.f32 0.0, %v5932
        %v5934 = vpop.f32.mrb[0].mxu0
        %5935 = vmatprep.mubr.f32.mxu0 0.0
        %5936 = vmatmul.mubr.f32.gmra.mrb[0].mxu0 %v4088
        %v5937 = vpop.f32.mrb[0].mxu0
        %v5938 = vadd.f32 0.0, %v5937
        %v5939 = vpop.f32.mrb[0].mxu0
        %5940 = vdwg.mxu0
        %v5941 = vadd.f32 %v5684, %v5783
        %v5942 = vadd.f32 %v5685, %v5788
        %v5943 = vadd.f32 %v5686, %v5793
        %v5944 = vadd.f32 %v5687, %v5798
        %v5945 = vadd.f32 %v5688, %v5803
        %v5946 = vadd.f32 %v5689, %v5808
        %v5947 = vadd.f32 %v5690, %v5813
        %v5948 = vadd.f32 %v5691, %v5818
        %v5949 = vadd.f32 %v5692, %v5823
        %v5950 = vadd.f32 %v5693, %v5828
        %v5951 = vadd.f32 %v5694, %v5833
        %v5952 = vadd.f32 %v5695, %v5838
        %v5953 = vadd.f32 %v5696, %v5843
        %v5954 = vadd.f32 %v5697, %v5848
        %v5955 = vadd.f32 %v5698, %v5853
        %v5956 = vadd.f32 %v5699, %v5858
        %v5957 = vadd.f32 %v5700, %v5863
        %v5958 = vadd.f32 %v5701, %v5868
        %v5959 = vadd.f32 %v5702, %v5873
        %v5960 = vadd.f32 %v5703, %v5878
        %v5961 = vadd.f32 %v5704, %v5883
        %v5962 = vadd.f32 %v5705, %v5888
        %v5963 = vadd.f32 %v5706, %v5893
        %v5964 = vadd.f32 %v5707, %v5898
        %v5965 = vadd.f32 %v5708, %v5903
        %v5966 = vadd.f32 %v5709, %v5908
        %v5967 = vadd.f32 %v5710, %v5913
        %v5968 = vadd.f32 %v5711, %v5918
        %v5969 = vadd.f32 %v5712, %v5923
        %v5970 = vadd.f32 %v5713, %v5928
        %v5971 = vadd.f32 %v5714, %v5933
        %v5972 = vadd.f32 %v5715, %v5938
        %v5973 = vld [vmem:[%s4] sm:$0x1]
        %v5975 = vlaneseq
        %v5976 = vshrl.u32 %v5975, 7
        %v5977 = vsub.s32 0, %v5976
        %v5978 = vrot.slane %v5973, %v5977
        %v5980 = vadd.f32 %v5941, %v5978
        %v5981 = vadd.f32 %v5942, %v5978
        %v5982 = vadd.f32 %v5943, %v5978
        %v5983 = vadd.f32 %v5944, %v5978
        %v5984 = vadd.f32 %v5945, %v5978
        %v5985 = vadd.f32 %v5946, %v5978
        %v5986 = vadd.f32 %v5947, %v5978
        %v5987 = vadd.f32 %v5948, %v5978
        %v5988 = vadd.f32 %v5949, %v5978
        %v5989 = vadd.f32 %v5950, %v5978
        %v5990 = vadd.f32 %v5951, %v5978
        %v5991 = vadd.f32 %v5952, %v5978
        %v5992 = vadd.f32 %v5953, %v5978
        %v5993 = vadd.f32 %v5954, %v5978
        %v5994 = vadd.f32 %v5955, %v5978
        %v5995 = vadd.f32 %v5956, %v5978
        %v5996 = vadd.f32 %v5957, %v5978
        %v5997 = vadd.f32 %v5958, %v5978
        %v5998 = vadd.f32 %v5959, %v5978
        %v5999 = vadd.f32 %v5960, %v5978
        %v6000 = vadd.f32 %v5961, %v5978
        %v6001 = vadd.f32 %v5962, %v5978
        %v6002 = vadd.f32 %v5963, %v5978
        %v6003 = vadd.f32 %v5964, %v5978
        %v6004 = vadd.f32 %v5965, %v5978
        %v6005 = vadd.f32 %v5966, %v5978
        %v6006 = vadd.f32 %v5967, %v5978
        %v6007 = vadd.f32 %v5968, %v5978
        %v6008 = vadd.f32 %v5969, %v5978
        %v6009 = vadd.f32 %v5970, %v5978
        %v6010 = vadd.f32 %v5971, %v5978
        %v6011 = vadd.f32 %v5972, %v5978
        %v6012 = vmax.f32 %v5980, 0.0
        %v6013 = vmax.f32 %v5981, 0.0
        %v6014 = vmax.f32 %v5982, 0.0
        %v6015 = vmax.f32 %v5983, 0.0
        %v6016 = vmax.f32 %v5984, 0.0
        %v6017 = vmax.f32 %v5985, 0.0
        %v6018 = vmax.f32 %v5986, 0.0
        %v6019 = vmax.f32 %v5987, 0.0
        %v6020 = vmax.f32 %v5988, 0.0
        %v6021 = vmax.f32 %v5989, 0.0
        %v6022 = vmax.f32 %v5990, 0.0
        %v6023 = vmax.f32 %v5991, 0.0
        %v6024 = vmax.f32 %v5992, 0.0
        %v6025 = vmax.f32 %v5993, 0.0
        %v6026 = vmax.f32 %v5994, 0.0
        %v6027 = vmax.f32 %v5995, 0.0
        %v6028 = vmax.f32 %v5996, 0.0
        %v6029 = vmax.f32 %v5997, 0.0
        %v6030 = vmax.f32 %v5998, 0.0
        %v6031 = vmax.f32 %v5999, 0.0
        %v6032 = vmax.f32 %v6000, 0.0
        %v6033 = vmax.f32 %v6001, 0.0
        %v6034 = vmax.f32 %v6002, 0.0
        %v6035 = vmax.f32 %v6003, 0.0
        %v6036 = vmax.f32 %v6004, 0.0
        %v6037 = vmax.f32 %v6005, 0.0
        %v6038 = vmax.f32 %v6006, 0.0
        %v6039 = vmax.f32 %v6007, 0.0
        %v6040 = vmax.f32 %v6008, 0.0
        %v6041 = vmax.f32 %v6009, 0.0
        %v6042 = vmax.f32 %v6010, 0.0
        %v6043 = vmax.f32 %v6011, 0.0
        %vm6044 = vcmask 130048
        %6045 = vst.msk [vmem:[%s217] sm:$0xff] %vm6044, %v6012
        %6046 = vst.msk [vmem:[%s217 + $0x8] sm:$0xff] %vm6044, %v6013
        %6047 = vst.msk [vmem:[%s217 + $0x10] sm:$0xff] %vm6044, %v6014
        %6048 = vst.msk [vmem:[%s217 + $0x18] sm:$0xff] %vm6044, %v6015
        %6049 = vst.msk [vmem:[%s217 + $0x20] sm:$0xff] %vm6044, %v6016
        %6050 = vst.msk [vmem:[%s217 + $0x28] sm:$0xff] %vm6044, %v6017
        %6051 = vst.msk [vmem:[%s217 + $0x30] sm:$0xff] %vm6044, %v6018
        %6052 = vst.msk [vmem:[%s217 + $0x38] sm:$0xff] %vm6044, %v6019
        %6053 = vst.msk [vmem:[%s217 + $0x40] sm:$0xff] %vm6044, %v6020
        %6054 = vst.msk [vmem:[%s217 + $0x48] sm:$0xff] %vm6044, %v6021
        %6055 = vst.msk [vmem:[%s217 + $0x50] sm:$0xff] %vm6044, %v6022
        %6056 = vst.msk [vmem:[%s217 + $0x58] sm:$0xff] %vm6044, %v6023
        %6057 = vst.msk [vmem:[%s217 + $0x60] sm:$0xff] %vm6044, %v6024
        %6058 = vst.msk [vmem:[%s217 + $0x68] sm:$0xff] %vm6044, %v6025
        %6059 = vst.msk [vmem:[%s217 + $0x70] sm:$0xff] %vm6044, %v6026
        %6060 = vst.msk [vmem:[%s217 + $0x78] sm:$0xff] %vm6044, %v6027
        %6061 = vst.msk [vmem:[%s217 + $0x80] sm:$0xff] %vm6044, %v6028
        %6062 = vst.msk [vmem:[%s217 + $0x88] sm:$0xff] %vm6044, %v6029
        %6063 = vst.msk [vmem:[%s217 + $0x90] sm:$0xff] %vm6044, %v6030
        %6064 = vst.msk [vmem:[%s217 + $0x98] sm:$0xff] %vm6044, %v6031
        %6065 = vst.msk [vmem:[%s217 + $0xa0] sm:$0xff] %vm6044, %v6032
        %6066 = vst.msk [vmem:[%s217 + $0xa8] sm:$0xff] %vm6044, %v6033
        %6067 = vst.msk [vmem:[%s217 + $0xb0] sm:$0xff] %vm6044, %v6034
        %6068 = vst.msk [vmem:[%s217 + $0xb8] sm:$0xff] %vm6044, %v6035
        %6069 = vst.msk [vmem:[%s217 + $0xc0] sm:$0xff] %vm6044, %v6036
        %6070 = vst.msk [vmem:[%s217 + $0xc8] sm:$0xff] %vm6044, %v6037
        %6071 = vst.msk [vmem:[%s217 + $0xd0] sm:$0xff] %vm6044, %v6038
        %6072 = vst.msk [vmem:[%s217 + $0xd8] sm:$0xff] %vm6044, %v6039
        %6073 = vst.msk [vmem:[%s217 + $0xe0] sm:$0xff] %vm6044, %v6040
        %6074 = vst.msk [vmem:[%s217 + $0xe8] sm:$0xff] %vm6044, %v6041
        %6075 = vst.msk [vmem:[%s217 + $0xf0] sm:$0xff] %vm6044, %v6042
        %6076 = vst.msk [vmem:[%s217 + $0xf8] sm:$0xff] %vm6044, %v6043
        %s6077 = sand.u32 %s137, 1
        %s6078 = scalar_lea.sflag [#allocation3], %s6077
        %s6079 = sand.u32 %s137, 1
        %s6080 = smul.addr %s6079, 256
        %s6081 = scalar_lea.vmem [#allocation2], %s6080
        // Predicated region
        $region41: #{tpu_custom_call.1} parent=39 // pred_check
          %p6082 = pneg %p147
        $region42: #{tpu_custom_call.1} parent=39 // pred_check_branch
          %6084 = sbr.rel (%p6082) target = $region44
        $region43: #{tpu_custom_call.1} parent=39 // pred_region
          %s6086 = ssub.s32 4096, 4096
          %6087 = vsyncadd %s6078, %s6086
          %s6088 = smul.addr %s19, 32
          %s6089 = smul.addr %s6088, 128
          %s6090 = scalar_lea.hbm %s5, %s6089
          %s6091 = sshll.u32 %s6081, 4
          %s6092 = int_to_ptr.vmem [resolvable:$true] %s6091
          %6097 = dma.vmem_to_hbm [thread:$0]  %s6092, 4096, %s6090, %s6078, 128, 128, 8
        $region44: #{tpu_custom_call.1} parent=39 // pred_fallthru
          _
      $region40: #{tpu_custom_call.1} parent=5 // pred_fallthru
        _
      %p6098 = scmp.le.s32.totalorder 2, %s14
      // Predicated region
      $region45: #{tpu_custom_call.1} parent=5 // pred_check
        %p6099 = pneg %p6098
      $region46: #{tpu_custom_call.1} parent=5 // pred_check_branch
        %6101 = sbr.rel (%p6099) target = $region48
      $region47: #{tpu_custom_call.1} parent=5 // pred_region
        %s6102 = ssub.s32 %s14, 2
        // Predicated region
        $region49: #{tpu_custom_call.1} parent=47 // pred_check
          %p6103 = pneg %p153
        $region50: #{tpu_custom_call.1} parent=47 // pred_check_branch
          %6105 = sbr.rel (%p6103) target = $region52
        $region51: #{tpu_custom_call.1} parent=47 // pred_region
          %s6106 = sand.u32 %s138, 1
          %s6107 = scalar_lea.sflag [#allocation3], %s6106
          %s6108 = sand.u32 %s138, 1
          %s6109 = smul.addr %s6108, 256
          %s6110 = scalar_lea.vmem [#allocation2], %s6109
          %6111 = dma.done %s6107, 4096
        $region52: #{tpu_custom_call.1} parent=47 // pred_fallthru
          _
      $region48: #{tpu_custom_call.1} parent=5 // pred_fallthru
        _
    $region6: #{tpu_custom_call.1} parent=1 // loop_footer
      %s18 = sadd.s32 1, %s14
    $region7: #{tpu_custom_call.1} parent=1 // loop_footer_branch
      %13 = sbr.rel target = $region3
    $region8: #{tpu_custom_call.1} parent=1 // loop_exit
      _
    %6112 = vsyncpa [#allocation3], 1
    %s6113 = scalar_lea.sflag [#allocation3], 1
    %6114 = vsyncpa %s6113, 1

</llo_original>
